<compile_context>
chip_gen: v7x
topology: tpu7x:2x2x1
jax: 0.10.0
libtpu: 0.0.40
codegen_flags: <defaults>
</compile_context>

<pallas_src>
import jax
import jax.numpy as jnp
from jax import lax
from jax.experimental import pallas as pl
from jax.experimental.pallas import tpu as pltpu


def _round_up(n, m):
    return ((n + m - 1) // m) * m


def _exact_dot(a, b, dimension_numbers):
    """f32 dot that is exact even if the MXU default f32 path is 1-pass bf16.

    `b` is always a 0/1 one-hot matrix here (exactly representable in bf16),
    so splitting `a` into a bf16-representable hi part plus a tiny lo residual
    and accumulating both products in f32 gives an (essentially) exact result
    on the guaranteed bf16 MXU path.  The MXU is nearly idle in this kernel,
    so the extra pass is free.
    """
    a_hi = a.astype(jnp.bfloat16).astype(jnp.float32)
    a_lo = a - a_hi
    out = lax.dot_general(a_hi, b, dimension_numbers,
                          preferred_element_type=jnp.float32)
    out += lax.dot_general(a_lo, b, dimension_numbers,
                           preferred_element_type=jnp.float32)
    return out


# -----------------------------------------------------------------------------
# Fused kernel: pair energy/force/virial + all scatter-adds + node->graph energy
# -----------------------------------------------------------------------------
def _fused_edge_node_call(pos_T, e_node_p, batch_p, send_p, recv_p, gid_p,
                          *, n_graphs, n_pad, b_pad, tile_e, shards,
                          tiles_per_shard, r_max):
    inv_rmax = 1.0 / r_max
    dn_gather = (((1,), (0,)), ((), ()))   # [3,Np]  @ [Np,TE] -> [3,TE]
    dn_scatter = (((1,), (1,)), ((), ()))  # [R,TE] x [C,TE]   -> [R,C]

    def kernel(pos_ref, enode_ref, batch_ref, send_ref, recv_ref, gid_ref,
               f_ref, g_ref):
        # ---- zero the per-shard resident accumulators on the first edge tile
        @pl.when(pl.program_id(1) == 0)
        def _init():
            f_ref[...] = jnp.zeros_like(f_ref)
            g_ref[...] = jnp.zeros_like(g_ref)

        # ---- node -> graph energy reduction, done exactly once (shard 0, tile 0)
        @pl.when((pl.program_id(0) == 0) & (pl.program_id(1) == 0))
        def _node_energy():
            b_iota = lax.broadcasted_iota(jnp.int32, (b_pad, 1), 0)
            b_oh = (b_iota == batch_ref[...]).astype(jnp.float32)    # [Bp, Np]
            e_graph = _exact_dot(enode_ref[...], b_oh, dn_scatter)   # [1, Bp]
            g_ref[...] += jnp.concatenate(
                [e_graph, jnp.zeros((9, b_pad), jnp.float32)], axis=0)

        send = send_ref[...]                                          # [1, TE]
        recv = recv_ref[...]
        gid = gid_ref[...]

        # ---- in-VMEM one-hot selection matrices (column iota, broadcast cmp)
        n_iota = lax.broadcasted_iota(jnp.int32, (n_pad, 1), 0)
        send_oh = (n_iota == send).astype(jnp.float32)                # [Np, TE]
        recv_oh = (n_iota == recv).astype(jnp.float32)                # [Np, TE]

        # ---- fused position gather: pos[:, send], pos[:, recv]  (MXU, exact)
        pos = pos_ref[...]                                            # [3, Np]
        pos_s = _exact_dot(pos, send_oh, dn_gather)                   # [3, TE]
        pos_r = _exact_dot(pos, recv_oh, dn_gather)                   # [3, TE]

        # ---- pair repulsion, polynomial cutoff (p=5), analytic per-edge force
        vec = pos_r - pos_s                                           # [3, TE]
        r2 = (vec[0:1] * vec[0:1] + vec[1:2] * vec[1:2]
              + vec[2:3] * vec[2:3]) + 1e-12                          # [1, TE]
        inv_r = lax.rsqrt(r2)                                         # EUP
        r = r2 * inv_r
        x = r * inv_rmax
        x2 = x * x
        x4 = x2 * x2
        env = 1.0 + x4 * x * (-21.0 + x * (35.0 - 15.0 * x))
        denv = x4 * (-105.0 + x * (210.0 - 105.0 * x)) * inv_rmax
        inside = x < 1.0
        env = jnp.where(inside, env, 0.0)
        denv = jnp.where(inside, denv, 0.0)

        expr = jnp.exp(-r)
        valid = (gid < n_graphs).astype(jnp.float32)                  # pad mask
        phi = 0.5 * expr * env * valid                                # [1, TE]
        dphi = 0.5 * expr * (denv - env)
        f_edge = (-(dphi * inv_r) * valid) * vec                      # [3, TE]

        # ---- per-edge virial rows outer(vec, f), row-major -> [9, TE]
        vir = [vec[i:i + 1] * f_edge[j:j + 1]
               for i in range(3) for j in range(3)]
        contrib = jnp.concatenate([phi] + vir, axis=0)                # [10, TE]

        # ---- edge -> graph scatter-add (energy row + 9 virial rows)
        b_iota = lax.broadcasted_iota(jnp.int32, (b_pad, 1), 0)
        g_oh = (b_iota == gid).astype(jnp.float32)                    # [Bp, TE]
        g_ref[...] += _exact_dot(contrib, g_oh, dn_scatter)           # [10, Bp]

        # ---- edge -> node force scatter-add (reuses the gather one-hots)
        f_ref[...] += (_exact_dot(f_edge, recv_oh, dn_scatter)
                       - _exact_dot(f_edge, send_oh, dn_scatter))     # [3, Np]

    edge_idx = lambda s, e: (0, s * tiles_per_shard + e)
    return pl.pallas_call(
        kernel,
        out_shape=(jax.ShapeDtypeStruct((shards, 3, n_pad), jnp.float32),
                   jax.ShapeDtypeStruct((shards, 10, b_pad), jnp.float32)),
        grid=(shards, tiles_per_shard),
        in_specs=[pl.BlockSpec((3, n_pad), lambda s, e: (0, 0)),
                  pl.BlockSpec((1, n_pad), lambda s, e: (0, 0)),
                  pl.BlockSpec((1, n_pad), lambda s, e: (0, 0)),
                  pl.BlockSpec((1, tile_e), edge_idx),
                  pl.BlockSpec((1, tile_e), edge_idx),
                  pl.BlockSpec((1, tile_e), edge_idx)],
        out_specs=(pl.BlockSpec((None, 3, n_pad), lambda s, e: (s, 0, 0)),
                   pl.BlockSpec((None, 10, b_pad), lambda s, e: (s, 0, 0))),
        compiler_params=pltpu.CompilerParams(
            dimension_semantics=("parallel", "arbitrary"),
            vmem_limit_bytes=48 * 1024 * 1024),
    )(pos_T, e_node_p, batch_p, send_p, recv_p, gid_p)


# -----------------------------------------------------------------------------
# Forward pass (equivalent of wrapper.forward -> dict with energy/forces/stress)
# -----------------------------------------------------------------------------
def mace_forward(params, data, r_max, compute_force, compute_stress,
                 tile_e=512, num_shards=2):
    onehot = data["node_attrs"].astype(jnp.float32)       # [N, Z] one-hot species
    pos = data["positions"].astype(jnp.float32)           # [N, 3]
    senders = data["edge_index"][0].astype(jnp.int32)     # [E]
    receivers = data["edge_index"][1].astype(jnp.int32)   # [E]
    batch = data["batch"].astype(jnp.int32)                # [N]
    volume = data["volume"].astype(jnp.float32)            # [B]
    n_graphs = int(volume.shape[0])
    n_nodes = int(pos.shape[0])
    n_edges = int(senders.shape[0])

    # ---- tiny per-species energy table, hoisted out of the kernel ----
    w = params["w_embed"]                                   # [Z, H]
    h = w * jax.nn.sigmoid(w)                               # SiLU
    e_sp = (jnp.sum(h * params["w_readout"].T, axis=1)
            + params["atomic_energies"][:, 0])              # [Z]
    species = jnp.argmax(onehot, axis=1)                    # [N]
    e_node = e_sp[species]                                  # [N] exact lookup

    # ---- padded, lane-dense, coordinate-major layouts ----
    n_pad = _round_up(max(n_nodes, 1), 128)
    b_pad = _round_up(max(n_graphs, 1), 128)
    e_tiles = -(-max(n_edges, 1) // tile_e)                 # >=1 so the grid is
    shards = max(1, min(num_shards, e_tiles))               # never empty
    tiles_per_shard = -(-e_tiles // shards)
    e_pad = shards * tiles_per_shard * tile_e

    pos_T = jnp.zeros((3, n_pad), jnp.float32).at[:, :n_nodes].set(pos.T)
    e_node_p = jnp.zeros((1, n_pad), jnp.float32).at[0, :n_nodes].set(e_node)
    batch_p = jnp.full((1, n_pad), n_graphs, jnp.int32).at[0, :n_nodes].set(batch)
    send_p = jnp.zeros((1, e_pad), jnp.int32).at[0, :n_edges].set(senders)
    recv_p = jnp.zeros((1, e_pad), jnp.int32).at[0, :n_edges].set(receivers)
    gid_p = jnp.full((1, e_pad), n_graphs, jnp.int32).at[0, :n_edges].set(
        batch[receivers])

    f_shards, g_shards = _fused_edge_node_call(
        pos_T, e_node_p, batch_p, send_p, recv_p, gid_p,
        n_graphs=n_graphs, n_pad=n_pad, b_pad=b_pad, tile_e=tile_e,
        shards=shards, tiles_per_shard=tiles_per_shard, r_max=r_max)

    f_nodes_T = jnp.sum(f_shards, axis=0)                   # [3, Np]
    gacc = jnp.sum(g_shards, axis=0)                         # [10, Bp]

    energy = gacc[0, :n_graphs]                              # [B]
    forces = f_nodes_T[:, :n_nodes].T if compute_force else None
    stress = None
    if compute_stress:
        vir = gacc[1:10, :n_graphs].T.reshape(n_graphs, 3, 3)
        stress = -vir / volume[:, None, None]                # [B, 3, 3]
    return {"energy": energy, "forces": forces, "stress": stress}


class MaceWrapperPallas:
    """Concrete Pallas-backed realization of equitrain's AbstractWrapper interface."""

    def __init__(self, params, atomic_numbers, r_max=3.0,
                 forces_weight=1.0, stress_weight=1.0):
        self.params = params
        self._atomic_numbers = atomic_numbers
        self._r_max = float(r_max)
        self.compute_force = forces_weight > 0.0
        self.compute_stress = stress_weight > 0.0

    def forward(self, data):
        return mace_forward(self.params, data, self._r_max,
                            self.compute_force, self.compute_stress)

    __call__ = forward

    @property
    def atomic_numbers(self):
        return self._atomic_numbers

    @property
    def atomic_energies(self):
        return self.params["atomic_energies"][:, 0]

    @property
    def r_max(self):
        return self._r_max

    @r_max.setter
    def r_max(self, value):
        self._r_max = float(value)


# -----------------------------------------------------------------------------
# Pure-JAX reference (same math, original formulation) for correctness check
# -----------------------------------------------------------------------------
def reference_forward(params, data, r_max):
    onehot = data["node_attrs"]
    pos = data["positions"]
    senders = data["edge_index"][0]
    receivers = data["edge_index"][1]
    batch = data["batch"]
    volume = data["volume"]
    n_graphs = volume.shape[0]
    n_nodes = pos.shape[0]

    h = onehot @ params["w_embed"]
    h = h * jax.nn.sigmoid(h)
    e_node = (h @ params["w_readout"] + onehot @ params["atomic_energies"])[:, 0]

    vec = pos[receivers] - pos[senders]
    r = jnp.sqrt(jnp.sum(vec * vec, axis=-1) + 1e-12)
    x = r / r_max
    env = 1.0 - 21.0 * x**5 + 35.0 * x**6 - 15.0 * x**7
    denv = (-105.0 * x**4 + 210.0 * x**5 - 105.0 * x**6) / r_max
    inside = x < 1.0
    env = jnp.where(inside, env, 0.0)
    denv = jnp.where(inside, denv, 0.0)
    expr = jnp.exp(-r)
    phi = 0.5 * expr * env
    dphi = 0.5 * expr * (denv - env)
    f_edge = -(dphi / r)[:, None] * vec

    energy = (jnp.zeros(n_graphs).at[batch].add(e_node)
              + jnp.zeros(n_graphs).at[batch[receivers]].add(phi))
    forces = (jnp.zeros((n_nodes, 3)).at[receivers].add(f_edge)
              .at[senders].add(-f_edge))
    vir = jnp.zeros((n_graphs, 3, 3)).at[batch[receivers]].add(
        vec[:, :, None] * f_edge[:, None, :])
    stress = -vir / volume[:, None, None]
    return energy, forces, stress


# -----------------------------------------------------------------------------
if __name__ == "__main__":
    key = jax.random.PRNGKey(0)
    B = 2                 # graphs
    NODES_PER_GRAPH = 8
    N = B * NODES_PER_GRAPH
    E_PER_GRAPH = 768     # enough edges to exercise multi-tile + multi-shard path
    E = B * E_PER_GRAPH
    Z = 4                 # chemical species
    H = 32                # hidden width

    k1, k2, k3, k4, k5, k6, k7 = jax.random.split(key, 7)

    params = {
        "w_embed": 0.1 * jax.random.normal(k1, (Z, H), dtype=jnp.float32),
        "w_readout": 0.1 * jax.random.normal(k2, (H, 1), dtype=jnp.float32),
        "atomic_energies": jax.random.normal(k3, (Z, 1), dtype=jnp.float32),
    }

    species = jax.random.randint(k4, (N,), 0, Z)
    node_attrs = jax.nn.one_hot(species, Z, dtype=jnp.float32)           # [N, Z]
    positions = 1.5 * jax.random.normal(k5, (N, 3), dtype=jnp.float32)   # [N, 3]

    # random directed edges confined within each graph, no self-loops
    graph_ids = jnp.repeat(jnp.arange(B), E_PER_GRAPH)                   # [E]
    local_s = jax.random.randint(k6, (E,), 0, NODES_PER_GRAPH)
    offs = jax.random.randint(k7, (E,), 1, NODES_PER_GRAPH)
    local_r = (local_s + offs) % NODES_PER_GRAPH
    senders = graph_ids * NODES_PER_GRAPH + local_s
    receivers = graph_ids * NODES_PER_GRAPH + local_r
    edge_index = jnp.stack([senders, receivers], axis=0)                 # [2, E]

    batch = jnp.repeat(jnp.arange(B), NODES_PER_GRAPH)                   # [N]
    volume = jnp.array([10.0, 12.0], dtype=jnp.float32)                  # [B]

    data = {
        "node_attrs": node_attrs,
        "positions": positions,
        "edge_index": edge_index,
        "batch": batch,
        "volume": volume,
    }

    wrapper = MaceWrapperPallas(params=params,
                                atomic_numbers=jnp.arange(1, Z + 1),
                                r_max=3.0,
                                forces_weight=1.0, stress_weight=1.0)
    y_pred = wrapper(data)
    y_pred = jax.block_until_ready(y_pred)

    assert y_pred["energy"].shape == (B,)
    assert y_pred["forces"].shape == (N, 3)
    assert y_pred["stress"].shape == (B, 3, 3)
    assert all(bool(jnp.all(jnp.isfinite(v))) for v in
               (y_pred["energy"], y_pred["forces"], y_pred["stress"]))

    e_ref, f_ref, s_ref = reference_forward(params, data, wrapper.r_max)
    assert bool(jnp.allclose(y_pred["energy"], e_ref, rtol=2e-2, atol=2e-3))
    assert bool(jnp.allclose(y_pred["forces"], f_ref, rtol=2e-2, atol=2e-3))
    assert bool(jnp.allclose(y_pred["stress"], s_ref, rtol=2e-2, atol=2e-3))

    print("KERNEL_OK")
</pallas_src>

<mosaic_0001>
module attributes {stable_mosaic.version = 11 : i64} {
  func.func @kernel(%arg0: i32, %arg1: i32, %arg2: memref<3x128xf32, #tpu.memory_space<vmem>>, %arg3: memref<1x128xf32, #tpu.memory_space<vmem>>, %arg4: memref<1x128xi32, #tpu.memory_space<vmem>>, %arg5: memref<1x512xi32, #tpu.memory_space<vmem>>, %arg6: memref<1x512xi32, #tpu.memory_space<vmem>>, %arg7: memref<1x512xi32, #tpu.memory_space<vmem>>, %arg8: memref<1x3x128xf32, #tpu.memory_space<vmem>>, %arg9: memref<1x10x128xf32, #tpu.memory_space<vmem>>) attributes {dimension_semantics = [#tpu.dimension_semantics<parallel>, #tpu.dimension_semantics<arbitrary>], iteration_bounds = array<i64: 2, 2>, scalar_prefetch = 0 : i64, scratch_operands = 0 : i64, tpu.core_type = #tpu.core_type<tc>, window_params = [{pipeline_mode = #tpu.pipeline_mode<synchronous>, transform_indices = @transform_0, window_bounds = array<i64: 3, 128>}, {pipeline_mode = #tpu.pipeline_mode<synchronous>, transform_indices = @transform_1, window_bounds = array<i64: 1, 128>}, {pipeline_mode = #tpu.pipeline_mode<synchronous>, transform_indices = @transform_2, window_bounds = array<i64: 1, 128>}, {transform_indices = @transform_3, window_bounds = array<i64: 1, 512>}, {transform_indices = @transform_4, window_bounds = array<i64: 1, 512>}, {transform_indices = @transform_5, window_bounds = array<i64: 1, 512>}, {transform_indices = @transform_6, window_bounds = array<i64: 1, 3, 128>}, {transform_indices = @transform_7, window_bounds = array<i64: 1, 10, 128>}]} {
    %c0_i32 = arith.constant 0 : i32
    %0 = arith.cmpi eq, %arg1, %c0_i32 : i32
    %1 = arith.extui %0 : i1 to i32
    %c0_i32_0 = arith.constant 0 : i32
    %2 = arith.cmpi ne, %1, %c0_i32_0 : i32
    scf.if %2 {
      %cst_49 = arith.constant 0.000000e+00 : f32
      %168 = vector.broadcast %cst_49 : f32 to vector<3x128xf32>
      %c0_50 = arith.constant 0 : index
      %c0_51 = arith.constant 0 : index
      %c0_52 = arith.constant 0 : index
      %169 = vector.load %arg8[%c0_50, %c0_51, %c0_52] : memref<1x3x128xf32, #tpu.memory_space<vmem>>, vector<1x3x128xf32>
      %170 = vector.shape_cast %169 : vector<1x3x128xf32> to vector<3x128xf32>
      %171 = vector.shape_cast %168 : vector<3x128xf32> to vector<1x3x128xf32>
      tpu.vector_store %arg8[%c0_50, %c0_51, %c0_52], %171 {strides = array<i32>} : memref<1x3x128xf32, #tpu.memory_space<vmem>>, vector<1x3x128xf32>,
      %cst_53 = arith.constant 0.000000e+00 : f32
      %172 = vector.broadcast %cst_53 : f32 to vector<10x128xf32>
      %c0_54 = arith.constant 0 : index
      %c0_55 = arith.constant 0 : index
      %c0_56 = arith.constant 0 : index
      %173 = vector.load %arg9[%c0_54, %c0_55, %c0_56] : memref<1x10x128xf32, #tpu.memory_space<vmem>>, vector<1x10x128xf32>
      %174 = vector.shape_cast %173 : vector<1x10x128xf32> to vector<10x128xf32>
      %175 = vector.shape_cast %172 : vector<10x128xf32> to vector<1x10x128xf32>
      tpu.vector_store %arg9[%c0_54, %c0_55, %c0_56], %175 {strides = array<i32>} : memref<1x10x128xf32, #tpu.memory_space<vmem>>, vector<1x10x128xf32>,
    } else {
    }
    %c0_i32_1 = arith.constant 0 : i32
    %3 = arith.cmpi eq, %arg0, %c0_i32_1 : i32
    %c0_i32_2 = arith.constant 0 : i32
    %4 = arith.cmpi eq, %arg1, %c0_i32_2 : i32
    %5 = arith.andi %3, %4 : i1
    %6 = arith.extui %5 : i1 to i32
    %c0_i32_3 = arith.constant 0 : i32
    %7 = arith.cmpi ne, %6, %c0_i32_3 : i32
    scf.if %7 {
      %168 = tpu.iota {dimensions = array<i32: 0>} : vector<128x1xi32>
      %c0_49 = arith.constant 0 : index
      %c0_50 = arith.constant 0 : index
      %169 = vector.load %arg4[%c0_49, %c0_50] : memref<1x128xi32, #tpu.memory_space<vmem>>, vector<1x128xi32>
      %170 = vector.broadcast %168 : vector<128x1xi32> to vector<128x128xi32>
      %171 = vector.broadcast %169 : vector<1x128xi32> to vector<128x128xi32>
      %172 = arith.cmpi eq, %170, %171 : vector<128x128xi32>
      %173 = arith.extui %172 : vector<128x128xi1> to vector<128x128xi32>
      %174 = arith.sitofp %173 : vector<128x128xi32> to vector<128x128xf32>
      %c0_51 = arith.constant 0 : index
      %c0_52 = arith.constant 0 : index
      %175 = vector.load %arg3[%c0_51, %c0_52] : memref<1x128xf32, #tpu.memory_space<vmem>>, vector<1x128xf32>
      %176 = arith.truncf %175 : vector<1x128xf32> to vector<1x128xbf16>
      %177 = arith.extf %176 : vector<1x128xbf16> to vector<1x128xf32>
      %178 = arith.subf %175, %177 : vector<1x128xf32>
      %cst_53 = arith.constant dense<0.000000e+00> : vector<1x128xf32>
      %179 = tpu.matmul %177, %174, %cst_53 {dimension_numbers = #tpu.dot_dimension_numbers<[1], [1], [0], [0], [0, 0, 1, 0], [], []>} : vector<1x128xf32>, vector<128x128xf32>, vector<1x128xf32> -> vector<1x128xf32>
      %cst_54 = arith.constant dense<0.000000e+00> : vector<1x128xf32>
      %180 = tpu.matmul %178, %174, %cst_54 {dimension_numbers = #tpu.dot_dimension_numbers<[1], [1], [0], [0], [0, 0, 1, 0], [], []>} : vector<1x128xf32>, vector<128x128xf32>, vector<1x128xf32> -> vector<1x128xf32>
      %181 = arith.addf %179, %180 : vector<1x128xf32>
      %c0_55 = arith.constant 0 : index
      %c0_56 = arith.constant 0 : index
      %c0_57 = arith.constant 0 : index
      %182 = vector.load %arg9[%c0_55, %c0_56, %c0_57] : memref<1x10x128xf32, #tpu.memory_space<vmem>>, vector<1x10x128xf32>
      %183 = vector.shape_cast %182 : vector<1x10x128xf32> to vector<10x128xf32>
      %cst_58 = arith.constant 0.000000e+00 : f32
      %184 = vector.broadcast %cst_58 : f32 to vector<9x128xf32>
      %185 = tpu.concatenate %181, %184 in 0 : vector<1x128xf32>, vector<9x128xf32> -> vector<10x128xf32>
      %186 = arith.addf %183, %185 : vector<10x128xf32>
      %c0_59 = arith.constant 0 : index
      %c0_60 = arith.constant 0 : index
      %c0_61 = arith.constant 0 : index
      %187 = vector.load %arg9[%c0_59, %c0_60, %c0_61] : memref<1x10x128xf32, #tpu.memory_space<vmem>>, vector<1x10x128xf32>
      %188 = vector.shape_cast %187 : vector<1x10x128xf32> to vector<10x128xf32>
      %189 = vector.shape_cast %186 : vector<10x128xf32> to vector<1x10x128xf32>
      tpu.vector_store %arg9[%c0_59, %c0_60, %c0_61], %189 {strides = array<i32>} : memref<1x10x128xf32, #tpu.memory_space<vmem>>, vector<1x10x128xf32>,
    } else {
    }
    %c0 = arith.constant 0 : index
    %c0_4 = arith.constant 0 : index
    %8 = vector.load %arg5[%c0, %c0_4] : memref<1x512xi32, #tpu.memory_space<vmem>>, vector<1x512xi32>
    %c0_5 = arith.constant 0 : index
    %c0_6 = arith.constant 0 : index
    %9 = vector.load %arg6[%c0_5, %c0_6] : memref<1x512xi32, #tpu.memory_space<vmem>>, vector<1x512xi32>
    %c0_7 = arith.constant 0 : index
    %c0_8 = arith.constant 0 : index
    %10 = vector.load %arg7[%c0_7, %c0_8] : memref<1x512xi32, #tpu.memory_space<vmem>>, vector<1x512xi32>
    %11 = tpu.iota {dimensions = array<i32: 0>} : vector<128x1xi32>
    %12 = vector.broadcast %11 : vector<128x1xi32> to vector<128x512xi32>
    %13 = vector.broadcast %8 : vector<1x512xi32> to vector<128x512xi32>
    %14 = arith.cmpi eq, %12, %13 : vector<128x512xi32>
    %15 = arith.extui %14 : vector<128x512xi1> to vector<128x512xi32>
    %16 = arith.sitofp %15 : vector<128x512xi32> to vector<128x512xf32>
    %17 = vector.broadcast %11 : vector<128x1xi32> to vector<128x512xi32>
    %18 = vector.broadcast %9 : vector<1x512xi32> to vector<128x512xi32>
    %19 = arith.cmpi eq, %17, %18 : vector<128x512xi32>
    %20 = arith.extui %19 : vector<128x512xi1> to vector<128x512xi32>
    %21 = arith.sitofp %20 : vector<128x512xi32> to vector<128x512xf32>
    %c0_9 = arith.constant 0 : index
    %c0_10 = arith.constant 0 : index
    %22 = vector.load %arg2[%c0_9, %c0_10] : memref<3x128xf32, #tpu.memory_space<vmem>>, vector<3x128xf32>
    %23 = arith.truncf %22 : vector<3x128xf32> to vector<3x128xbf16>
    %24 = arith.extf %23 : vector<3x128xbf16> to vector<3x128xf32>
    %25 = arith.subf %22, %24 : vector<3x128xf32>
    %cst = arith.constant dense<0.000000e+00> : vector<3x512xf32>
    %26 = tpu.matmul %24, %16, %cst {dimension_numbers = #tpu.dot_dimension_numbers<[1], [0], [0], [1], [0, 0, 1, 1], [], []>} : vector<3x128xf32>, vector<128x512xf32>, vector<3x512xf32> -> vector<3x512xf32>
    %cst_11 = arith.constant dense<0.000000e+00> : vector<3x512xf32>
    %27 = tpu.matmul %25, %16, %cst_11 {dimension_numbers = #tpu.dot_dimension_numbers<[1], [0], [0], [1], [0, 0, 1, 1], [], []>} : vector<3x128xf32>, vector<128x512xf32>, vector<3x512xf32> -> vector<3x512xf32>
    %28 = arith.addf %26, %27 : vector<3x512xf32>
    %29 = arith.truncf %22 : vector<3x128xf32> to vector<3x128xbf16>
    %30 = arith.extf %29 : vector<3x128xbf16> to vector<3x128xf32>
    %31 = arith.subf %22, %30 : vector<3x128xf32>
    %cst_12 = arith.constant dense<0.000000e+00> : vector<3x512xf32>
    %32 = tpu.matmul %30, %21, %cst_12 {dimension_numbers = #tpu.dot_dimension_numbers<[1], [0], [0], [1], [0, 0, 1, 1], [], []>} : vector<3x128xf32>, vector<128x512xf32>, vector<3x512xf32> -> vector<3x512xf32>
    %cst_13 = arith.constant dense<0.000000e+00> : vector<3x512xf32>
    %33 = tpu.matmul %31, %21, %cst_13 {dimension_numbers = #tpu.dot_dimension_numbers<[1], [0], [0], [1], [0, 0, 1, 1], [], []>} : vector<3x128xf32>, vector<128x512xf32>, vector<3x512xf32> -> vector<3x512xf32>
    %34 = arith.addf %32, %33 : vector<3x512xf32>
    %35 = arith.subf %34, %28 : vector<3x512xf32>
    %36 = vector.extract_strided_slice %35 {offsets = [0, 0], sizes = [1, 512], strides = [1, 1]} : vector<3x512xf32> to vector<1x512xf32>
    %37 = vector.extract_strided_slice %35 {offsets = [0, 0], sizes = [1, 512], strides = [1, 1]} : vector<3x512xf32> to vector<1x512xf32>
    %38 = arith.mulf %36, %37 : vector<1x512xf32>
    %39 = vector.extract_strided_slice %35 {offsets = [1, 0], sizes = [1, 512], strides = [1, 1]} : vector<3x512xf32> to vector<1x512xf32>
    %40 = vector.extract_strided_slice %35 {offsets = [1, 0], sizes = [1, 512], strides = [1, 1]} : vector<3x512xf32> to vector<1x512xf32>
    %41 = arith.mulf %39, %40 : vector<1x512xf32>
    %42 = arith.addf %38, %41 : vector<1x512xf32>
    %43 = vector.extract_strided_slice %35 {offsets = [2, 0], sizes = [1, 512], strides = [1, 1]} : vector<3x512xf32> to vector<1x512xf32>
    %44 = vector.extract_strided_slice %35 {offsets = [2, 0], sizes = [1, 512], strides = [1, 1]} : vector<3x512xf32> to vector<1x512xf32>
    %45 = arith.mulf %43, %44 : vector<1x512xf32>
    %46 = arith.addf %42, %45 : vector<1x512xf32>
    %cst_14 = arith.constant 9.99999996E-13 : f32
    %47 = vector.broadcast %cst_14 : f32 to vector<1x512xf32>
    %48 = arith.addf %46, %47 : vector<1x512xf32>
    %49 = math.rsqrt %48 : vector<1x512xf32>
    %50 = arith.mulf %48, %49 : vector<1x512xf32>
    %cst_15 = arith.constant 0.333333343 : f32
    %51 = vector.broadcast %cst_15 : f32 to vector<1x512xf32>
    %52 = arith.mulf %50, %51 : vector<1x512xf32>
    %53 = arith.mulf %52, %52 : vector<1x512xf32>
    %54 = arith.mulf %53, %53 : vector<1x512xf32>
    %55 = arith.mulf %54, %52 : vector<1x512xf32>
    %cst_16 = arith.constant 1.500000e+01 : f32
    %56 = vector.broadcast %cst_16 : f32 to vector<1x512xf32>
    %57 = arith.mulf %56, %52 : vector<1x512xf32>
    %cst_17 = arith.constant 3.500000e+01 : f32
    %58 = vector.broadcast %cst_17 : f32 to vector<1x512xf32>
    %59 = arith.subf %58, %57 : vector<1x512xf32>
    %60 = arith.mulf %52, %59 : vector<1x512xf32>
    %cst_18 = arith.constant -2.100000e+01 : f32
    %61 = vector.broadcast %cst_18 : f32 to vector<1x512xf32>
    %62 = arith.addf %61, %60 : vector<1x512xf32>
    %63 = arith.mulf %55, %62 : vector<1x512xf32>
    %cst_19 = arith.constant 1.000000e+00 : f32
    %64 = vector.broadcast %cst_19 : f32 to vector<1x512xf32>
    %65 = arith.addf %64, %63 : vector<1x512xf32>
    %cst_20 = arith.constant 1.050000e+02 : f32
    %66 = vector.broadcast %cst_20 : f32 to vector<1x512xf32>
    %67 = arith.mulf %66, %52 : vector<1x512xf32>
    %cst_21 = arith.constant 2.100000e+02 : f32
    %68 = vector.broadcast %cst_21 : f32 to vector<1x512xf32>
    %69 = arith.subf %68, %67 : vector<1x512xf32>
    %70 = arith.mulf %52, %69 : vector<1x512xf32>
    %cst_22 = arith.constant -1.050000e+02 : f32
    %71 = vector.broadcast %cst_22 : f32 to vector<1x512xf32>
    %72 = arith.addf %71, %70 : vector<1x512xf32>
    %73 = arith.mulf %54, %72 : vector<1x512xf32>
    %cst_23 = arith.constant 0.333333343 : f32
    %74 = vector.broadcast %cst_23 : f32 to vector<1x512xf32>
    %75 = arith.mulf %73, %74 : vector<1x512xf32>
    %cst_24 = arith.constant 1.000000e+00 : f32
    %76 = vector.broadcast %cst_24 : f32 to vector<1x512xf32>
    %77 = arith.cmpf olt, %52, %76 : vector<1x512xf32>
    %cst_25 = arith.constant 0.000000e+00 : f32
    %78 = vector.broadcast %cst_25 : f32 to vector<1x512xf32>
    %79 = arith.select %77, %65, %78 : vector<1x512xi1>, vector<1x512xf32>
    %cst_26 = arith.constant 0.000000e+00 : f32
    %80 = vector.broadcast %cst_26 : f32 to vector<1x512xf32>
    %81 = arith.select %77, %75, %80 : vector<1x512xi1>, vector<1x512xf32>
    %cst_27 = arith.constant 0.000000e+00 : f32
    %82 = vector.broadcast %cst_27 : f32 to vector<1x512xf32>
    %83 = arith.subf %82, %50 : vector<1x512xf32>
    %84 = math.exp %83 : vector<1x512xf32>
    %c2_i32 = arith.constant 2 : i32
    %85 = vector.broadcast %c2_i32 : i32 to vector<1x512xi32>
    %86 = arith.cmpi slt, %10, %85 : vector<1x512xi32>
    %87 = arith.extui %86 : vector<1x512xi1> to vector<1x512xi32>
    %88 = arith.sitofp %87 : vector<1x512xi32> to vector<1x512xf32>
    %cst_28 = arith.constant 5.000000e-01 : f32
    %89 = vector.broadcast %cst_28 : f32 to vector<1x512xf32>
    %90 = arith.mulf %89, %84 : vector<1x512xf32>
    %91 = arith.mulf %90, %79 : vector<1x512xf32>
    %92 = arith.mulf %91, %88 : vector<1x512xf32>
    %cst_29 = arith.constant 5.000000e-01 : f32
    %93 = vector.broadcast %cst_29 : f32 to vector<1x512xf32>
    %94 = arith.mulf %93, %84 : vector<1x512xf32>
    %95 = arith.subf %81, %79 : vector<1x512xf32>
    %96 = arith.mulf %94, %95 : vector<1x512xf32>
    %97 = arith.mulf %96, %49 : vector<1x512xf32>
    %cst_30 = arith.constant 0.000000e+00 : f32
    %98 = vector.broadcast %cst_30 : f32 to vector<1x512xf32>
    %99 = arith.subf %98, %97 : vector<1x512xf32>
    %100 = arith.mulf %99, %88 : vector<1x512xf32>
    %101 = vector.broadcast %100 : vector<1x512xf32> to vector<3x512xf32>
    %102 = arith.mulf %101, %35 : vector<3x512xf32>
    %103 = vector.extract_strided_slice %35 {offsets = [0, 0], sizes = [1, 512], strides = [1, 1]} : vector<3x512xf32> to vector<1x512xf32>
    %104 = vector.extract_strided_slice %102 {offsets = [0, 0], sizes = [1, 512], strides = [1, 1]} : vector<3x512xf32> to vector<1x512xf32>
    %105 = arith.mulf %103, %104 : vector<1x512xf32>
    %106 = vector.extract_strided_slice %35 {offsets = [0, 0], sizes = [1, 512], strides = [1, 1]} : vector<3x512xf32> to vector<1x512xf32>
    %107 = vector.extract_strided_slice %102 {offsets = [1, 0], sizes = [1, 512], strides = [1, 1]} : vector<3x512xf32> to vector<1x512xf32>
    %108 = arith.mulf %106, %107 : vector<1x512xf32>
    %109 = vector.extract_strided_slice %35 {offsets = [0, 0], sizes = [1, 512], strides = [1, 1]} : vector<3x512xf32> to vector<1x512xf32>
    %110 = vector.extract_strided_slice %102 {offsets = [2, 0], sizes = [1, 512], strides = [1, 1]} : vector<3x512xf32> to vector<1x512xf32>
    %111 = arith.mulf %109, %110 : vector<1x512xf32>
    %112 = vector.extract_strided_slice %35 {offsets = [1, 0], sizes = [1, 512], strides = [1, 1]} : vector<3x512xf32> to vector<1x512xf32>
    %113 = vector.extract_strided_slice %102 {offsets = [0, 0], sizes = [1, 512], strides = [1, 1]} : vector<3x512xf32> to vector<1x512xf32>
    %114 = arith.mulf %112, %113 : vector<1x512xf32>
    %115 = vector.extract_strided_slice %35 {offsets = [1, 0], sizes = [1, 512], strides = [1, 1]} : vector<3x512xf32> to vector<1x512xf32>
    %116 = vector.extract_strided_slice %102 {offsets = [1, 0], sizes = [1, 512], strides = [1, 1]} : vector<3x512xf32> to vector<1x512xf32>
    %117 = arith.mulf %115, %116 : vector<1x512xf32>
    %118 = vector.extract_strided_slice %35 {offsets = [1, 0], sizes = [1, 512], strides = [1, 1]} : vector<3x512xf32> to vector<1x512xf32>
    %119 = vector.extract_strided_slice %102 {offsets = [2, 0], sizes = [1, 512], strides = [1, 1]} : vector<3x512xf32> to vector<1x512xf32>
    %120 = arith.mulf %118, %119 : vector<1x512xf32>
    %121 = vector.extract_strided_slice %35 {offsets = [2, 0], sizes = [1, 512], strides = [1, 1]} : vector<3x512xf32> to vector<1x512xf32>
    %122 = vector.extract_strided_slice %102 {offsets = [0, 0], sizes = [1, 512], strides = [1, 1]} : vector<3x512xf32> to vector<1x512xf32>
    %123 = arith.mulf %121, %122 : vector<1x512xf32>
    %124 = vector.extract_strided_slice %35 {offsets = [2, 0], sizes = [1, 512], strides = [1, 1]} : vector<3x512xf32> to vector<1x512xf32>
    %125 = vector.extract_strided_slice %102 {offsets = [1, 0], sizes = [1, 512], strides = [1, 1]} : vector<3x512xf32> to vector<1x512xf32>
    %126 = arith.mulf %124, %125 : vector<1x512xf32>
    %127 = vector.extract_strided_slice %35 {offsets = [2, 0], sizes = [1, 512], strides = [1, 1]} : vector<3x512xf32> to vector<1x512xf32>
    %128 = vector.extract_strided_slice %102 {offsets = [2, 0], sizes = [1, 512], strides = [1, 1]} : vector<3x512xf32> to vector<1x512xf32>
    %129 = arith.mulf %127, %128 : vector<1x512xf32>
    %130 = tpu.concatenate %92, %105, %108, %111, %114, %117, %120, %123, %126, %129 in 0 : vector<1x512xf32>, vector<1x512xf32>, vector<1x512xf32>, vector<1x512xf32>, vector<1x512xf32>, vector<1x512xf32>, vector<1x512xf32>, vector<1x512xf32>, vector<1x512xf32>, vector<1x512xf32> -> vector<10x512xf32>
    %131 = tpu.iota {dimensions = array<i32: 0>} : vector<128x1xi32>
    %132 = vector.broadcast %131 : vector<128x1xi32> to vector<128x512xi32>
    %133 = vector.broadcast %10 : vector<1x512xi32> to vector<128x512xi32>
    %134 = arith.cmpi eq, %132, %133 : vector<128x512xi32>
    %135 = arith.extui %134 : vector<128x512xi1> to vector<128x512xi32>
    %136 = arith.sitofp %135 : vector<128x512xi32> to vector<128x512xf32>
    %c0_31 = arith.constant 0 : index
    %c0_32 = arith.constant 0 : index
    %c0_33 = arith.constant 0 : index
    %137 = vector.load %arg9[%c0_31, %c0_32, %c0_33] : memref<1x10x128xf32, #tpu.memory_space<vmem>>, vector<1x10x128xf32>
    %138 = vector.shape_cast %137 : vector<1x10x128xf32> to vector<10x128xf32>
    %139 = arith.truncf %130 : vector<10x512xf32> to vector<10x512xbf16>
    %140 = arith.extf %139 : vector<10x512xbf16> to vector<10x512xf32>
    %141 = arith.subf %130, %140 : vector<10x512xf32>
    %cst_34 = arith.constant dense<0.000000e+00> : vector<10x128xf32>
    %142 = tpu.matmul %140, %136, %cst_34 {dimension_numbers = #tpu.dot_dimension_numbers<[1], [1], [0], [0], [0, 0, 1, 0], [], []>} : vector<10x512xf32>, vector<128x512xf32>, vector<10x128xf32> -> vector<10x128xf32>
    %cst_35 = arith.constant dense<0.000000e+00> : vector<10x128xf32>
    %143 = tpu.matmul %141, %136, %cst_35 {dimension_numbers = #tpu.dot_dimension_numbers<[1], [1], [0], [0], [0, 0, 1, 0], [], []>} : vector<10x512xf32>, vector<128x512xf32>, vector<10x128xf32> -> vector<10x128xf32>
    %144 = arith.addf %142, %143 : vector<10x128xf32>
    %145 = arith.addf %138, %144 : vector<10x128xf32>
    %c0_36 = arith.constant 0 : index
    %c0_37 = arith.constant 0 : index
    %c0_38 = arith.constant 0 : index
    %146 = vector.load %arg9[%c0_36, %c0_37, %c0_38] : memref<1x10x128xf32, #tpu.memory_space<vmem>>, vector<1x10x128xf32>
    %147 = vector.shape_cast %146 : vector<1x10x128xf32> to vector<10x128xf32>
    %148 = vector.shape_cast %145 : vector<10x128xf32> to vector<1x10x128xf32>
    tpu.vector_store %arg9[%c0_36, %c0_37, %c0_38], %148 {strides = array<i32>} : memref<1x10x128xf32, #tpu.memory_space<vmem>>, vector<1x10x128xf32>,
    %c0_39 = arith.constant 0 : index
    %c0_40 = arith.constant 0 : index
    %c0_41 = arith.constant 0 : index
    %149 = vector.load %arg8[%c0_39, %c0_40, %c0_41] : memref<1x3x128xf32, #tpu.memory_space<vmem>>, vector<1x3x128xf32>
    %150 = vector.shape_cast %149 : vector<1x3x128xf32> to vector<3x128xf32>
    %151 = arith.truncf %102 : vector<3x512xf32> to vector<3x512xbf16>
    %152 = arith.extf %151 : vector<3x512xbf16> to vector<3x512xf32>
    %153 = arith.subf %102, %152 : vector<3x512xf32>
    %cst_42 = arith.constant dense<0.000000e+00> : vector<3x128xf32>
    %154 = tpu.matmul %152, %21, %cst_42 {dimension_numbers = #tpu.dot_dimension_numbers<[1], [1], [0], [0], [0, 0, 1, 0], [], []>} : vector<3x512xf32>, vector<128x512xf32>, vector<3x128xf32> -> vector<3x128xf32>
    %cst_43 = arith.constant dense<0.000000e+00> : vector<3x128xf32>
    %155 = tpu.matmul %153, %21, %cst_43 {dimension_numbers = #tpu.dot_dimension_numbers<[1], [1], [0], [0], [0, 0, 1, 0], [], []>} : vector<3x512xf32>, vector<128x512xf32>, vector<3x128xf32> -> vector<3x128xf32>
    %156 = arith.addf %154, %155 : vector<3x128xf32>
    %157 = arith.truncf %102 : vector<3x512xf32> to vector<3x512xbf16>
    %158 = arith.extf %157 : vector<3x512xbf16> to vector<3x512xf32>
    %159 = arith.subf %102, %158 : vector<3x512xf32>
    %cst_44 = arith.constant dense<0.000000e+00> : vector<3x128xf32>
    %160 = tpu.matmul %158, %16, %cst_44 {dimension_numbers = #tpu.dot_dimension_numbers<[1], [1], [0], [0], [0, 0, 1, 0], [], []>} : vector<3x512xf32>, vector<128x512xf32>, vector<3x128xf32> -> vector<3x128xf32>
    %cst_45 = arith.constant dense<0.000000e+00> : vector<3x128xf32>
    %161 = tpu.matmul %159, %16, %cst_45 {dimension_numbers = #tpu.dot_dimension_numbers<[1], [1], [0], [0], [0, 0, 1, 0], [], []>} : vector<3x512xf32>, vector<128x512xf32>, vector<3x128xf32> -> vector<3x128xf32>
    %162 = arith.addf %160, %161 : vector<3x128xf32>
    %163 = arith.subf %156, %162 : vector<3x128xf32>
    %164 = arith.addf %150, %163 : vector<3x128xf32>
    %c0_46 = arith.constant 0 : index
    %c0_47 = arith.constant 0 : index
    %c0_48 = arith.constant 0 : index
    %165 = vector.load %arg8[%c0_46, %c0_47, %c0_48] : memref<1x3x128xf32, #tpu.memory_space<vmem>>, vector<1x3x128xf32>
    %166 = vector.shape_cast %165 : vector<1x3x128xf32> to vector<3x128xf32>
    %167 = vector.shape_cast %164 : vector<3x128xf32> to vector<1x3x128xf32>
    tpu.vector_store %arg8[%c0_46, %c0_47, %c0_48], %167 {strides = array<i32>} : memref<1x3x128xf32, #tpu.memory_space<vmem>>, vector<1x3x128xf32>,
    return
  }
  func.func @transform_0(%arg0: i32, %arg1: i32) -> (i32, i32) {
    %c0_i32 = arith.constant 0 : i32
    %c0_i32_0 = arith.constant 0 : i32
    %c0_i32_1 = arith.constant 0 : i32
    return %c0_i32, %c0_i32_0 : i32, i32
  }
  func.func @transform_1(%arg0: i32, %arg1: i32) -> (i32, i32) {
    %c0_i32 = arith.constant 0 : i32
    %c0_i32_0 = arith.constant 0 : i32
    %c0_i32_1 = arith.constant 0 : i32
    return %c0_i32, %c0_i32_0 : i32, i32
  }
  func.func @transform_2(%arg0: i32, %arg1: i32) -> (i32, i32) {
    %c0_i32 = arith.constant 0 : i32
    %c0_i32_0 = arith.constant 0 : i32
    %c0_i32_1 = arith.constant 0 : i32
    return %c0_i32, %c0_i32_0 : i32, i32
  }
  func.func @transform_3(%arg0: i32, %arg1: i32) -> (i32, i32) {
    %c2_i32 = arith.constant 2 : i32
    %0 = arith.muli %arg0, %c2_i32 : i32
    %1 = arith.addi %0, %arg1 : i32
    %c0_i32 = arith.constant 0 : i32
    %c0_i32_0 = arith.constant 0 : i32
    return %c0_i32, %1 : i32, i32
  }
  func.func @transform_4(%arg0: i32, %arg1: i32) -> (i32, i32) {
    %c2_i32 = arith.constant 2 : i32
    %0 = arith.muli %arg0, %c2_i32 : i32
    %1 = arith.addi %0, %arg1 : i32
    %c0_i32 = arith.constant 0 : i32
    %c0_i32_0 = arith.constant 0 : i32
    return %c0_i32, %1 : i32, i32
  }
  func.func @transform_5(%arg0: i32, %arg1: i32) -> (i32, i32) {
    %c2_i32 = arith.constant 2 : i32
    %0 = arith.muli %arg0, %c2_i32 : i32
    %1 = arith.addi %0, %arg1 : i32
    %c0_i32 = arith.constant 0 : i32
    %c0_i32_0 = arith.constant 0 : i32
    return %c0_i32, %1 : i32, i32
  }
  func.func @transform_6(%arg0: i32, %arg1: i32) -> (i32, i32, i32) {
    %c0_i32 = arith.constant 0 : i32
    %c0_i32_0 = arith.constant 0 : i32
    %c0_i32_1 = arith.constant 0 : i32
    return %arg0, %c0_i32, %c0_i32_0 : i32, i32, i32
  }
  func.func @transform_7(%arg0: i32, %arg1: i32) -> (i32, i32, i32) {
    %c0_i32 = arith.constant 0 : i32
    %c0_i32_0 = arith.constant 0 : i32
    %c0_i32_1 = arith.constant 0 : i32
    return %arg0, %c0_i32, %c0_i32_0 : i32, i32, i32
  }
}

</mosaic_0001>

<llo_original>
// kernel: tpu_custom_call.1
$region0: #{tpu_custom_call.1}
  #allocation0 [shape = 'u32[]', space=smem, size = 0x4, offset = 0x4, fixed_abs, tag = 'smem constant byte address 0x4 - core index']
  #allocation1 [shape = 'u32[144,128]{1,0:T(1,128)}', space=vmem, size = 0x12000, scoped, tag = 'internal scratch']
  %s0 = inlined_call_operand.hbm [shape: f32[3,128], index: 0, kind: input, shape index: {}]
  %s1 = inlined_call_operand.vmem [shape: f32[1,128], index: 1, kind: input, shape index: {}]
  %s2 = inlined_call_operand.vmem [shape: s32[1,128], index: 2, kind: input, shape index: {}]
  %s3 = inlined_call_operand.hbm [shape: s32[1,2048], index: 3, kind: input, shape index: {}]
  %s4 = inlined_call_operand.hbm [shape: s32[1,2048], index: 4, kind: input, shape index: {}]
  %s5 = inlined_call_operand.vmem [shape: s32[1,2048], index: 5, kind: input, shape index: {}]
  %s6 = inlined_call_operand.vmem [shape: f32[2,3,128], index: 6, kind: output, shape index: {0}]
  %s7 = inlined_call_operand.vmem [shape: f32[2,10,128], index: 7, kind: output, shape index: {1}]
  %8 = xla_tuple %s6, %s7
  %s9 = sld [smem:[#allocation0]]
  $region85: #{tpu_custom_call.1} parent=0
    _
  %s11 = ssub.s32 1, %s9
  %s12 = scalar_select 0, %s11, %s9
  $region1: #{tpu_custom_call.1} parent=0
    #allocation2 [shape = 'u8[2048]{0}', space=vmem, size = 0x800, scoped, tag = 'input window, operand 0, single buffered']
    #allocation3 [shape = 's32[2]{0}', space=sflag, size = 0x8, scoped, tag = 'scoped memory for tpu_custom_call.1']
    #allocation4 [shape = 'u8[4096]{0}', space=vmem, size = 0x1000, scoped, tag = 'input window, operand 3']
    #allocation5 [shape = 's32[2]{0}', space=sflag, size = 0x8, scoped, tag = 'scoped memory for tpu_custom_call.1']
    #allocation6 [shape = 'u8[4096]{0}', space=vmem, size = 0x1000, scoped, tag = 'input window, operand 4']
    %13 = vsyncpa [#allocation3], 0
    %14 = vsyncpa [#allocation5], 0
    %s15 = scalar_lea.sflag [#allocation5], 1
    %16 = vsyncpa %s15, 0
    loop: start=0, step=1, limit=6
    $region2: #{tpu_custom_call.1} parent=1 // loop_pre_header
      _
    $region3: #{tpu_custom_call.1} parent=1 // loop_header
      %s18 = sphi 0, %s22
      %p19 = scmp.ge.s32.totalorder %s18, 6
      %s25 = sphi 0, %s37
      %s26 = sphi 0, %s33
      %s27 = sphi 0, %s25
      %s28 = sphi 0, %s26
      %s29 = sphi 0, %s27
      %s30 = sphi 0, %s28
      %s38 = sphi 0, %s38
      %s40 = sphi 0, %s38
      %s41 = sphi 0, %s40
      %s55 = sphi 0, %s41
      %s59 = sphi 0, %s59
      %s61 = sphi 0, %s59
      %s62 = sphi 0, %s61
      %s76 = sphi 0, %s62
      %s80 = sphi 0, %s80
      %s82 = sphi 0, %s80
      %s83 = sphi 0, %s82
      %s97 = sphi 0, %s83
      %s107 = sphi 0, %s109
      %s110 = sphi 0, %s107
      %s111 = sphi 0, %s110
      %s127 = sphi 0, %s111
      %s137 = sphi 0, %s139
      %s140 = sphi 0, %s137
      %s141 = sphi 0, %s140
      %s157 = sphi 0, %s141
      %s167 = sphi 0, %s169
      %s170 = sphi 0, %s167
      %s171 = sphi 0, %s170
      %s187 = sphi 0, %s171
      %s193 = sphi 0, %s195
      %s196 = sphi 0, %s193
      %s197 = sphi 0, %s196
      %s213 = sphi 0, %s197
      %s219 = sphi 0, %s221
      %s222 = sphi 0, %s219
      %s223 = sphi 0, %s222
      %s239 = sphi 0, %s223
    $region4: #{tpu_custom_call.1} parent=1 // loop_header_branch
      %21 = sbr.rel (%p19) target = $region8
    $region5: #{tpu_custom_call.1} parent=1 // loop_body
      %s23 = ssub.s32 %s18, 1
      %s24 = ssub.s32 %s18, 2
      %s31 = sadd.s32 1, %s26
      %p32 = scmp.ge.s32.totalorder %s31, 2
      %s33 = scalar_select %p32, 0, %s31
      %s34 = sadd.s32 1, %s25
      %s35 = scalar_select %p32, %s34, %s25
      %p36 = scmp.ge.s32.totalorder %s35, 2
      %s37 = scalar_select %p36, 0, %s35
      %s39 = sadd.s32 %s38, 1
      %p42 = scmp.eq.s32.totalorder %s18, 3
      %p43 = scmp.ne.s32.totalorder %s38, %s40
      %p44 = scmp.eq.s32.totalorder %s18, 0
      %p45 = por %p43, %p44
      %p46 = scmp.ne.s32.totalorder %s38, %s40
      %p47 = scmp.eq.s32.totalorder %s23, 3
      %p48 = por %p46, %p47
      %p49 = scmp.ne.s32.totalorder %s40, %s41
      %p50 = scmp.eq.s32.totalorder %s23, 0
      %p51 = por %p49, %p50
      %p52 = scmp.ne.s32.totalorder %s40, %s41
      %p53 = scmp.eq.s32.totalorder %s24, 3
      %p54 = por %p52, %p53
      %p56 = scmp.ne.s32.totalorder %s41, %s55
      %p57 = scmp.eq.s32.totalorder %s24, 0
      %p58 = por %p56, %p57
      %s60 = sadd.s32 %s59, 1
      %p63 = scmp.eq.s32.totalorder %s18, 3
      %p64 = scmp.ne.s32.totalorder %s59, %s61
      %p65 = scmp.eq.s32.totalorder %s18, 0
      %p66 = por %p64, %p65
      %p67 = scmp.ne.s32.totalorder %s59, %s61
      %p68 = scmp.eq.s32.totalorder %s23, 3
      %p69 = por %p67, %p68
      %p70 = scmp.ne.s32.totalorder %s61, %s62
      %p71 = scmp.eq.s32.totalorder %s23, 0
      %p72 = por %p70, %p71
      %p73 = scmp.ne.s32.totalorder %s61, %s62
      %p74 = scmp.eq.s32.totalorder %s24, 3
      %p75 = por %p73, %p74
      %p77 = scmp.ne.s32.totalorder %s62, %s76
      %p78 = scmp.eq.s32.totalorder %s24, 0
      %p79 = por %p77, %p78
      %s81 = sadd.s32 %s80, 1
      %p84 = scmp.eq.s32.totalorder %s18, 3
      %p85 = scmp.ne.s32.totalorder %s80, %s82
      %p86 = scmp.eq.s32.totalorder %s18, 0
      %p87 = por %p85, %p86
      %p88 = scmp.ne.s32.totalorder %s80, %s82
      %p89 = scmp.eq.s32.totalorder %s23, 3
      %p90 = por %p88, %p89
      %p91 = scmp.ne.s32.totalorder %s82, %s83
      %p92 = scmp.eq.s32.totalorder %s23, 0
      %p93 = por %p91, %p92
      %p94 = scmp.ne.s32.totalorder %s82, %s83
      %p95 = scmp.eq.s32.totalorder %s24, 3
      %p96 = por %p94, %p95
      %p98 = scmp.ne.s32.totalorder %s83, %s97
      %p99 = scmp.eq.s32.totalorder %s24, 0
      %p100 = por %p98, %p99
      %s101 = smul.u32 %s25, 2
      %s102 = sadd.s32 %s101, %s26
      %s103 = smul.u32 %s37, 2
      %s104 = sadd.s32 %s103, %s33
      %s105 = ssub.s32 %s102, %s104
      %p106 = scmp.eq.s32.totalorder %s105, 0
      %s108 = sadd.s32 %s107, 1
      %s109 = scalar_select %p106, %s107, %s108
      %p112 = pneg %p106
      %p113 = scmp.eq.s32.totalorder %s18, 3
      %p114 = por %p112, %p113
      %p115 = scmp.ne.s32.totalorder %s107, %s110
      %p116 = scmp.eq.s32.totalorder %s18, 0
      %p117 = por %p115, %p116
      %p118 = scmp.ne.s32.totalorder %s107, %s110
      %p119 = scmp.eq.s32.totalorder %s23, 3
      %p120 = por %p118, %p119
      %p121 = scmp.ne.s32.totalorder %s110, %s111
      %p122 = scmp.eq.s32.totalorder %s23, 0
      %p123 = por %p121, %p122
      %p124 = scmp.ne.s32.totalorder %s110, %s111
      %p125 = scmp.eq.s32.totalorder %s24, 3
      %p126 = por %p124, %p125
      %p128 = scmp.ne.s32.totalorder %s111, %s127
      %p129 = scmp.eq.s32.totalorder %s24, 0
      %p130 = por %p128, %p129
      %s131 = smul.u32 %s25, 2
      %s132 = sadd.s32 %s131, %s26
      %s133 = smul.u32 %s37, 2
      %s134 = sadd.s32 %s133, %s33
      %s135 = ssub.s32 %s132, %s134
      %p136 = scmp.eq.s32.totalorder %s135, 0
      %s138 = sadd.s32 %s137, 1
      %s139 = scalar_select %p136, %s137, %s138
      %p142 = pneg %p136
      %p143 = scmp.eq.s32.totalorder %s18, 3
      %p144 = por %p142, %p143
      %p145 = scmp.ne.s32.totalorder %s137, %s140
      %p146 = scmp.eq.s32.totalorder %s18, 0
      %p147 = por %p145, %p146
      %p148 = scmp.ne.s32.totalorder %s137, %s140
      %p149 = scmp.eq.s32.totalorder %s23, 3
      %p150 = por %p148, %p149
      %p151 = scmp.ne.s32.totalorder %s140, %s141
      %p152 = scmp.eq.s32.totalorder %s23, 0
      %p153 = por %p151, %p152
      %p154 = scmp.ne.s32.totalorder %s140, %s141
      %p155 = scmp.eq.s32.totalorder %s24, 3
      %p156 = por %p154, %p155
      %p158 = scmp.ne.s32.totalorder %s141, %s157
      %p159 = scmp.eq.s32.totalorder %s24, 0
      %p160 = por %p158, %p159
      %s161 = smul.u32 %s25, 2
      %s162 = sadd.s32 %s161, %s26
      %s163 = smul.u32 %s37, 2
      %s164 = sadd.s32 %s163, %s33
      %s165 = ssub.s32 %s162, %s164
      %p166 = scmp.eq.s32.totalorder %s165, 0
      %s168 = sadd.s32 %s167, 1
      %s169 = scalar_select %p166, %s167, %s168
      %p172 = pneg %p166
      %p173 = scmp.eq.s32.totalorder %s18, 3
      %p174 = por %p172, %p173
      %p175 = scmp.ne.s32.totalorder %s167, %s170
      %p176 = scmp.eq.s32.totalorder %s18, 0
      %p177 = por %p175, %p176
      %p178 = scmp.ne.s32.totalorder %s167, %s170
      %p179 = scmp.eq.s32.totalorder %s23, 3
      %p180 = por %p178, %p179
      %p181 = scmp.ne.s32.totalorder %s170, %s171
      %p182 = scmp.eq.s32.totalorder %s23, 0
      %p183 = por %p181, %p182
      %p184 = scmp.ne.s32.totalorder %s170, %s171
      %p185 = scmp.eq.s32.totalorder %s24, 3
      %p186 = por %p184, %p185
      %p188 = scmp.ne.s32.totalorder %s171, %s187
      %p189 = scmp.eq.s32.totalorder %s24, 0
      %p190 = por %p188, %p189
      %s191 = ssub.s32 %s25, %s37
      %p192 = scmp.eq.s32.totalorder %s191, 0
      %s194 = sadd.s32 %s193, 1
      %s195 = scalar_select %p192, %s193, %s194
      %p198 = pneg %p192
      %p199 = scmp.eq.s32.totalorder %s18, 3
      %p200 = por %p198, %p199
      %p201 = scmp.ne.s32.totalorder %s193, %s196
      %p202 = scmp.eq.s32.totalorder %s18, 0
      %p203 = por %p201, %p202
      %p204 = scmp.ne.s32.totalorder %s193, %s196
      %p205 = scmp.eq.s32.totalorder %s23, 3
      %p206 = por %p204, %p205
      %p207 = scmp.ne.s32.totalorder %s196, %s197
      %p208 = scmp.eq.s32.totalorder %s23, 0
      %p209 = por %p207, %p208
      %p210 = scmp.ne.s32.totalorder %s196, %s197
      %p211 = scmp.eq.s32.totalorder %s24, 3
      %p212 = por %p210, %p211
      %p214 = scmp.ne.s32.totalorder %s197, %s213
      %p215 = scmp.eq.s32.totalorder %s24, 0
      %p216 = por %p214, %p215
      %s217 = ssub.s32 %s25, %s37
      %p218 = scmp.eq.s32.totalorder %s217, 0
      %s220 = sadd.s32 %s219, 1
      %s221 = scalar_select %p218, %s219, %s220
      %p224 = pneg %p218
      %p225 = scmp.eq.s32.totalorder %s18, 3
      %p226 = por %p224, %p225
      %p227 = scmp.ne.s32.totalorder %s219, %s222
      %p228 = scmp.eq.s32.totalorder %s18, 0
      %p229 = por %p227, %p228
      %p230 = scmp.ne.s32.totalorder %s219, %s222
      %p231 = scmp.eq.s32.totalorder %s23, 3
      %p232 = por %p230, %p231
      %p233 = scmp.ne.s32.totalorder %s222, %s223
      %p234 = scmp.eq.s32.totalorder %s23, 0
      %p235 = por %p233, %p234
      %p236 = scmp.ne.s32.totalorder %s222, %s223
      %p237 = scmp.eq.s32.totalorder %s24, 3
      %p238 = por %p236, %p237
      %p240 = scmp.ne.s32.totalorder %s223, %s239
      %p241 = scmp.eq.s32.totalorder %s24, 0
      %p242 = por %p240, %p241
      %p243 = scmp.le.s32.totalorder 1, %s18
      %p244 = scmp.lt.s32.totalorder %s18, 5
      %p245 = pnand %p243, %p244
      %p246 = pneg %p245
      // Predicated region
      $region9: #{tpu_custom_call.1} parent=5 // pred_check
        _
      $region10: #{tpu_custom_call.1} parent=5 // pred_check_branch
        %248 = sbr.rel (%p245) target = $region12
      $region11: #{tpu_custom_call.1} parent=5 // pred_region
        %s249 = ssub.s32 %s18, 1
        // Predicated region
        $region13: #{tpu_custom_call.1} parent=11 // pred_check
          %p250 = pneg %p51
        $region14: #{tpu_custom_call.1} parent=11 // pred_check_branch
          %252 = sbr.rel (%p250) target = $region16
        $region15: #{tpu_custom_call.1} parent=11 // pred_region
          %s254 = ssub.s32 64, 64
          %255 = vsyncadd [#allocation3], %s254
          %s257 = sshll.u32 [#allocation2], 4
          %s258 = int_to_ptr.vmem [resolvable:$true] %s257
          %260 = dma.hbm_to_vmem [thread:$0]  %s0, 64, %s258, [#allocation3]
        $region16: #{tpu_custom_call.1} parent=11 // pred_fallthru
          _
        // Predicated region
        $region17: #{tpu_custom_call.1} parent=11 // pred_check
          %p261 = pneg %p72
        $region18: #{tpu_custom_call.1} parent=11 // pred_check_branch
          %263 = sbr.rel (%p261) target = $region20
        $region19: #{tpu_custom_call.1} parent=11 // pred_region
          _
        $region20: #{tpu_custom_call.1} parent=11 // pred_fallthru
          _
        // Predicated region
        $region21: #{tpu_custom_call.1} parent=11 // pred_check
          %p264 = pneg %p93
        $region22: #{tpu_custom_call.1} parent=11 // pred_check_branch
          %266 = sbr.rel (%p264) target = $region24
        $region23: #{tpu_custom_call.1} parent=11 // pred_region
          _
        $region24: #{tpu_custom_call.1} parent=11 // pred_fallthru
          _
      $region12: #{tpu_custom_call.1} parent=5 // pred_fallthru
        _
      %p267 = scmp.lt.s32.totalorder %s18, 4
      // Predicated region
      $region25: #{tpu_custom_call.1} parent=5 // pred_check
        %p268 = pneg %p267
      $region26: #{tpu_custom_call.1} parent=5 // pred_check_branch
        %270 = sbr.rel (%p268) target = $region28
      $region27: #{tpu_custom_call.1} parent=5 // pred_region
        // Predicated region
        $region29: #{tpu_custom_call.1} parent=27 // pred_check
          %p271 = pneg %p117
        $region30: #{tpu_custom_call.1} parent=27 // pred_check_branch
          %273 = sbr.rel (%p271) target = $region32
        $region31: #{tpu_custom_call.1} parent=27 // pred_region
          %s274 = sand.u32 %s18, 1
          %s275 = scalar_lea.sflag [#allocation5], %s274
          %s276 = sand.u32 %s107, 1
          %s277 = smul.addr %s276, 4
          %s278 = scalar_lea.vmem [#allocation4], %s277
          %s279 = smul.u32 %s25, 2
          %s280 = sadd.s32 %s279, %s26
          %s281 = smul.u32 4, %s280
          %s283 = ssub.s32 64, 64
          %284 = vsyncadd %s275, %s283
          %s285 = smul.addr %s281, 16
          %s286 = scalar_lea.hbm %s3, %s285
          %s288 = sshll.u32 %s278, 4
          %s289 = int_to_ptr.vmem [resolvable:$true] %s288
          %291 = dma.hbm_to_vmem [thread:$0]  %s286, 64, %s289, %s275
        $region32: #{tpu_custom_call.1} parent=27 // pred_fallthru
          _
        // Predicated region
        $region33: #{tpu_custom_call.1} parent=27 // pred_check
          %p292 = pneg %p147
        $region34: #{tpu_custom_call.1} parent=27 // pred_check_branch
          %294 = sbr.rel (%p292) target = $region36
        $region35: #{tpu_custom_call.1} parent=27 // pred_region
          %s295 = sand.u32 %s18, 1
          %s296 = scalar_lea.sflag [#allocation5], %s295
          %s297 = sand.u32 %s137, 1
          %s298 = smul.addr %s297, 4
          %s299 = scalar_lea.vmem [#allocation6], %s298
          %s300 = smul.u32 %s25, 2
          %s301 = sadd.s32 %s300, %s26
          %s302 = smul.u32 4, %s301
          %s304 = ssub.s32 64, 64
          %305 = vsyncadd %s296, %s304
          %s306 = smul.addr %s302, 16
          %s307 = scalar_lea.hbm %s4, %s306
          %s309 = sshll.u32 %s299, 4
          %s310 = int_to_ptr.vmem [resolvable:$true] %s309
          %312 = dma.hbm_to_vmem [thread:$0]  %s307, 64, %s310, %s296
        $region36: #{tpu_custom_call.1} parent=27 // pred_fallthru
          _
        // Predicated region
        $region37: #{tpu_custom_call.1} parent=27 // pred_check
          %p313 = pneg %p177
        $region38: #{tpu_custom_call.1} parent=27 // pred_check_branch
          %315 = sbr.rel (%p313) target = $region40
        $region39: #{tpu_custom_call.1} parent=27 // pred_region
          %s316 = smul.u32 %s25, 2
          %s317 = sadd.s32 %s316, %s26
          %s318 = smul.u32 4, %s317
          %p319 = scmp.lt.s32.totalorder %s318, 15
          %s320 = scalar_select %p319, %s318, 15
          %s321 = scalar_lea.vmem %s5, %s320
          %s322 = smul.u32 %s25, 2
          %s323 = sadd.s32 %s322, %s26
          %s324 = smul.u32 4, %s323
        $region40: #{tpu_custom_call.1} parent=27 // pred_fallthru
          _
      $region28: #{tpu_custom_call.1} parent=5 // pred_fallthru
        _
      %p325 = scmp.le.s32.totalorder 1, %s18
      %p326 = scmp.lt.s32.totalorder %s18, 5
      %p327 = pnand %p325, %p326
      %p328 = pneg %p327
      // Predicated region
      $region41: #{tpu_custom_call.1} parent=5 // pred_check
        _
      $region42: #{tpu_custom_call.1} parent=5 // pred_check_branch
        %330 = sbr.rel (%p327) target = $region44
      $region43: #{tpu_custom_call.1} parent=5 // pred_region
        %s331 = ssub.s32 %s18, 1
        // Predicated region
        $region45: #{tpu_custom_call.1} parent=43 // pred_check
          %p332 = pneg %p51
        $region46: #{tpu_custom_call.1} parent=43 // pred_check_branch
          %334 = sbr.rel (%p332) target = $region48
        $region47: #{tpu_custom_call.1} parent=43 // pred_region
          %335 = dma.done [#allocation3], 64
        $region48: #{tpu_custom_call.1} parent=43 // pred_fallthru
          _
        %s336 = sand.u32 %s23, 1
        %s337 = scalar_lea.sflag [#allocation5], %s336
        %s338 = sand.u32 %s110, 1
        %s339 = smul.addr %s338, 4
        %s340 = scalar_lea.vmem [#allocation4], %s339
        // Predicated region
        $region49: #{tpu_custom_call.1} parent=43 // pred_check
          %p341 = pneg %p123
        $region50: #{tpu_custom_call.1} parent=43 // pred_check_branch
          %343 = sbr.rel (%p341) target = $region52
        $region51: #{tpu_custom_call.1} parent=43 // pred_region
          %344 = dma.done %s337, 64
        $region52: #{tpu_custom_call.1} parent=43 // pred_fallthru
          _
        %s345 = sand.u32 %s23, 1
        %s346 = scalar_lea.sflag [#allocation5], %s345
        %s347 = sand.u32 %s140, 1
        %s348 = smul.addr %s347, 4
        %s349 = scalar_lea.vmem [#allocation6], %s348
        // Predicated region
        $region53: #{tpu_custom_call.1} parent=43 // pred_check
          %p350 = pneg %p153
        $region54: #{tpu_custom_call.1} parent=43 // pred_check_branch
          %352 = sbr.rel (%p350) target = $region56
        $region55: #{tpu_custom_call.1} parent=43 // pred_region
          %353 = dma.done %s346, 64
        $region56: #{tpu_custom_call.1} parent=43 // pred_fallthru
          _
        %p354 = pneg %p51
        %p355 = pneg %p48
        %p356 = pneg %p72
        %p357 = pneg %p69
        %p358 = pneg %p93
        %p359 = pneg %p90
        %s360 = sand.u32 %s23, 1
        %s361 = scalar_lea.sflag [#allocation5], %s360
        %s362 = sand.u32 %s110, 1
        %s363 = smul.addr %s362, 4
        %s364 = scalar_lea.vmem [#allocation4], %s363
        %p365 = pneg %p123
        %p366 = pneg %p120
        %s367 = sand.u32 %s23, 1
        %s368 = scalar_lea.sflag [#allocation5], %s367
        %s369 = sand.u32 %s140, 1
        %s370 = smul.addr %s369, 4
        %s371 = scalar_lea.vmem [#allocation6], %s370
        %p372 = pneg %p153
        %p373 = pneg %p150
        %s374 = smul.u32 %s27, 2
        %s375 = sadd.s32 %s374, %s28
        %s376 = smul.u32 4, %s375
        %p377 = scmp.lt.s32.totalorder %s376, 15
        %s378 = scalar_select %p377, %s376, 15
        %s379 = scalar_lea.vmem %s5, %s378
        %p380 = pneg %p183
        %p381 = pneg %p180
        %p382 = pneg %p209
        %p383 = pneg %p206
        %p384 = scmp.lt.s32.totalorder %s27, 1
        %s385 = scalar_select %p384, %s27, 1
        %s386 = smul.addr %s385, 4
        %s387 = scalar_lea.vmem %s6, %s386
        %p388 = pneg %p235
        %p389 = pneg %p232
        %p390 = scmp.lt.s32.totalorder %s27, 1
        %s391 = scalar_select %p390, %s27, 1
        %s392 = smul.addr %s391, 2
        %s393 = smul.addr %s392, 8
        %s394 = scalar_lea.vmem %s7, %s393
        %s395 = smul.u32 %s27, 2
        %s396 = sadd.s32 %s395, %s28
        %s397 = smul.u32 4, %s396
        %s398 = smul.u32 %s27, 2
        %s399 = sadd.s32 %s398, %s28
        %s400 = smul.u32 4, %s399
        %s401 = smul.u32 %s27, 2
        %s402 = sadd.s32 %s401, %s28
        %s403 = smul.u32 4, %s402
        %p404 = scmp.lt.s32.totalorder %s403, 15
        %s405 = scalar_select %p404, %s403, 15
        %s406 = scalar_lea.vmem %s5, %s405
        %s407 = smul.u32 %s27, 2
        %s408 = sadd.s32 %s407, %s28
        %s409 = smul.u32 4, %s408
        %p410 = scmp.lt.s32.totalorder %s27, 1
        %s411 = scalar_select %p410, %s27, 1
        %s412 = smul.addr %s411, 4
        %s413 = scalar_lea.vmem %s6, %s412
        %p414 = scmp.lt.s32.totalorder %s27, 1
        %s415 = scalar_select %p414, %s27, 1
        %s416 = smul.addr %s415, 2
        %s417 = smul.addr %s416, 8
        %s418 = scalar_lea.vmem %s7, %s417
        %p419 = scmp.eq.s32.totalorder %s28, 0
        // Predicated region
        $region57: #{tpu_custom_call.1} parent=43 // pred_check
          %p420 = pneg %p419
        $region58: #{tpu_custom_call.1} parent=43 // pred_check_branch
          %422 = sbr.rel (%p420) target = $region60
        $region59: #{tpu_custom_call.1} parent=43 // pred_region
          %423 = vst [vmem:[%s413] sm:$0x7] 0.0
          %424 = vst [vmem:[%s418] sm:$0xff] 0.0
          %425 = vst [vmem:[%s418 + $0x8] sm:$0x3] 0.0
        $region60: #{tpu_custom_call.1} parent=43 // pred_fallthru
          _
        %p426 = scmp.eq.s32.totalorder %s27, 0
        %p427 = pnand %p426, %p419
        %p428 = pneg %p427
        // Predicated region
        $region61: #{tpu_custom_call.1} parent=43 // pred_check
          _
        $region62: #{tpu_custom_call.1} parent=43 // pred_check_branch
          %430 = sbr.rel (%p427) target = $region64
        $region63: #{tpu_custom_call.1} parent=43 // pred_region
          %v431 = vlaneseq
          %v432 = vshrl.u32 %v431, 7
          %v433 = vadd.s32 %v432, 8
          %v434 = vadd.s32 %v432, 16
          %v435 = vadd.s32 %v432, 24
          %v436 = vadd.s32 %v432, 32
          %v437 = vadd.s32 %v432, 40
          %v438 = vadd.s32 %v432, 48
          %v439 = vadd.s32 %v432, 56
          %v440 = vadd.s32 %v432, 64
          %v441 = vadd.s32 %v432, 72
          %v442 = vadd.s32 %v432, 80
          %v443 = vadd.s32 %v432, 88
          %v444 = vadd.s32 %v432, 96
          %v445 = vadd.s32 %v432, 104
          %v446 = vadd.s32 %v432, 112
          %v447 = vadd.s32 %v432, 120
          %v448 = vld [vmem:[%s2] sm:$0x1]
          %v449 = vlaneseq
          %v450 = vshrl.u32 %v449, 7
          %v451 = vsub.s32 0, %v450
          %v452 = vrot.slane %v448, %v451
          %vm453 = vcmp.eq.s32.totalorder %v432, %v452
          %vm454 = vcmp.eq.s32.totalorder %v433, %v452
          %vm455 = vcmp.eq.s32.totalorder %v434, %v452
          %vm456 = vcmp.eq.s32.totalorder %v435, %v452
          %vm457 = vcmp.eq.s32.totalorder %v436, %v452
          %vm458 = vcmp.eq.s32.totalorder %v437, %v452
          %vm459 = vcmp.eq.s32.totalorder %v438, %v452
          %vm460 = vcmp.eq.s32.totalorder %v439, %v452
          %vm461 = vcmp.eq.s32.totalorder %v440, %v452
          %vm462 = vcmp.eq.s32.totalorder %v441, %v452
          %vm463 = vcmp.eq.s32.totalorder %v442, %v452
          %vm464 = vcmp.eq.s32.totalorder %v443, %v452
          %vm465 = vcmp.eq.s32.totalorder %v444, %v452
          %vm466 = vcmp.eq.s32.totalorder %v445, %v452
          %vm467 = vcmp.eq.s32.totalorder %v446, %v452
          %vm468 = vcmp.eq.s32.totalorder %v447, %v452
          %v469 = vsel %vm453, 1, 0
          %v470 = vsel %vm454, 1, 0
          %v471 = vsel %vm455, 1, 0
          %v472 = vsel %vm456, 1, 0
          %v473 = vsel %vm457, 1, 0
          %v474 = vsel %vm458, 1, 0
          %v475 = vsel %vm459, 1, 0
          %v476 = vsel %vm460, 1, 0
          %v477 = vsel %vm461, 1, 0
          %v478 = vsel %vm462, 1, 0
          %v479 = vsel %vm463, 1, 0
          %v480 = vsel %vm464, 1, 0
          %v481 = vsel %vm465, 1, 0
          %v482 = vsel %vm466, 1, 0
          %v483 = vsel %vm467, 1, 0
          %v484 = vsel %vm468, 1, 0
          %v485 = vcvt.s32.f32 %v469
          %v486 = vcvt.s32.f32 %v470
          %v487 = vcvt.s32.f32 %v471
          %v488 = vcvt.s32.f32 %v472
          %v489 = vcvt.s32.f32 %v473
          %v490 = vcvt.s32.f32 %v474
          %v491 = vcvt.s32.f32 %v475
          %v492 = vcvt.s32.f32 %v476
          %v493 = vcvt.s32.f32 %v477
          %v494 = vcvt.s32.f32 %v478
          %v495 = vcvt.s32.f32 %v479
          %v496 = vcvt.s32.f32 %v480
          %v497 = vcvt.s32.f32 %v481
          %v498 = vcvt.s32.f32 %v482
          %v499 = vcvt.s32.f32 %v483
          %v500 = vcvt.s32.f32 %v484
          %v501 = vld [vmem:[%s1] sm:$0x1]
          %v502 = vpack.c.bf16 %v501, %v501
          %v503 = vunpack.c.l.bf16 %v502
          %v504 = vsub.f32 %v501, %v503
          %505 = vmatprep.subr.mxu0 0.0
          %506 = vmatpush1.xpose.msra.mxu0 %v485
          %507 = vmatprep.subr.mxu0 0.0
          %508 = vmatpush1.xpose.msra.mxu0 %v486
          %509 = vmatprep.subr.mxu0 0.0
          %510 = vmatpush1.xpose.msra.mxu0 %v487
          %511 = vmatprep.subr.mxu0 0.0
          %512 = vmatpush1.xpose.msra.mxu0 %v488
          %513 = vmatprep.subr.mxu0 0.0
          %514 = vmatpush1.xpose.msra.mxu0 %v489
          %515 = vmatprep.subr.mxu0 0.0
          %516 = vmatpush1.xpose.msra.mxu0 %v490
          %517 = vmatprep.subr.mxu0 0.0
          %518 = vmatpush1.xpose.msra.mxu0 %v491
          %519 = vmatprep.subr.mxu0 0.0
          %520 = vmatpush1.xpose.msra.mxu0 %v492
          %521 = vmatprep.subr.mxu0 0.0
          %522 = vmatpush1.xpose.msra.mxu0 %v493
          %523 = vmatprep.subr.mxu0 0.0
          %524 = vmatpush1.xpose.msra.mxu0 %v494
          %525 = vmatprep.subr.mxu0 0.0
          %526 = vmatpush1.xpose.msra.mxu0 %v495
          %527 = vmatprep.subr.mxu0 0.0
          %528 = vmatpush1.xpose.msra.mxu0 %v496
          %529 = vmatprep.subr.mxu0 0.0
          %530 = vmatpush1.xpose.msra.mxu0 %v497
          %531 = vmatprep.subr.mxu0 0.0
          %532 = vmatpush1.xpose.msra.mxu0 %v498
          %533 = vmatprep.subr.mxu0 0.0
          %534 = vmatpush1.xpose.msra.mxu0 %v499
          %535 = vmatprep.subr.mxu0 0.0
          %536 = vmatpush1.xpose.msra.mxu0 %v500
          %537 = vmatprep.subr.mxu0 0.0
          %538 = vmatpush1.xpose.msra.mxu0 0.0
          %539 = vmatprep.subr.mxu0 0.0
          %540 = vmatpush1.xpose.msra.mxu0 0.0
          %541 = vmatprep.subr.mxu0 0.0
          %542 = vmatpush1.xpose.msra.mxu0 0.0
          %543 = vmatprep.subr.mxu0 0.0
          %544 = vmatpush1.xpose.msra.mxu0 0.0
          %545 = vmatprep.subr.mxu0 0.0
          %546 = vmatpush1.xpose.msra.mxu0 0.0
          %547 = vmatprep.subr.mxu0 0.0
          %548 = vmatpush1.xpose.msra.mxu0 0.0
          %549 = vmatprep.subr.mxu0 0.0
          %550 = vmatpush1.xpose.msra.mxu0 0.0
          %551 = vmatprep.subr.mxu0 0.0
          %552 = vmatpush1.xpose.msra.mxu0 0.0
          %553 = vmatprep.subr.mxu0 0.0
          %554 = vmatpush1.xpose.msra.mxu0 0.0
          %555 = vmatprep.subr.mxu0 0.0
          %556 = vmatpush1.xpose.msra.mxu0 0.0
          %557 = vmatprep.subr.mxu0 0.0
          %558 = vmatpush1.xpose.msra.mxu0 0.0
          %559 = vmatprep.subr.mxu0 0.0
          %560 = vmatpush1.xpose.msra.mxu0 0.0
          %561 = vmatprep.subr.mxu0 0.0
          %562 = vmatpush1.xpose.msra.mxu0 0.0
          %563 = vmatprep.subr.mxu0 0.0
          %564 = vmatpush1.xpose.msra.mxu0 0.0
          %565 = vmatprep.subr.mxu0 0.0
          %566 = vmatpush1.xpose.msra.mxu0 0.0
          %567 = vmatprep.subr.mxu0 0.0
          %568 = vmatpush1.xpose.msra.mxu0 0.0
          %569 = vmatprep.mubr.f32.mxu0 0.0
          %570 = vmatmul.mubr.f32.gmra.mrb[0].mxu0 %v504
          %v571 = vpop.f32.mrb[0].mxu0
          %v572 = vadd.f32 0.0, %v571
          %v573 = vpop.f32.mrb[0].mxu0
          %574 = vdwg.mxu0
          %575 = vmatprep.subr.mxu0 0.0
          %576 = vmatpush1.xpose.msra.mxu0 %v485
          %577 = vmatprep.subr.mxu0 0.0
          %578 = vmatpush1.xpose.msra.mxu0 %v486
          %579 = vmatprep.subr.mxu0 0.0
          %580 = vmatpush1.xpose.msra.mxu0 %v487
          %581 = vmatprep.subr.mxu0 0.0
          %582 = vmatpush1.xpose.msra.mxu0 %v488
          %583 = vmatprep.subr.mxu0 0.0
          %584 = vmatpush1.xpose.msra.mxu0 %v489
          %585 = vmatprep.subr.mxu0 0.0
          %586 = vmatpush1.xpose.msra.mxu0 %v490
          %587 = vmatprep.subr.mxu0 0.0
          %588 = vmatpush1.xpose.msra.mxu0 %v491
          %589 = vmatprep.subr.mxu0 0.0
          %590 = vmatpush1.xpose.msra.mxu0 %v492
          %591 = vmatprep.subr.mxu0 0.0
          %592 = vmatpush1.xpose.msra.mxu0 %v493
          %593 = vmatprep.subr.mxu0 0.0
          %594 = vmatpush1.xpose.msra.mxu0 %v494
          %595 = vmatprep.subr.mxu0 0.0
          %596 = vmatpush1.xpose.msra.mxu0 %v495
          %597 = vmatprep.subr.mxu0 0.0
          %598 = vmatpush1.xpose.msra.mxu0 %v496
          %599 = vmatprep.subr.mxu0 0.0
          %600 = vmatpush1.xpose.msra.mxu0 %v497
          %601 = vmatprep.subr.mxu0 0.0
          %602 = vmatpush1.xpose.msra.mxu0 %v498
          %603 = vmatprep.subr.mxu0 0.0
          %604 = vmatpush1.xpose.msra.mxu0 %v499
          %605 = vmatprep.subr.mxu0 0.0
          %606 = vmatpush1.xpose.msra.mxu0 %v500
          %607 = vmatprep.subr.mxu0 0.0
          %608 = vmatpush1.xpose.msra.mxu0 0.0
          %609 = vmatprep.subr.mxu0 0.0
          %610 = vmatpush1.xpose.msra.mxu0 0.0
          %611 = vmatprep.subr.mxu0 0.0
          %612 = vmatpush1.xpose.msra.mxu0 0.0
          %613 = vmatprep.subr.mxu0 0.0
          %614 = vmatpush1.xpose.msra.mxu0 0.0
          %615 = vmatprep.subr.mxu0 0.0
          %616 = vmatpush1.xpose.msra.mxu0 0.0
          %617 = vmatprep.subr.mxu0 0.0
          %618 = vmatpush1.xpose.msra.mxu0 0.0
          %619 = vmatprep.subr.mxu0 0.0
          %620 = vmatpush1.xpose.msra.mxu0 0.0
          %621 = vmatprep.subr.mxu0 0.0
          %622 = vmatpush1.xpose.msra.mxu0 0.0
          %623 = vmatprep.subr.mxu0 0.0
          %624 = vmatpush1.xpose.msra.mxu0 0.0
          %625 = vmatprep.subr.mxu0 0.0
          %626 = vmatpush1.xpose.msra.mxu0 0.0
          %627 = vmatprep.subr.mxu0 0.0
          %628 = vmatpush1.xpose.msra.mxu0 0.0
          %629 = vmatprep.subr.mxu0 0.0
          %630 = vmatpush1.xpose.msra.mxu0 0.0
          %631 = vmatprep.subr.mxu0 0.0
          %632 = vmatpush1.xpose.msra.mxu0 0.0
          %633 = vmatprep.subr.mxu0 0.0
          %634 = vmatpush1.xpose.msra.mxu0 0.0
          %635 = vmatprep.subr.mxu0 0.0
          %636 = vmatpush1.xpose.msra.mxu0 0.0
          %637 = vmatprep.subr.mxu0 0.0
          %638 = vmatpush1.xpose.msra.mxu0 0.0
          %639 = vmatprep.mubr.f32.mxu0 0.0
          %640 = vmatmul.mubr.f32.gmra.mrb[0].mxu0 %v503
          %v641 = vpop.f32.mrb[0].mxu0
          %v642 = vadd.f32 %v572, %v641
          %v643 = vpop.f32.mrb[0].mxu0
          %644 = vdwg.mxu0
          %v645 = vld [vmem:[%s418] sm:$0xff]
          %v646 = vld [vmem:[%s418 + $0x8] sm:$0x3]
          %vm647 = vcmask 1040384
          %v648 = vsel %vm647, %v642, 0.0
          %v649 = vadd.f32 %v645, %v648
          %v650 = vadd.f32 %v646, 0.0
          %651 = vst [vmem:[%s418] sm:$0xff] %v649
          %652 = vst [vmem:[%s418 + $0x8] sm:$0x3] %v650
        $region64: #{tpu_custom_call.1} parent=43 // pred_fallthru
          _
        %v653 = vld [vmem:[%s340] sm:$0xf]
        %v654 = vld [vmem:[%s349] sm:$0xf]
        %v655 = vld [vmem:[%s406] sm:$0xf]
        %v656 = vlaneseq
        %v657 = vshrl.u32 %v656, 7
        %v658 = vadd.s32 %v657, 8
        %v659 = vadd.s32 %v657, 16
        %v660 = vadd.s32 %v657, 24
        %v661 = vadd.s32 %v657, 32
        %v662 = vadd.s32 %v657, 40
        %v663 = vadd.s32 %v657, 48
        %v664 = vadd.s32 %v657, 56
        %v665 = vadd.s32 %v657, 64
        %v666 = vadd.s32 %v657, 72
        %v667 = vadd.s32 %v657, 80
        %v668 = vadd.s32 %v657, 88
        %v669 = vadd.s32 %v657, 96
        %v670 = vadd.s32 %v657, 104
        %v671 = vadd.s32 %v657, 112
        %v672 = vadd.s32 %v657, 120
        %v673 = vlaneseq
        %v674 = vshrl.u32 %v673, 7
        %v675 = vsub.s32 0, %v674
        %v676 = vrot.slane %v653, %v675
        %v677 = vlaneseq
        %v678 = vshrl.u32 %v677, 7
        %v679 = vsub.s32 1, %v678
        %v680 = vrot.slane %v653, %v679
        %v681 = vlaneseq
        %v682 = vshrl.u32 %v681, 7
        %v683 = vsub.s32 2, %v682
        %v684 = vrot.slane %v653, %v683
        %v685 = vlaneseq
        %v686 = vshrl.u32 %v685, 7
        %v687 = vsub.s32 3, %v686
        %v688 = vrot.slane %v653, %v687
        %vm689 = vcmp.eq.s32.totalorder %v657, %v676
        %vm690 = vcmp.eq.s32.totalorder %v657, %v680
        %vm691 = vcmp.eq.s32.totalorder %v657, %v684
        %vm692 = vcmp.eq.s32.totalorder %v657, %v688
        %vm693 = vcmp.eq.s32.totalorder %v658, %v676
        %vm694 = vcmp.eq.s32.totalorder %v658, %v680
        %vm695 = vcmp.eq.s32.totalorder %v658, %v684
        %vm696 = vcmp.eq.s32.totalorder %v658, %v688
        %vm697 = vcmp.eq.s32.totalorder %v659, %v676
        %vm698 = vcmp.eq.s32.totalorder %v659, %v680
        %vm699 = vcmp.eq.s32.totalorder %v659, %v684
        %vm700 = vcmp.eq.s32.totalorder %v659, %v688
        %vm701 = vcmp.eq.s32.totalorder %v660, %v676
        %vm702 = vcmp.eq.s32.totalorder %v660, %v680
        %vm703 = vcmp.eq.s32.totalorder %v660, %v684
        %vm704 = vcmp.eq.s32.totalorder %v660, %v688
        %vm705 = vcmp.eq.s32.totalorder %v661, %v676
        %vm706 = vcmp.eq.s32.totalorder %v661, %v680
        %vm707 = vcmp.eq.s32.totalorder %v661, %v684
        %vm708 = vcmp.eq.s32.totalorder %v661, %v688
        %vm709 = vcmp.eq.s32.totalorder %v662, %v676
        %vm710 = vcmp.eq.s32.totalorder %v662, %v680
        %vm711 = vcmp.eq.s32.totalorder %v662, %v684
        %vm712 = vcmp.eq.s32.totalorder %v662, %v688
        %vm713 = vcmp.eq.s32.totalorder %v663, %v676
        %vm714 = vcmp.eq.s32.totalorder %v663, %v680
        %vm715 = vcmp.eq.s32.totalorder %v663, %v684
        %vm716 = vcmp.eq.s32.totalorder %v663, %v688
        %vm717 = vcmp.eq.s32.totalorder %v664, %v676
        %vm718 = vcmp.eq.s32.totalorder %v664, %v680
        %vm719 = vcmp.eq.s32.totalorder %v664, %v684
        %vm720 = vcmp.eq.s32.totalorder %v664, %v688
        %vm721 = vcmp.eq.s32.totalorder %v665, %v676
        %vm722 = vcmp.eq.s32.totalorder %v665, %v680
        %vm723 = vcmp.eq.s32.totalorder %v665, %v684
        %vm724 = vcmp.eq.s32.totalorder %v665, %v688
        %vm725 = vcmp.eq.s32.totalorder %v666, %v676
        %vm726 = vcmp.eq.s32.totalorder %v666, %v680
        %vm727 = vcmp.eq.s32.totalorder %v666, %v684
        %vm728 = vcmp.eq.s32.totalorder %v666, %v688
        %vm729 = vcmp.eq.s32.totalorder %v667, %v676
        %vm730 = vcmp.eq.s32.totalorder %v667, %v680
        %vm731 = vcmp.eq.s32.totalorder %v667, %v684
        %vm732 = vcmp.eq.s32.totalorder %v667, %v688
        %vm733 = vcmp.eq.s32.totalorder %v668, %v676
        %vm734 = vcmp.eq.s32.totalorder %v668, %v680
        %vm735 = vcmp.eq.s32.totalorder %v668, %v684
        %vm736 = vcmp.eq.s32.totalorder %v668, %v688
        %vm737 = vcmp.eq.s32.totalorder %v669, %v676
        %vm738 = vcmp.eq.s32.totalorder %v669, %v680
        %vm739 = vcmp.eq.s32.totalorder %v669, %v684
        %vm740 = vcmp.eq.s32.totalorder %v669, %v688
        %vm741 = vcmp.eq.s32.totalorder %v670, %v676
        %vm742 = vcmp.eq.s32.totalorder %v670, %v680
        %vm743 = vcmp.eq.s32.totalorder %v670, %v684
        %vm744 = vcmp.eq.s32.totalorder %v670, %v688
        %vm745 = vcmp.eq.s32.totalorder %v671, %v676
        %vm746 = vcmp.eq.s32.totalorder %v671, %v680
        %vm747 = vcmp.eq.s32.totalorder %v671, %v684
        %vm748 = vcmp.eq.s32.totalorder %v671, %v688
        %vm749 = vcmp.eq.s32.totalorder %v672, %v676
        %vm750 = vcmp.eq.s32.totalorder %v672, %v680
        %vm751 = vcmp.eq.s32.totalorder %v672, %v684
        %vm752 = vcmp.eq.s32.totalorder %v672, %v688
        %v753 = vsel %vm689, 1, 0
        %v754 = vsel %vm690, 1, 0
        %v755 = vsel %vm691, 1, 0
        %v756 = vsel %vm692, 1, 0
        %v757 = vsel %vm693, 1, 0
        %v758 = vsel %vm694, 1, 0
        %v759 = vsel %vm695, 1, 0
        %v760 = vsel %vm696, 1, 0
        %v761 = vsel %vm697, 1, 0
        %v762 = vsel %vm698, 1, 0
        %v763 = vsel %vm699, 1, 0
        %v764 = vsel %vm700, 1, 0
        %v765 = vsel %vm701, 1, 0
        %v766 = vsel %vm702, 1, 0
        %v767 = vsel %vm703, 1, 0
        %v768 = vsel %vm704, 1, 0
        %v769 = vsel %vm705, 1, 0
        %v770 = vsel %vm706, 1, 0
        %v771 = vsel %vm707, 1, 0
        %v772 = vsel %vm708, 1, 0
        %v773 = vsel %vm709, 1, 0
        %v774 = vsel %vm710, 1, 0
        %v775 = vsel %vm711, 1, 0
        %v776 = vsel %vm712, 1, 0
        %v777 = vsel %vm713, 1, 0
        %v778 = vsel %vm714, 1, 0
        %v779 = vsel %vm715, 1, 0
        %v780 = vsel %vm716, 1, 0
        %v781 = vsel %vm717, 1, 0
        %v782 = vsel %vm718, 1, 0
        %v783 = vsel %vm719, 1, 0
        %v784 = vsel %vm720, 1, 0
        %v785 = vsel %vm721, 1, 0
        %v786 = vsel %vm722, 1, 0
        %v787 = vsel %vm723, 1, 0
        %v788 = vsel %vm724, 1, 0
        %v789 = vsel %vm725, 1, 0
        %v790 = vsel %vm726, 1, 0
        %v791 = vsel %vm727, 1, 0
        %v792 = vsel %vm728, 1, 0
        %v793 = vsel %vm729, 1, 0
        %v794 = vsel %vm730, 1, 0
        %v795 = vsel %vm731, 1, 0
        %v796 = vsel %vm732, 1, 0
        %v797 = vsel %vm733, 1, 0
        %v798 = vsel %vm734, 1, 0
        %v799 = vsel %vm735, 1, 0
        %v800 = vsel %vm736, 1, 0
        %v801 = vsel %vm737, 1, 0
        %v802 = vsel %vm738, 1, 0
        %v803 = vsel %vm739, 1, 0
        %v804 = vsel %vm740, 1, 0
        %v805 = vsel %vm741, 1, 0
        %v806 = vsel %vm742, 1, 0
        %v807 = vsel %vm743, 1, 0
        %v808 = vsel %vm744, 1, 0
        %v809 = vsel %vm745, 1, 0
        %v810 = vsel %vm746, 1, 0
        %v811 = vsel %vm747, 1, 0
        %v812 = vsel %vm748, 1, 0
        %v813 = vsel %vm749, 1, 0
        %v814 = vsel %vm750, 1, 0
        %v815 = vsel %vm751, 1, 0
        %v816 = vsel %vm752, 1, 0
        %v817 = vcvt.s32.f32 %v753
        %v818 = vcvt.s32.f32 %v754
        %v819 = vcvt.s32.f32 %v755
        %v820 = vcvt.s32.f32 %v756
        %v821 = vcvt.s32.f32 %v757
        %v822 = vcvt.s32.f32 %v758
        %v823 = vcvt.s32.f32 %v759
        %v824 = vcvt.s32.f32 %v760
        %v825 = vcvt.s32.f32 %v761
        %v826 = vcvt.s32.f32 %v762
        %v827 = vcvt.s32.f32 %v763
        %v828 = vcvt.s32.f32 %v764
        %v829 = vcvt.s32.f32 %v765
        %v830 = vcvt.s32.f32 %v766
        %v831 = vcvt.s32.f32 %v767
        %v832 = vcvt.s32.f32 %v768
        %v833 = vcvt.s32.f32 %v769
        %v834 = vcvt.s32.f32 %v770
        %v835 = vcvt.s32.f32 %v771
        %v836 = vcvt.s32.f32 %v772
        %v837 = vcvt.s32.f32 %v773
        %v838 = vcvt.s32.f32 %v774
        %v839 = vcvt.s32.f32 %v775
        %v840 = vcvt.s32.f32 %v776
        %v841 = vcvt.s32.f32 %v777
        %v842 = vcvt.s32.f32 %v778
        %v843 = vcvt.s32.f32 %v779
        %v844 = vcvt.s32.f32 %v780
        %v845 = vcvt.s32.f32 %v781
        %v846 = vcvt.s32.f32 %v782
        %v847 = vcvt.s32.f32 %v783
        %v848 = vcvt.s32.f32 %v784
        %v849 = vcvt.s32.f32 %v785
        %v850 = vcvt.s32.f32 %v786
        %v851 = vcvt.s32.f32 %v787
        %v852 = vcvt.s32.f32 %v788
        %v853 = vcvt.s32.f32 %v789
        %v854 = vcvt.s32.f32 %v790
        %v855 = vcvt.s32.f32 %v791
        %v856 = vcvt.s32.f32 %v792
        %v857 = vcvt.s32.f32 %v793
        %v858 = vcvt.s32.f32 %v794
        %v859 = vcvt.s32.f32 %v795
        %v860 = vcvt.s32.f32 %v796
        %v861 = vcvt.s32.f32 %v797
        %v862 = vcvt.s32.f32 %v798
        %v863 = vcvt.s32.f32 %v799
        %v864 = vcvt.s32.f32 %v800
        %v865 = vcvt.s32.f32 %v801
        %v866 = vcvt.s32.f32 %v802
        %v867 = vcvt.s32.f32 %v803
        %v868 = vcvt.s32.f32 %v804
        %v869 = vcvt.s32.f32 %v805
        %v870 = vcvt.s32.f32 %v806
        %v871 = vcvt.s32.f32 %v807
        %v872 = vcvt.s32.f32 %v808
        %v873 = vcvt.s32.f32 %v809
        %v874 = vcvt.s32.f32 %v810
        %v875 = vcvt.s32.f32 %v811
        %v876 = vcvt.s32.f32 %v812
        %v877 = vcvt.s32.f32 %v813
        %v878 = vcvt.s32.f32 %v814
        %v879 = vcvt.s32.f32 %v815
        %v880 = vcvt.s32.f32 %v816
        %v881 = vlaneseq
        %v882 = vshrl.u32 %v881, 7
        %v883 = vsub.s32 0, %v882
        %v884 = vrot.slane %v654, %v883
        %v885 = vlaneseq
        %v886 = vshrl.u32 %v885, 7
        %v887 = vsub.s32 1, %v886
        %v888 = vrot.slane %v654, %v887
        %v889 = vlaneseq
        %v890 = vshrl.u32 %v889, 7
        %v891 = vsub.s32 2, %v890
        %v892 = vrot.slane %v654, %v891
        %v893 = vlaneseq
        %v894 = vshrl.u32 %v893, 7
        %v895 = vsub.s32 3, %v894
        %v896 = vrot.slane %v654, %v895
        %vm897 = vcmp.eq.s32.totalorder %v657, %v884
        %vm898 = vcmp.eq.s32.totalorder %v657, %v888
        %vm899 = vcmp.eq.s32.totalorder %v657, %v892
        %vm900 = vcmp.eq.s32.totalorder %v657, %v896
        %vm901 = vcmp.eq.s32.totalorder %v658, %v884
        %vm902 = vcmp.eq.s32.totalorder %v658, %v888
        %vm903 = vcmp.eq.s32.totalorder %v658, %v892
        %vm904 = vcmp.eq.s32.totalorder %v658, %v896
        %vm905 = vcmp.eq.s32.totalorder %v659, %v884
        %vm906 = vcmp.eq.s32.totalorder %v659, %v888
        %vm907 = vcmp.eq.s32.totalorder %v659, %v892
        %vm908 = vcmp.eq.s32.totalorder %v659, %v896
        %vm909 = vcmp.eq.s32.totalorder %v660, %v884
        %vm910 = vcmp.eq.s32.totalorder %v660, %v888
        %vm911 = vcmp.eq.s32.totalorder %v660, %v892
        %vm912 = vcmp.eq.s32.totalorder %v660, %v896
        %vm913 = vcmp.eq.s32.totalorder %v661, %v884
        %vm914 = vcmp.eq.s32.totalorder %v661, %v888
        %vm915 = vcmp.eq.s32.totalorder %v661, %v892
        %vm916 = vcmp.eq.s32.totalorder %v661, %v896
        %vm917 = vcmp.eq.s32.totalorder %v662, %v884
        %vm918 = vcmp.eq.s32.totalorder %v662, %v888
        %vm919 = vcmp.eq.s32.totalorder %v662, %v892
        %vm920 = vcmp.eq.s32.totalorder %v662, %v896
        %vm921 = vcmp.eq.s32.totalorder %v663, %v884
        %vm922 = vcmp.eq.s32.totalorder %v663, %v888
        %vm923 = vcmp.eq.s32.totalorder %v663, %v892
        %vm924 = vcmp.eq.s32.totalorder %v663, %v896
        %vm925 = vcmp.eq.s32.totalorder %v664, %v884
        %vm926 = vcmp.eq.s32.totalorder %v664, %v888
        %vm927 = vcmp.eq.s32.totalorder %v664, %v892
        %vm928 = vcmp.eq.s32.totalorder %v664, %v896
        %vm929 = vcmp.eq.s32.totalorder %v665, %v884
        %vm930 = vcmp.eq.s32.totalorder %v665, %v888
        %vm931 = vcmp.eq.s32.totalorder %v665, %v892
        %vm932 = vcmp.eq.s32.totalorder %v665, %v896
        %vm933 = vcmp.eq.s32.totalorder %v666, %v884
        %vm934 = vcmp.eq.s32.totalorder %v666, %v888
        %vm935 = vcmp.eq.s32.totalorder %v666, %v892
        %vm936 = vcmp.eq.s32.totalorder %v666, %v896
        %vm937 = vcmp.eq.s32.totalorder %v667, %v884
        %vm938 = vcmp.eq.s32.totalorder %v667, %v888
        %vm939 = vcmp.eq.s32.totalorder %v667, %v892
        %vm940 = vcmp.eq.s32.totalorder %v667, %v896
        %vm941 = vcmp.eq.s32.totalorder %v668, %v884
        %vm942 = vcmp.eq.s32.totalorder %v668, %v888
        %vm943 = vcmp.eq.s32.totalorder %v668, %v892
        %vm944 = vcmp.eq.s32.totalorder %v668, %v896
        %vm945 = vcmp.eq.s32.totalorder %v669, %v884
        %vm946 = vcmp.eq.s32.totalorder %v669, %v888
        %vm947 = vcmp.eq.s32.totalorder %v669, %v892
        %vm948 = vcmp.eq.s32.totalorder %v669, %v896
        %vm949 = vcmp.eq.s32.totalorder %v670, %v884
        %vm950 = vcmp.eq.s32.totalorder %v670, %v888
        %vm951 = vcmp.eq.s32.totalorder %v670, %v892
        %vm952 = vcmp.eq.s32.totalorder %v670, %v896
        %vm953 = vcmp.eq.s32.totalorder %v671, %v884
        %vm954 = vcmp.eq.s32.totalorder %v671, %v888
        %vm955 = vcmp.eq.s32.totalorder %v671, %v892
        %vm956 = vcmp.eq.s32.totalorder %v671, %v896
        %vm957 = vcmp.eq.s32.totalorder %v672, %v884
        %vm958 = vcmp.eq.s32.totalorder %v672, %v888
        %vm959 = vcmp.eq.s32.totalorder %v672, %v892
        %vm960 = vcmp.eq.s32.totalorder %v672, %v896
        %v961 = vsel %vm897, 1, 0
        %v962 = vsel %vm898, 1, 0
        %v963 = vsel %vm899, 1, 0
        %v964 = vsel %vm900, 1, 0
        %v965 = vsel %vm901, 1, 0
        %v966 = vsel %vm902, 1, 0
        %v967 = vsel %vm903, 1, 0
        %v968 = vsel %vm904, 1, 0
        %v969 = vsel %vm905, 1, 0
        %v970 = vsel %vm906, 1, 0
        %v971 = vsel %vm907, 1, 0
        %v972 = vsel %vm908, 1, 0
        %v973 = vsel %vm909, 1, 0
        %v974 = vsel %vm910, 1, 0
        %v975 = vsel %vm911, 1, 0
        %v976 = vsel %vm912, 1, 0
        %v977 = vsel %vm913, 1, 0
        %v978 = vsel %vm914, 1, 0
        %v979 = vsel %vm915, 1, 0
        %v980 = vsel %vm916, 1, 0
        %v981 = vsel %vm917, 1, 0
        %v982 = vsel %vm918, 1, 0
        %v983 = vsel %vm919, 1, 0
        %v984 = vsel %vm920, 1, 0
        %v985 = vsel %vm921, 1, 0
        %v986 = vsel %vm922, 1, 0
        %v987 = vsel %vm923, 1, 0
        %v988 = vsel %vm924, 1, 0
        %v989 = vsel %vm925, 1, 0
        %v990 = vsel %vm926, 1, 0
        %v991 = vsel %vm927, 1, 0
        %v992 = vsel %vm928, 1, 0
        %v993 = vsel %vm929, 1, 0
        %v994 = vsel %vm930, 1, 0
        %v995 = vsel %vm931, 1, 0
        %v996 = vsel %vm932, 1, 0
        %v997 = vsel %vm933, 1, 0
        %v998 = vsel %vm934, 1, 0
        %v999 = vsel %vm935, 1, 0
        %v1000 = vsel %vm936, 1, 0
        %v1001 = vsel %vm937, 1, 0
        %v1002 = vsel %vm938, 1, 0
        %v1003 = vsel %vm939, 1, 0
        %v1004 = vsel %vm940, 1, 0
        %v1005 = vsel %vm941, 1, 0
        %v1006 = vsel %vm942, 1, 0
        %v1007 = vsel %vm943, 1, 0
        %v1008 = vsel %vm944, 1, 0
        %v1009 = vsel %vm945, 1, 0
        %v1010 = vsel %vm946, 1, 0
        %v1011 = vsel %vm947, 1, 0
        %v1012 = vsel %vm948, 1, 0
        %v1013 = vsel %vm949, 1, 0
        %v1014 = vsel %vm950, 1, 0
        %v1015 = vsel %vm951, 1, 0
        %v1016 = vsel %vm952, 1, 0
        %v1017 = vsel %vm953, 1, 0
        %v1018 = vsel %vm954, 1, 0
        %v1019 = vsel %vm955, 1, 0
        %v1020 = vsel %vm956, 1, 0
        %v1021 = vsel %vm957, 1, 0
        %v1022 = vsel %vm958, 1, 0
        %v1023 = vsel %vm959, 1, 0
        %v1024 = vsel %vm960, 1, 0
        %v1025 = vcvt.s32.f32 %v961
        %v1026 = vcvt.s32.f32 %v962
        %v1027 = vcvt.s32.f32 %v963
        %v1028 = vcvt.s32.f32 %v964
        %v1029 = vcvt.s32.f32 %v965
        %v1030 = vcvt.s32.f32 %v966
        %v1031 = vcvt.s32.f32 %v967
        %v1032 = vcvt.s32.f32 %v968
        %v1033 = vcvt.s32.f32 %v969
        %v1034 = vcvt.s32.f32 %v970
        %v1035 = vcvt.s32.f32 %v971
        %v1036 = vcvt.s32.f32 %v972
        %v1037 = vcvt.s32.f32 %v973
        %v1038 = vcvt.s32.f32 %v974
        %v1039 = vcvt.s32.f32 %v975
        %v1040 = vcvt.s32.f32 %v976
        %v1041 = vcvt.s32.f32 %v977
        %v1042 = vcvt.s32.f32 %v978
        %v1043 = vcvt.s32.f32 %v979
        %v1044 = vcvt.s32.f32 %v980
        %v1045 = vcvt.s32.f32 %v981
        %v1046 = vcvt.s32.f32 %v982
        %v1047 = vcvt.s32.f32 %v983
        %v1048 = vcvt.s32.f32 %v984
        %v1049 = vcvt.s32.f32 %v985
        %v1050 = vcvt.s32.f32 %v986
        %v1051 = vcvt.s32.f32 %v987
        %v1052 = vcvt.s32.f32 %v988
        %v1053 = vcvt.s32.f32 %v989
        %v1054 = vcvt.s32.f32 %v990
        %v1055 = vcvt.s32.f32 %v991
        %v1056 = vcvt.s32.f32 %v992
        %v1057 = vcvt.s32.f32 %v993
        %v1058 = vcvt.s32.f32 %v994
        %v1059 = vcvt.s32.f32 %v995
        %v1060 = vcvt.s32.f32 %v996
        %v1061 = vcvt.s32.f32 %v997
        %v1062 = vcvt.s32.f32 %v998
        %v1063 = vcvt.s32.f32 %v999
        %v1064 = vcvt.s32.f32 %v1000
        %v1065 = vcvt.s32.f32 %v1001
        %v1066 = vcvt.s32.f32 %v1002
        %v1067 = vcvt.s32.f32 %v1003
        %v1068 = vcvt.s32.f32 %v1004
        %v1069 = vcvt.s32.f32 %v1005
        %v1070 = vcvt.s32.f32 %v1006
        %v1071 = vcvt.s32.f32 %v1007
        %v1072 = vcvt.s32.f32 %v1008
        %v1073 = vcvt.s32.f32 %v1009
        %v1074 = vcvt.s32.f32 %v1010
        %v1075 = vcvt.s32.f32 %v1011
        %v1076 = vcvt.s32.f32 %v1012
        %v1077 = vcvt.s32.f32 %v1013
        %v1078 = vcvt.s32.f32 %v1014
        %v1079 = vcvt.s32.f32 %v1015
        %v1080 = vcvt.s32.f32 %v1016
        %v1081 = vcvt.s32.f32 %v1017
        %v1082 = vcvt.s32.f32 %v1018
        %v1083 = vcvt.s32.f32 %v1019
        %v1084 = vcvt.s32.f32 %v1020
        %v1085 = vcvt.s32.f32 %v1021
        %v1086 = vcvt.s32.f32 %v1022
        %v1087 = vcvt.s32.f32 %v1023
        %v1088 = vcvt.s32.f32 %v1024
        %v1089 = vld [vmem:[#allocation2] sm:$0x7]
        %v1090 = vpack.c.bf16 %v1089, %v1089
        %v1091 = vunpack.c.l.bf16 %v1090
        %v1092 = vsub.f32 %v1089, %v1091
        %1093 = vmatprep.subr.mxu0 %v818
        %1094 = vmatpush1.msra.mxu0 %v817
        %1095 = vmatprep.subr.mxu0 %v822
        %1096 = vmatpush1.msra.mxu0 %v821
        %1097 = vmatprep.subr.mxu0 %v826
        %1098 = vmatpush1.msra.mxu0 %v825
        %1099 = vmatprep.subr.mxu0 %v830
        %1100 = vmatpush1.msra.mxu0 %v829
        %1101 = vmatprep.subr.mxu0 %v834
        %1102 = vmatpush1.msra.mxu0 %v833
        %1103 = vmatprep.subr.mxu0 %v838
        %1104 = vmatpush1.msra.mxu0 %v837
        %1105 = vmatprep.subr.mxu0 %v842
        %1106 = vmatpush1.msra.mxu0 %v841
        %1107 = vmatprep.subr.mxu0 %v846
        %1108 = vmatpush1.msra.mxu0 %v845
        %1109 = vmatprep.subr.mxu0 %v850
        %1110 = vmatpush1.msra.mxu0 %v849
        %1111 = vmatprep.subr.mxu0 %v854
        %1112 = vmatpush1.msra.mxu0 %v853
        %1113 = vmatprep.subr.mxu0 %v858
        %1114 = vmatpush1.msra.mxu0 %v857
        %1115 = vmatprep.subr.mxu0 %v862
        %1116 = vmatpush1.msra.mxu0 %v861
        %1117 = vmatprep.subr.mxu0 %v866
        %1118 = vmatpush1.msra.mxu0 %v865
        %1119 = vmatprep.subr.mxu0 %v870
        %1120 = vmatpush1.msra.mxu0 %v869
        %1121 = vmatprep.subr.mxu0 %v874
        %1122 = vmatpush1.msra.mxu0 %v873
        %1123 = vmatprep.subr.mxu0 %v878
        %1124 = vmatpush1.msra.mxu0 %v877
        %1125 = vmatprep.subr.mxu0 0.0
        %1126 = vmatpush1.msra.mxu0 0.0
        %1127 = vmatprep.subr.mxu0 0.0
        %1128 = vmatpush1.msra.mxu0 0.0
        %1129 = vmatprep.subr.mxu0 0.0
        %1130 = vmatpush1.msra.mxu0 0.0
        %1131 = vmatprep.subr.mxu0 0.0
        %1132 = vmatpush1.msra.mxu0 0.0
        %1133 = vmatprep.subr.mxu0 0.0
        %1134 = vmatpush1.msra.mxu0 0.0
        %1135 = vmatprep.subr.mxu0 0.0
        %1136 = vmatpush1.msra.mxu0 0.0
        %1137 = vmatprep.subr.mxu0 0.0
        %1138 = vmatpush1.msra.mxu0 0.0
        %1139 = vmatprep.subr.mxu0 0.0
        %1140 = vmatpush1.msra.mxu0 0.0
        %1141 = vmatprep.subr.mxu0 0.0
        %1142 = vmatpush1.msra.mxu0 0.0
        %1143 = vmatprep.subr.mxu0 0.0
        %1144 = vmatpush1.msra.mxu0 0.0
        %1145 = vmatprep.subr.mxu0 0.0
        %1146 = vmatpush1.msra.mxu0 0.0
        %1147 = vmatprep.subr.mxu0 0.0
        %1148 = vmatpush1.msra.mxu0 0.0
        %1149 = vmatprep.subr.mxu0 0.0
        %1150 = vmatpush1.msra.mxu0 0.0
        %1151 = vmatprep.subr.mxu0 0.0
        %1152 = vmatpush1.msra.mxu0 0.0
        %1153 = vmatprep.subr.mxu0 0.0
        %1154 = vmatpush1.msra.mxu0 0.0
        %1155 = vmatprep.subr.mxu0 0.0
        %1156 = vmatpush1.msra.mxu0 0.0
        %1157 = vmatprep.mubr.f32.mxu0 0.0
        %1158 = vmatmul.mubr.f32.gmra.mrb[0].mxu0 %v1092
        %v1159 = vpop.f32.mrb[0].mxu0
        %v1160 = vadd.f32 0.0, %v1159
        %v1161 = vpop.f32.mrb[0].mxu0
        %v1162 = vadd.f32 0.0, %v1161
        %1163 = vdwg.mxu0
        %1164 = vmatprep.subr.mxu0 %v820
        %1165 = vmatpush1.msra.mxu0 %v819
        %1166 = vmatprep.subr.mxu0 %v824
        %1167 = vmatpush1.msra.mxu0 %v823
        %1168 = vmatprep.subr.mxu0 %v828
        %1169 = vmatpush1.msra.mxu0 %v827
        %1170 = vmatprep.subr.mxu0 %v832
        %1171 = vmatpush1.msra.mxu0 %v831
        %1172 = vmatprep.subr.mxu0 %v836
        %1173 = vmatpush1.msra.mxu0 %v835
        %1174 = vmatprep.subr.mxu0 %v840
        %1175 = vmatpush1.msra.mxu0 %v839
        %1176 = vmatprep.subr.mxu0 %v844
        %1177 = vmatpush1.msra.mxu0 %v843
        %1178 = vmatprep.subr.mxu0 %v848
        %1179 = vmatpush1.msra.mxu0 %v847
        %1180 = vmatprep.subr.mxu0 %v852
        %1181 = vmatpush1.msra.mxu0 %v851
        %1182 = vmatprep.subr.mxu0 %v856
        %1183 = vmatpush1.msra.mxu0 %v855
        %1184 = vmatprep.subr.mxu0 %v860
        %1185 = vmatpush1.msra.mxu0 %v859
        %1186 = vmatprep.subr.mxu0 %v864
        %1187 = vmatpush1.msra.mxu0 %v863
        %1188 = vmatprep.subr.mxu0 %v868
        %1189 = vmatpush1.msra.mxu0 %v867
        %1190 = vmatprep.subr.mxu0 %v872
        %1191 = vmatpush1.msra.mxu0 %v871
        %1192 = vmatprep.subr.mxu0 %v876
        %1193 = vmatpush1.msra.mxu0 %v875
        %1194 = vmatprep.subr.mxu0 %v880
        %1195 = vmatpush1.msra.mxu0 %v879
        %1196 = vmatprep.subr.mxu0 0.0
        %1197 = vmatpush1.msra.mxu0 0.0
        %1198 = vmatprep.subr.mxu0 0.0
        %1199 = vmatpush1.msra.mxu0 0.0
        %1200 = vmatprep.subr.mxu0 0.0
        %1201 = vmatpush1.msra.mxu0 0.0
        %1202 = vmatprep.subr.mxu0 0.0
        %1203 = vmatpush1.msra.mxu0 0.0
        %1204 = vmatprep.subr.mxu0 0.0
        %1205 = vmatpush1.msra.mxu0 0.0
        %1206 = vmatprep.subr.mxu0 0.0
        %1207 = vmatpush1.msra.mxu0 0.0
        %1208 = vmatprep.subr.mxu0 0.0
        %1209 = vmatpush1.msra.mxu0 0.0
        %1210 = vmatprep.subr.mxu0 0.0
        %1211 = vmatpush1.msra.mxu0 0.0
        %1212 = vmatprep.subr.mxu0 0.0
        %1213 = vmatpush1.msra.mxu0 0.0
        %1214 = vmatprep.subr.mxu0 0.0
        %1215 = vmatpush1.msra.mxu0 0.0
        %1216 = vmatprep.subr.mxu0 0.0
        %1217 = vmatpush1.msra.mxu0 0.0
        %1218 = vmatprep.subr.mxu0 0.0
        %1219 = vmatpush1.msra.mxu0 0.0
        %1220 = vmatprep.subr.mxu0 0.0
        %1221 = vmatpush1.msra.mxu0 0.0
        %1222 = vmatprep.subr.mxu0 0.0
        %1223 = vmatpush1.msra.mxu0 0.0
        %1224 = vmatprep.subr.mxu0 0.0
        %1225 = vmatpush1.msra.mxu0 0.0
        %1226 = vmatprep.subr.mxu0 0.0
        %1227 = vmatpush1.msra.mxu0 0.0
        %1228 = vmatprep.mubr.f32.mxu0 0.0
        %1229 = vmatmul.mubr.f32.gmra.mrb[0].mxu0 %v1092
        %v1230 = vpop.f32.mrb[0].mxu0
        %v1231 = vadd.f32 0.0, %v1230
        %v1232 = vpop.f32.mrb[0].mxu0
        %v1233 = vadd.f32 0.0, %v1232
        %1234 = vdwg.mxu0
        %1235 = vmatprep.subr.mxu0 %v818
        %1236 = vmatpush1.msra.mxu0 %v817
        %1237 = vmatprep.subr.mxu0 %v822
        %1238 = vmatpush1.msra.mxu0 %v821
        %1239 = vmatprep.subr.mxu0 %v826
        %1240 = vmatpush1.msra.mxu0 %v825
        %1241 = vmatprep.subr.mxu0 %v830
        %1242 = vmatpush1.msra.mxu0 %v829
        %1243 = vmatprep.subr.mxu0 %v834
        %1244 = vmatpush1.msra.mxu0 %v833
        %1245 = vmatprep.subr.mxu0 %v838
        %1246 = vmatpush1.msra.mxu0 %v837
        %1247 = vmatprep.subr.mxu0 %v842
        %1248 = vmatpush1.msra.mxu0 %v841
        %1249 = vmatprep.subr.mxu0 %v846
        %1250 = vmatpush1.msra.mxu0 %v845
        %1251 = vmatprep.subr.mxu0 %v850
        %1252 = vmatpush1.msra.mxu0 %v849
        %1253 = vmatprep.subr.mxu0 %v854
        %1254 = vmatpush1.msra.mxu0 %v853
        %1255 = vmatprep.subr.mxu0 %v858
        %1256 = vmatpush1.msra.mxu0 %v857
        %1257 = vmatprep.subr.mxu0 %v862
        %1258 = vmatpush1.msra.mxu0 %v861
        %1259 = vmatprep.subr.mxu0 %v866
        %1260 = vmatpush1.msra.mxu0 %v865
        %1261 = vmatprep.subr.mxu0 %v870
        %1262 = vmatpush1.msra.mxu0 %v869
        %1263 = vmatprep.subr.mxu0 %v874
        %1264 = vmatpush1.msra.mxu0 %v873
        %1265 = vmatprep.subr.mxu0 %v878
        %1266 = vmatpush1.msra.mxu0 %v877
        %1267 = vmatprep.subr.mxu0 0.0
        %1268 = vmatpush1.msra.mxu0 0.0
        %1269 = vmatprep.subr.mxu0 0.0
        %1270 = vmatpush1.msra.mxu0 0.0
        %1271 = vmatprep.subr.mxu0 0.0
        %1272 = vmatpush1.msra.mxu0 0.0
        %1273 = vmatprep.subr.mxu0 0.0
        %1274 = vmatpush1.msra.mxu0 0.0
        %1275 = vmatprep.subr.mxu0 0.0
        %1276 = vmatpush1.msra.mxu0 0.0
        %1277 = vmatprep.subr.mxu0 0.0
        %1278 = vmatpush1.msra.mxu0 0.0
        %1279 = vmatprep.subr.mxu0 0.0
        %1280 = vmatpush1.msra.mxu0 0.0
        %1281 = vmatprep.subr.mxu0 0.0
        %1282 = vmatpush1.msra.mxu0 0.0
        %1283 = vmatprep.subr.mxu0 0.0
        %1284 = vmatpush1.msra.mxu0 0.0
        %1285 = vmatprep.subr.mxu0 0.0
        %1286 = vmatpush1.msra.mxu0 0.0
        %1287 = vmatprep.subr.mxu0 0.0
        %1288 = vmatpush1.msra.mxu0 0.0
        %1289 = vmatprep.subr.mxu0 0.0
        %1290 = vmatpush1.msra.mxu0 0.0
        %1291 = vmatprep.subr.mxu0 0.0
        %1292 = vmatpush1.msra.mxu0 0.0
        %1293 = vmatprep.subr.mxu0 0.0
        %1294 = vmatpush1.msra.mxu0 0.0
        %1295 = vmatprep.subr.mxu0 0.0
        %1296 = vmatpush1.msra.mxu0 0.0
        %1297 = vmatprep.subr.mxu0 0.0
        %1298 = vmatpush1.msra.mxu0 0.0
        %1299 = vmatprep.mubr.f32.mxu0 0.0
        %1300 = vmatmul.mubr.f32.gmra.mrb[0].mxu0 %v1091
        %v1301 = vpop.f32.mrb[0].mxu0
        %v1302 = vadd.f32 %v1160, %v1301
        %v1303 = vpop.f32.mrb[0].mxu0
        %v1304 = vadd.f32 %v1162, %v1303
        %1305 = vdwg.mxu0
        %1306 = vmatprep.subr.mxu0 %v820
        %1307 = vmatpush1.msra.mxu0 %v819
        %1308 = vmatprep.subr.mxu0 %v824
        %1309 = vmatpush1.msra.mxu0 %v823
        %1310 = vmatprep.subr.mxu0 %v828
        %1311 = vmatpush1.msra.mxu0 %v827
        %1312 = vmatprep.subr.mxu0 %v832
        %1313 = vmatpush1.msra.mxu0 %v831
        %1314 = vmatprep.subr.mxu0 %v836
        %1315 = vmatpush1.msra.mxu0 %v835
        %1316 = vmatprep.subr.mxu0 %v840
        %1317 = vmatpush1.msra.mxu0 %v839
        %1318 = vmatprep.subr.mxu0 %v844
        %1319 = vmatpush1.msra.mxu0 %v843
        %1320 = vmatprep.subr.mxu0 %v848
        %1321 = vmatpush1.msra.mxu0 %v847
        %1322 = vmatprep.subr.mxu0 %v852
        %1323 = vmatpush1.msra.mxu0 %v851
        %1324 = vmatprep.subr.mxu0 %v856
        %1325 = vmatpush1.msra.mxu0 %v855
        %1326 = vmatprep.subr.mxu0 %v860
        %1327 = vmatpush1.msra.mxu0 %v859
        %1328 = vmatprep.subr.mxu0 %v864
        %1329 = vmatpush1.msra.mxu0 %v863
        %1330 = vmatprep.subr.mxu0 %v868
        %1331 = vmatpush1.msra.mxu0 %v867
        %1332 = vmatprep.subr.mxu0 %v872
        %1333 = vmatpush1.msra.mxu0 %v871
        %1334 = vmatprep.subr.mxu0 %v876
        %1335 = vmatpush1.msra.mxu0 %v875
        %1336 = vmatprep.subr.mxu0 %v880
        %1337 = vmatpush1.msra.mxu0 %v879
        %1338 = vmatprep.subr.mxu0 0.0
        %1339 = vmatpush1.msra.mxu0 0.0
        %1340 = vmatprep.subr.mxu0 0.0
        %1341 = vmatpush1.msra.mxu0 0.0
        %1342 = vmatprep.subr.mxu0 0.0
        %1343 = vmatpush1.msra.mxu0 0.0
        %1344 = vmatprep.subr.mxu0 0.0
        %1345 = vmatpush1.msra.mxu0 0.0
        %1346 = vmatprep.subr.mxu0 0.0
        %1347 = vmatpush1.msra.mxu0 0.0
        %1348 = vmatprep.subr.mxu0 0.0
        %1349 = vmatpush1.msra.mxu0 0.0
        %1350 = vmatprep.subr.mxu0 0.0
        %1351 = vmatpush1.msra.mxu0 0.0
        %1352 = vmatprep.subr.mxu0 0.0
        %1353 = vmatpush1.msra.mxu0 0.0
        %1354 = vmatprep.subr.mxu0 0.0
        %1355 = vmatpush1.msra.mxu0 0.0
        %1356 = vmatprep.subr.mxu0 0.0
        %1357 = vmatpush1.msra.mxu0 0.0
        %1358 = vmatprep.subr.mxu0 0.0
        %1359 = vmatpush1.msra.mxu0 0.0
        %1360 = vmatprep.subr.mxu0 0.0
        %1361 = vmatpush1.msra.mxu0 0.0
        %1362 = vmatprep.subr.mxu0 0.0
        %1363 = vmatpush1.msra.mxu0 0.0
        %1364 = vmatprep.subr.mxu0 0.0
        %1365 = vmatpush1.msra.mxu0 0.0
        %1366 = vmatprep.subr.mxu0 0.0
        %1367 = vmatpush1.msra.mxu0 0.0
        %1368 = vmatprep.subr.mxu0 0.0
        %1369 = vmatpush1.msra.mxu0 0.0
        %1370 = vmatprep.mubr.f32.mxu0 0.0
        %1371 = vmatmul.mubr.f32.gmra.mrb[0].mxu0 %v1091
        %v1372 = vpop.f32.mrb[0].mxu0
        %v1373 = vadd.f32 %v1231, %v1372
        %v1374 = vpop.f32.mrb[0].mxu0
        %v1375 = vadd.f32 %v1233, %v1374
        %1376 = vdwg.mxu0
        %1377 = vmatprep.subr.mxu0 %v1026
        %1378 = vmatpush1.msra.mxu0 %v1025
        %1379 = vmatprep.subr.mxu0 %v1030
        %1380 = vmatpush1.msra.mxu0 %v1029
        %1381 = vmatprep.subr.mxu0 %v1034
        %1382 = vmatpush1.msra.mxu0 %v1033
        %1383 = vmatprep.subr.mxu0 %v1038
        %1384 = vmatpush1.msra.mxu0 %v1037
        %1385 = vmatprep.subr.mxu0 %v1042
        %1386 = vmatpush1.msra.mxu0 %v1041
        %1387 = vmatprep.subr.mxu0 %v1046
        %1388 = vmatpush1.msra.mxu0 %v1045
        %1389 = vmatprep.subr.mxu0 %v1050
        %1390 = vmatpush1.msra.mxu0 %v1049
        %1391 = vmatprep.subr.mxu0 %v1054
        %1392 = vmatpush1.msra.mxu0 %v1053
        %1393 = vmatprep.subr.mxu0 %v1058
        %1394 = vmatpush1.msra.mxu0 %v1057
        %1395 = vmatprep.subr.mxu0 %v1062
        %1396 = vmatpush1.msra.mxu0 %v1061
        %1397 = vmatprep.subr.mxu0 %v1066
        %1398 = vmatpush1.msra.mxu0 %v1065
        %1399 = vmatprep.subr.mxu0 %v1070
        %1400 = vmatpush1.msra.mxu0 %v1069
        %1401 = vmatprep.subr.mxu0 %v1074
        %1402 = vmatpush1.msra.mxu0 %v1073
        %1403 = vmatprep.subr.mxu0 %v1078
        %1404 = vmatpush1.msra.mxu0 %v1077
        %1405 = vmatprep.subr.mxu0 %v1082
        %1406 = vmatpush1.msra.mxu0 %v1081
        %1407 = vmatprep.subr.mxu0 %v1086
        %1408 = vmatpush1.msra.mxu0 %v1085
        %1409 = vmatprep.subr.mxu0 0.0
        %1410 = vmatpush1.msra.mxu0 0.0
        %1411 = vmatprep.subr.mxu0 0.0
        %1412 = vmatpush1.msra.mxu0 0.0
        %1413 = vmatprep.subr.mxu0 0.0
        %1414 = vmatpush1.msra.mxu0 0.0
        %1415 = vmatprep.subr.mxu0 0.0
        %1416 = vmatpush1.msra.mxu0 0.0
        %1417 = vmatprep.subr.mxu0 0.0
        %1418 = vmatpush1.msra.mxu0 0.0
        %1419 = vmatprep.subr.mxu0 0.0
        %1420 = vmatpush1.msra.mxu0 0.0
        %1421 = vmatprep.subr.mxu0 0.0
        %1422 = vmatpush1.msra.mxu0 0.0
        %1423 = vmatprep.subr.mxu0 0.0
        %1424 = vmatpush1.msra.mxu0 0.0
        %1425 = vmatprep.subr.mxu0 0.0
        %1426 = vmatpush1.msra.mxu0 0.0
        %1427 = vmatprep.subr.mxu0 0.0
        %1428 = vmatpush1.msra.mxu0 0.0
        %1429 = vmatprep.subr.mxu0 0.0
        %1430 = vmatpush1.msra.mxu0 0.0
        %1431 = vmatprep.subr.mxu0 0.0
        %1432 = vmatpush1.msra.mxu0 0.0
        %1433 = vmatprep.subr.mxu0 0.0
        %1434 = vmatpush1.msra.mxu0 0.0
        %1435 = vmatprep.subr.mxu0 0.0
        %1436 = vmatpush1.msra.mxu0 0.0
        %1437 = vmatprep.subr.mxu0 0.0
        %1438 = vmatpush1.msra.mxu0 0.0
        %1439 = vmatprep.subr.mxu0 0.0
        %1440 = vmatpush1.msra.mxu0 0.0
        %1441 = vmatprep.mubr.f32.mxu0 0.0
        %1442 = vmatmul.mubr.f32.gmra.mrb[0].mxu0 %v1092
        %v1443 = vpop.f32.mrb[0].mxu0
        %v1444 = vadd.f32 0.0, %v1443
        %v1445 = vpop.f32.mrb[0].mxu0
        %v1446 = vadd.f32 0.0, %v1445
        %1447 = vdwg.mxu0
        %1448 = vmatprep.subr.mxu0 %v1028
        %1449 = vmatpush1.msra.mxu0 %v1027
        %1450 = vmatprep.subr.mxu0 %v1032
        %1451 = vmatpush1.msra.mxu0 %v1031
        %1452 = vmatprep.subr.mxu0 %v1036
        %1453 = vmatpush1.msra.mxu0 %v1035
        %1454 = vmatprep.subr.mxu0 %v1040
        %1455 = vmatpush1.msra.mxu0 %v1039
        %1456 = vmatprep.subr.mxu0 %v1044
        %1457 = vmatpush1.msra.mxu0 %v1043
        %1458 = vmatprep.subr.mxu0 %v1048
        %1459 = vmatpush1.msra.mxu0 %v1047
        %1460 = vmatprep.subr.mxu0 %v1052
        %1461 = vmatpush1.msra.mxu0 %v1051
        %1462 = vmatprep.subr.mxu0 %v1056
        %1463 = vmatpush1.msra.mxu0 %v1055
        %1464 = vmatprep.subr.mxu0 %v1060
        %1465 = vmatpush1.msra.mxu0 %v1059
        %1466 = vmatprep.subr.mxu0 %v1064
        %1467 = vmatpush1.msra.mxu0 %v1063
        %1468 = vmatprep.subr.mxu0 %v1068
        %1469 = vmatpush1.msra.mxu0 %v1067
        %1470 = vmatprep.subr.mxu0 %v1072
        %1471 = vmatpush1.msra.mxu0 %v1071
        %1472 = vmatprep.subr.mxu0 %v1076
        %1473 = vmatpush1.msra.mxu0 %v1075
        %1474 = vmatprep.subr.mxu0 %v1080
        %1475 = vmatpush1.msra.mxu0 %v1079
        %1476 = vmatprep.subr.mxu0 %v1084
        %1477 = vmatpush1.msra.mxu0 %v1083
        %1478 = vmatprep.subr.mxu0 %v1088
        %1479 = vmatpush1.msra.mxu0 %v1087
        %1480 = vmatprep.subr.mxu0 0.0
        %1481 = vmatpush1.msra.mxu0 0.0
        %1482 = vmatprep.subr.mxu0 0.0
        %1483 = vmatpush1.msra.mxu0 0.0
        %1484 = vmatprep.subr.mxu0 0.0
        %1485 = vmatpush1.msra.mxu0 0.0
        %1486 = vmatprep.subr.mxu0 0.0
        %1487 = vmatpush1.msra.mxu0 0.0
        %1488 = vmatprep.subr.mxu0 0.0
        %1489 = vmatpush1.msra.mxu0 0.0
        %1490 = vmatprep.subr.mxu0 0.0
        %1491 = vmatpush1.msra.mxu0 0.0
        %1492 = vmatprep.subr.mxu0 0.0
        %1493 = vmatpush1.msra.mxu0 0.0
        %1494 = vmatprep.subr.mxu0 0.0
        %1495 = vmatpush1.msra.mxu0 0.0
        %1496 = vmatprep.subr.mxu0 0.0
        %1497 = vmatpush1.msra.mxu0 0.0
        %1498 = vmatprep.subr.mxu0 0.0
        %1499 = vmatpush1.msra.mxu0 0.0
        %1500 = vmatprep.subr.mxu0 0.0
        %1501 = vmatpush1.msra.mxu0 0.0
        %1502 = vmatprep.subr.mxu0 0.0
        %1503 = vmatpush1.msra.mxu0 0.0
        %1504 = vmatprep.subr.mxu0 0.0
        %1505 = vmatpush1.msra.mxu0 0.0
        %1506 = vmatprep.subr.mxu0 0.0
        %1507 = vmatpush1.msra.mxu0 0.0
        %1508 = vmatprep.subr.mxu0 0.0
        %1509 = vmatpush1.msra.mxu0 0.0
        %1510 = vmatprep.subr.mxu0 0.0
        %1511 = vmatpush1.msra.mxu0 0.0
        %1512 = vmatprep.mubr.f32.mxu0 0.0
        %1513 = vmatmul.mubr.f32.gmra.mrb[0].mxu0 %v1092
        %v1514 = vpop.f32.mrb[0].mxu0
        %v1515 = vadd.f32 0.0, %v1514
        %v1516 = vpop.f32.mrb[0].mxu0
        %v1517 = vadd.f32 0.0, %v1516
        %1518 = vdwg.mxu0
        %1519 = vmatprep.subr.mxu0 %v1026
        %1520 = vmatpush1.msra.mxu0 %v1025
        %1521 = vmatprep.subr.mxu0 %v1030
        %1522 = vmatpush1.msra.mxu0 %v1029
        %1523 = vmatprep.subr.mxu0 %v1034
        %1524 = vmatpush1.msra.mxu0 %v1033
        %1525 = vmatprep.subr.mxu0 %v1038
        %1526 = vmatpush1.msra.mxu0 %v1037
        %1527 = vmatprep.subr.mxu0 %v1042
        %1528 = vmatpush1.msra.mxu0 %v1041
        %1529 = vmatprep.subr.mxu0 %v1046
        %1530 = vmatpush1.msra.mxu0 %v1045
        %1531 = vmatprep.subr.mxu0 %v1050
        %1532 = vmatpush1.msra.mxu0 %v1049
        %1533 = vmatprep.subr.mxu0 %v1054
        %1534 = vmatpush1.msra.mxu0 %v1053
        %1535 = vmatprep.subr.mxu0 %v1058
        %1536 = vmatpush1.msra.mxu0 %v1057
        %1537 = vmatprep.subr.mxu0 %v1062
        %1538 = vmatpush1.msra.mxu0 %v1061
        %1539 = vmatprep.subr.mxu0 %v1066
        %1540 = vmatpush1.msra.mxu0 %v1065
        %1541 = vmatprep.subr.mxu0 %v1070
        %1542 = vmatpush1.msra.mxu0 %v1069
        %1543 = vmatprep.subr.mxu0 %v1074
        %1544 = vmatpush1.msra.mxu0 %v1073
        %1545 = vmatprep.subr.mxu0 %v1078
        %1546 = vmatpush1.msra.mxu0 %v1077
        %1547 = vmatprep.subr.mxu0 %v1082
        %1548 = vmatpush1.msra.mxu0 %v1081
        %1549 = vmatprep.subr.mxu0 %v1086
        %1550 = vmatpush1.msra.mxu0 %v1085
        %1551 = vmatprep.subr.mxu0 0.0
        %1552 = vmatpush1.msra.mxu0 0.0
        %1553 = vmatprep.subr.mxu0 0.0
        %1554 = vmatpush1.msra.mxu0 0.0
        %1555 = vmatprep.subr.mxu0 0.0
        %1556 = vmatpush1.msra.mxu0 0.0
        %1557 = vmatprep.subr.mxu0 0.0
        %1558 = vmatpush1.msra.mxu0 0.0
        %1559 = vmatprep.subr.mxu0 0.0
        %1560 = vmatpush1.msra.mxu0 0.0
        %1561 = vmatprep.subr.mxu0 0.0
        %1562 = vmatpush1.msra.mxu0 0.0
        %1563 = vmatprep.subr.mxu0 0.0
        %1564 = vmatpush1.msra.mxu0 0.0
        %1565 = vmatprep.subr.mxu0 0.0
        %1566 = vmatpush1.msra.mxu0 0.0
        %1567 = vmatprep.subr.mxu0 0.0
        %1568 = vmatpush1.msra.mxu0 0.0
        %1569 = vmatprep.subr.mxu0 0.0
        %1570 = vmatpush1.msra.mxu0 0.0
        %1571 = vmatprep.subr.mxu0 0.0
        %1572 = vmatpush1.msra.mxu0 0.0
        %1573 = vmatprep.subr.mxu0 0.0
        %1574 = vmatpush1.msra.mxu0 0.0
        %1575 = vmatprep.subr.mxu0 0.0
        %1576 = vmatpush1.msra.mxu0 0.0
        %1577 = vmatprep.subr.mxu0 0.0
        %1578 = vmatpush1.msra.mxu0 0.0
        %1579 = vmatprep.subr.mxu0 0.0
        %1580 = vmatpush1.msra.mxu0 0.0
        %1581 = vmatprep.subr.mxu0 0.0
        %1582 = vmatpush1.msra.mxu0 0.0
        %1583 = vmatprep.mubr.f32.mxu0 0.0
        %1584 = vmatmul.mubr.f32.gmra.mrb[0].mxu0 %v1091
        %v1585 = vpop.f32.mrb[0].mxu0
        %v1586 = vadd.f32 %v1444, %v1585
        %v1587 = vpop.f32.mrb[0].mxu0
        %v1588 = vadd.f32 %v1446, %v1587
        %1589 = vdwg.mxu0
        %1590 = vmatprep.subr.mxu0 %v1028
        %1591 = vmatpush1.msra.mxu0 %v1027
        %1592 = vmatprep.subr.mxu0 %v1032
        %1593 = vmatpush1.msra.mxu0 %v1031
        %1594 = vmatprep.subr.mxu0 %v1036
        %1595 = vmatpush1.msra.mxu0 %v1035
        %1596 = vmatprep.subr.mxu0 %v1040
        %1597 = vmatpush1.msra.mxu0 %v1039
        %1598 = vmatprep.subr.mxu0 %v1044
        %1599 = vmatpush1.msra.mxu0 %v1043
        %1600 = vmatprep.subr.mxu0 %v1048
        %1601 = vmatpush1.msra.mxu0 %v1047
        %1602 = vmatprep.subr.mxu0 %v1052
        %1603 = vmatpush1.msra.mxu0 %v1051
        %1604 = vmatprep.subr.mxu0 %v1056
        %1605 = vmatpush1.msra.mxu0 %v1055
        %1606 = vmatprep.subr.mxu0 %v1060
        %1607 = vmatpush1.msra.mxu0 %v1059
        %1608 = vmatprep.subr.mxu0 %v1064
        %1609 = vmatpush1.msra.mxu0 %v1063
        %1610 = vmatprep.subr.mxu0 %v1068
        %1611 = vmatpush1.msra.mxu0 %v1067
        %1612 = vmatprep.subr.mxu0 %v1072
        %1613 = vmatpush1.msra.mxu0 %v1071
        %1614 = vmatprep.subr.mxu0 %v1076
        %1615 = vmatpush1.msra.mxu0 %v1075
        %1616 = vmatprep.subr.mxu0 %v1080
        %1617 = vmatpush1.msra.mxu0 %v1079
        %1618 = vmatprep.subr.mxu0 %v1084
        %1619 = vmatpush1.msra.mxu0 %v1083
        %1620 = vmatprep.subr.mxu0 %v1088
        %1621 = vmatpush1.msra.mxu0 %v1087
        %1622 = vmatprep.subr.mxu0 0.0
        %1623 = vmatpush1.msra.mxu0 0.0
        %1624 = vmatprep.subr.mxu0 0.0
        %1625 = vmatpush1.msra.mxu0 0.0
        %1626 = vmatprep.subr.mxu0 0.0
        %1627 = vmatpush1.msra.mxu0 0.0
        %1628 = vmatprep.subr.mxu0 0.0
        %1629 = vmatpush1.msra.mxu0 0.0
        %1630 = vmatprep.subr.mxu0 0.0
        %1631 = vmatpush1.msra.mxu0 0.0
        %1632 = vmatprep.subr.mxu0 0.0
        %1633 = vmatpush1.msra.mxu0 0.0
        %1634 = vmatprep.subr.mxu0 0.0
        %1635 = vmatpush1.msra.mxu0 0.0
        %1636 = vmatprep.subr.mxu0 0.0
        %1637 = vmatpush1.msra.mxu0 0.0
        %1638 = vmatprep.subr.mxu0 0.0
        %1639 = vmatpush1.msra.mxu0 0.0
        %1640 = vmatprep.subr.mxu0 0.0
        %1641 = vmatpush1.msra.mxu0 0.0
        %1642 = vmatprep.subr.mxu0 0.0
        %1643 = vmatpush1.msra.mxu0 0.0
        %1644 = vmatprep.subr.mxu0 0.0
        %1645 = vmatpush1.msra.mxu0 0.0
        %1646 = vmatprep.subr.mxu0 0.0
        %1647 = vmatpush1.msra.mxu0 0.0
        %1648 = vmatprep.subr.mxu0 0.0
        %1649 = vmatpush1.msra.mxu0 0.0
        %1650 = vmatprep.subr.mxu0 0.0
        %1651 = vmatpush1.msra.mxu0 0.0
        %1652 = vmatprep.subr.mxu0 0.0
        %1653 = vmatpush1.msra.mxu0 0.0
        %1654 = vmatprep.mubr.f32.mxu0 0.0
        %1655 = vmatmul.mubr.f32.gmra.mrb[0].mxu0 %v1091
        %v1656 = vpop.f32.mrb[0].mxu0
        %v1657 = vadd.f32 %v1515, %v1656
        %v1658 = vpop.f32.mrb[0].mxu0
        %v1659 = vadd.f32 %v1517, %v1658
        %1660 = vdwg.mxu0
        %v1661 = vsub.f32 %v1586, %v1302
        %v1662 = vsub.f32 %v1588, %v1304
        %v1663 = vsub.f32 %v1657, %v1373
        %v1664 = vsub.f32 %v1659, %v1375
        %v1665 = vmul.f32 %v1661, %v1661
        %v1666 = vmul.f32 %v1662, %v1662
        %v1667 = vmul.f32 %v1663, %v1663
        %v1668 = vmul.f32 %v1664, %v1664
        %v1673 = vrot.slane %v1665, 1
        %v1674 = vrot.slane %v1666, 1
        %v1675 = vrot.slane %v1667, 1
        %v1676 = vrot.slane %v1668, 1
        %v1681 = vadd.f32 %v1665, %v1673
        %v1682 = vadd.f32 %v1666, %v1674
        %v1683 = vadd.f32 %v1667, %v1675
        %v1684 = vadd.f32 %v1668, %v1676
        %v1685 = vrot.slane %v1665, 2
        %v1686 = vrot.slane %v1666, 2
        %v1687 = vrot.slane %v1667, 2
        %v1688 = vrot.slane %v1668, 2
        %v1693 = vadd.f32 %v1681, %v1685
        %v1694 = vadd.f32 %v1682, %v1686
        %v1695 = vadd.f32 %v1683, %v1687
        %v1696 = vadd.f32 %v1684, %v1688
        %v1697 = vadd.f32 %v1693, 1e-12
        %v1698 = vadd.f32 %v1694, 1e-12
        %v1699 = vadd.f32 %v1695, 1e-12
        %v1700 = vadd.f32 %v1696, 1e-12
        %v1701 = vrsqrt.pop %v1697
        %v1702 = vrsqrt.pop %v1698
        %v1703 = vrsqrt.pop %v1699
        %v1704 = vrsqrt.pop %v1700
        %v1705 = vmul.f32 %v1697, %v1701
        %v1706 = vmul.f32 %v1698, %v1702
        %v1707 = vmul.f32 %v1699, %v1703
        %v1708 = vmul.f32 %v1700, %v1704
        %v1709 = vmul.f32 %v1705, 0.33333334
        %v1710 = vmul.f32 %v1706, 0.33333334
        %v1711 = vmul.f32 %v1707, 0.33333334
        %v1712 = vmul.f32 %v1708, 0.33333334
        %v1713 = vmul.f32 %v1709, %v1709
        %v1714 = vmul.f32 %v1710, %v1710
        %v1715 = vmul.f32 %v1711, %v1711
        %v1716 = vmul.f32 %v1712, %v1712
        %v1717 = vmul.f32 %v1713, %v1713
        %v1718 = vmul.f32 %v1714, %v1714
        %v1719 = vmul.f32 %v1715, %v1715
        %v1720 = vmul.f32 %v1716, %v1716
        %v1721 = vmul.f32 %v1717, %v1709
        %v1722 = vmul.f32 %v1718, %v1710
        %v1723 = vmul.f32 %v1719, %v1711
        %v1724 = vmul.f32 %v1720, %v1712
        %v1725 = vmul.f32 %v1709, 15.0
        %v1726 = vmul.f32 %v1710, 15.0
        %v1727 = vmul.f32 %v1711, 15.0
        %v1728 = vmul.f32 %v1712, 15.0
        %v1729 = vsub.f32 35.0, %v1725
        %v1730 = vsub.f32 35.0, %v1726
        %v1731 = vsub.f32 35.0, %v1727
        %v1732 = vsub.f32 35.0, %v1728
        %v1733 = vmul.f32 %v1709, %v1729
        %v1734 = vmul.f32 %v1710, %v1730
        %v1735 = vmul.f32 %v1711, %v1731
        %v1736 = vmul.f32 %v1712, %v1732
        %v1737 = vadd.f32 %v1733, -21.0
        %v1738 = vadd.f32 %v1734, -21.0
        %v1739 = vadd.f32 %v1735, -21.0
        %v1740 = vadd.f32 %v1736, -21.0
        %v1741 = vmul.f32 %v1721, %v1737
        %v1742 = vmul.f32 %v1722, %v1738
        %v1743 = vmul.f32 %v1723, %v1739
        %v1744 = vmul.f32 %v1724, %v1740
        %v1745 = vadd.f32 %v1741, 1.0
        %v1746 = vadd.f32 %v1742, 1.0
        %v1747 = vadd.f32 %v1743, 1.0
        %v1748 = vadd.f32 %v1744, 1.0
        %v1749 = vmul.f32 %v1709, 105.0
        %v1750 = vmul.f32 %v1710, 105.0
        %v1751 = vmul.f32 %v1711, 105.0
        %v1752 = vmul.f32 %v1712, 105.0
        %v1753 = vsub.f32 210.0, %v1749
        %v1754 = vsub.f32 210.0, %v1750
        %v1755 = vsub.f32 210.0, %v1751
        %v1756 = vsub.f32 210.0, %v1752
        %v1757 = vmul.f32 %v1709, %v1753
        %v1758 = vmul.f32 %v1710, %v1754
        %v1759 = vmul.f32 %v1711, %v1755
        %v1760 = vmul.f32 %v1712, %v1756
        %v1761 = vadd.f32 %v1757, -105.0
        %v1762 = vadd.f32 %v1758, -105.0
        %v1763 = vadd.f32 %v1759, -105.0
        %v1764 = vadd.f32 %v1760, -105.0
        %v1765 = vmul.f32 %v1717, %v1761
        %v1766 = vmul.f32 %v1718, %v1762
        %v1767 = vmul.f32 %v1719, %v1763
        %v1768 = vmul.f32 %v1720, %v1764
        %v1769 = vmul.f32 %v1765, 0.33333334
        %v1770 = vmul.f32 %v1766, 0.33333334
        %v1771 = vmul.f32 %v1767, 0.33333334
        %v1772 = vmul.f32 %v1768, 0.33333334
        %vm1773 = vcmp.lt.f32.partialorder %v1709, 1.0
        %vm1774 = vcmp.lt.f32.partialorder %v1710, 1.0
        %vm1775 = vcmp.lt.f32.partialorder %v1711, 1.0
        %vm1776 = vcmp.lt.f32.partialorder %v1712, 1.0
        %v1777 = vsel %vm1773, %v1745, 0.0
        %v1778 = vsel %vm1774, %v1746, 0.0
        %v1779 = vsel %vm1775, %v1747, 0.0
        %v1780 = vsel %vm1776, %v1748, 0.0
        %v1781 = vsel %vm1773, %v1769, 0.0
        %v1782 = vsel %vm1774, %v1770, 0.0
        %v1783 = vsel %vm1775, %v1771, 0.0
        %v1784 = vsel %vm1776, %v1772, 0.0
        %v1785 = vsub.f32 0.0, %v1705
        %v1786 = vsub.f32 0.0, %v1706
        %v1787 = vsub.f32 0.0, %v1707
        %v1788 = vsub.f32 0.0, %v1708
        %v1789 = vmul.f32 %v1785, 1.442695
        %v1790 = vpow.pop %v1789
        %v1791 = vmul.f32 %v1786, 1.442695
        %v1792 = vpow.pop %v1791
        %v1793 = vmul.f32 %v1787, 1.442695
        %v1794 = vpow.pop %v1793
        %v1795 = vmul.f32 %v1788, 1.442695
        %v1796 = vpow.pop %v1795
        %vm1797 = vcmp.lt.s32.totalorder %v655, 2
        %v1798 = vsel %vm1797, 1, 0
        %v1799 = vcvt.s32.f32 %v1798
        %v1800 = vmul.f32 %v1790, 0.5
        %v1801 = vmul.f32 %v1792, 0.5
        %v1802 = vmul.f32 %v1794, 0.5
        %v1803 = vmul.f32 %v1796, 0.5
        %v1804 = vmul.f32 %v1800, %v1777
        %v1805 = vmul.f32 %v1801, %v1778
        %v1806 = vmul.f32 %v1802, %v1779
        %v1807 = vmul.f32 %v1803, %v1780
        %v1809 = vlaneseq
        %v1810 = vshrl.u32 %v1809, 7
        %v1811 = vsub.s32 0, %v1810
        %v1812 = vrot.slane %v1799, %v1811
        %v1813 = vlaneseq
        %v1814 = vshrl.u32 %v1813, 7
        %v1815 = vsub.s32 1, %v1814
        %v1816 = vrot.slane %v1799, %v1815
        %v1817 = vlaneseq
        %v1818 = vshrl.u32 %v1817, 7
        %v1819 = vsub.s32 2, %v1818
        %v1820 = vrot.slane %v1799, %v1819
        %v1821 = vlaneseq
        %v1822 = vshrl.u32 %v1821, 7
        %v1823 = vsub.s32 3, %v1822
        %v1824 = vrot.slane %v1799, %v1823
        %v1829 = vmul.f32 %v1804, %v1812
        %v1830 = vmul.f32 %v1805, %v1816
        %v1831 = vmul.f32 %v1806, %v1820
        %v1832 = vmul.f32 %v1807, %v1824
        %v1833 = vsub.f32 %v1781, %v1777
        %v1834 = vsub.f32 %v1782, %v1778
        %v1835 = vsub.f32 %v1783, %v1779
        %v1836 = vsub.f32 %v1784, %v1780
        %v1837 = vmul.f32 %v1800, %v1833
        %v1838 = vmul.f32 %v1801, %v1834
        %v1839 = vmul.f32 %v1802, %v1835
        %v1840 = vmul.f32 %v1803, %v1836
        %v1841 = vmul.f32 %v1837, %v1701
        %v1842 = vmul.f32 %v1838, %v1702
        %v1843 = vmul.f32 %v1839, %v1703
        %v1844 = vmul.f32 %v1840, %v1704
        %v1845 = vsub.f32 0.0, %v1841
        %v1846 = vsub.f32 0.0, %v1842
        %v1847 = vsub.f32 0.0, %v1843
        %v1848 = vsub.f32 0.0, %v1844
        %v1849 = vmul.f32 %v1845, %v1812
        %v1850 = vmul.f32 %v1846, %v1816
        %v1851 = vmul.f32 %v1847, %v1820
        %v1852 = vmul.f32 %v1848, %v1824
        %v1853 = vlaneseq
        %v1854 = vshrl.u32 %v1853, 7
        %v1855 = vsub.s32 0, %v1854
        %v1856 = vrot.slane %v1849, %v1855
        %v1857 = vlaneseq
        %v1858 = vshrl.u32 %v1857, 7
        %v1859 = vsub.s32 0, %v1858
        %v1860 = vrot.slane %v1850, %v1859
        %v1861 = vlaneseq
        %v1862 = vshrl.u32 %v1861, 7
        %v1863 = vsub.s32 0, %v1862
        %v1864 = vrot.slane %v1851, %v1863
        %v1865 = vlaneseq
        %v1866 = vshrl.u32 %v1865, 7
        %v1867 = vsub.s32 0, %v1866
        %v1868 = vrot.slane %v1852, %v1867
        %v1869 = vmul.f32 %v1856, %v1661
        %v1870 = vmul.f32 %v1860, %v1662
        %v1871 = vmul.f32 %v1864, %v1663
        %v1872 = vmul.f32 %v1868, %v1664
        %v1873 = vmul.f32 %v1661, %v1869
        %v1874 = vmul.f32 %v1662, %v1870
        %v1875 = vmul.f32 %v1663, %v1871
        %v1876 = vmul.f32 %v1664, %v1872
        %v1881 = vrot.slane %v1869, 1
        %v1882 = vrot.slane %v1870, 1
        %v1883 = vrot.slane %v1871, 1
        %v1884 = vrot.slane %v1872, 1
        %v1889 = vmul.f32 %v1661, %v1881
        %v1890 = vmul.f32 %v1662, %v1882
        %v1891 = vmul.f32 %v1663, %v1883
        %v1892 = vmul.f32 %v1664, %v1884
        %v1893 = vrot.slane %v1869, 2
        %v1894 = vrot.slane %v1870, 2
        %v1895 = vrot.slane %v1871, 2
        %v1896 = vrot.slane %v1872, 2
        %v1901 = vmul.f32 %v1661, %v1893
        %v1902 = vmul.f32 %v1662, %v1894
        %v1903 = vmul.f32 %v1663, %v1895
        %v1904 = vmul.f32 %v1664, %v1896
        %v1905 = vrot.slane %v1869, 7
        %v1906 = vrot.slane %v1870, 7
        %v1907 = vrot.slane %v1871, 7
        %v1908 = vrot.slane %v1872, 7
        %v1913 = vmul.f32 %v1661, %v1905
        %v1914 = vmul.f32 %v1662, %v1906
        %v1915 = vmul.f32 %v1663, %v1907
        %v1916 = vmul.f32 %v1664, %v1908
        %v1917 = vrot.slane %v1869, 6
        %v1918 = vrot.slane %v1870, 6
        %v1919 = vrot.slane %v1871, 6
        %v1920 = vrot.slane %v1872, 6
        %v1925 = vmul.f32 %v1661, %v1917
        %v1926 = vmul.f32 %v1662, %v1918
        %v1927 = vmul.f32 %v1663, %v1919
        %v1928 = vmul.f32 %v1664, %v1920
        %v1933 = vrot.slane %v1873, 7
        %v1934 = vrot.slane %v1874, 7
        %v1935 = vrot.slane %v1875, 7
        %v1936 = vrot.slane %v1876, 7
        %v1945 = vrot.slane %v1889, 6
        %v1946 = vrot.slane %v1890, 6
        %v1947 = vrot.slane %v1891, 6
        %v1948 = vrot.slane %v1892, 6
        %v1957 = vrot.slane %v1901, 5
        %v1958 = vrot.slane %v1902, 5
        %v1959 = vrot.slane %v1903, 5
        %v1960 = vrot.slane %v1904, 5
        %v1969 = vrot.slane %v1913, 5
        %v1970 = vrot.slane %v1914, 5
        %v1971 = vrot.slane %v1915, 5
        %v1972 = vrot.slane %v1916, 5
        %v1977 = vrot.slane %v1873, 4
        %v1978 = vrot.slane %v1874, 4
        %v1979 = vrot.slane %v1875, 4
        %v1980 = vrot.slane %v1876, 4
        %v1985 = vrot.slane %v1889, 3
        %v1986 = vrot.slane %v1890, 3
        %v1987 = vrot.slane %v1891, 3
        %v1988 = vrot.slane %v1892, 3
        %v1997 = vrot.slane %v1925, 3
        %v1998 = vrot.slane %v1926, 3
        %v1999 = vrot.slane %v1927, 3
        %v2000 = vrot.slane %v1928, 3
        %v2005 = vrot.slane %v1913, 2
        %v2006 = vrot.slane %v1914, 2
        %v2007 = vrot.slane %v1915, 2
        %v2008 = vrot.slane %v1916, 2
        %v2013 = vrot.slane %v1873, 1
        %v2014 = vrot.slane %v1874, 1
        %v2015 = vrot.slane %v1875, 1
        %v2016 = vrot.slane %v1876, 1
        %vm2021 = vcmask 1040384
        %v2022 = vsel %vm2021, %v1829, %v1933
        %v2023 = vsel %vm2021, %v1830, %v1934
        %v2024 = vsel %vm2021, %v1831, %v1935
        %v2025 = vsel %vm2021, %v1832, %v1936
        %vm2026 = vcmask 1041408
        %v2027 = vsel %vm2026, %v2022, %v1945
        %v2028 = vsel %vm2026, %v2023, %v1946
        %v2029 = vsel %vm2026, %v2024, %v1947
        %v2030 = vsel %vm2026, %v2025, %v1948
        %vm2031 = vcmask 1042432
        %v2032 = vsel %vm2031, %v2027, %v1957
        %v2033 = vsel %vm2031, %v2028, %v1958
        %v2034 = vsel %vm2031, %v2029, %v1959
        %v2035 = vsel %vm2031, %v2030, %v1960
        %vm2036 = vcmask 1043456
        %v2037 = vsel %vm2036, %v2032, %v1969
        %v2038 = vsel %vm2036, %v2033, %v1970
        %v2039 = vsel %vm2036, %v2034, %v1971
        %v2040 = vsel %vm2036, %v2035, %v1972
        %vm2041 = vcmask 1044480
        %v2042 = vsel %vm2041, %v2037, %v1977
        %v2043 = vsel %vm2041, %v2038, %v1978
        %v2044 = vsel %vm2041, %v2039, %v1979
        %v2045 = vsel %vm2041, %v2040, %v1980
        %vm2046 = vcmask 1045504
        %v2047 = vsel %vm2046, %v2042, %v1985
        %v2048 = vsel %vm2046, %v2043, %v1986
        %v2049 = vsel %vm2046, %v2044, %v1987
        %v2050 = vsel %vm2046, %v2045, %v1988
        %vm2051 = vcmask 1046528
        %v2052 = vsel %vm2051, %v2047, %v1997
        %v2053 = vsel %vm2051, %v2048, %v1998
        %v2054 = vsel %vm2051, %v2049, %v1999
        %v2055 = vsel %vm2051, %v2050, %v2000
        %v2056 = vsel %vm2021, %v2005, %v2013
        %v2057 = vsel %vm2021, %v2006, %v2014
        %v2058 = vsel %vm2021, %v2007, %v2015
        %v2059 = vsel %vm2021, %v2008, %v2016
        %v2060 = vlaneseq
        %v2061 = vshrl.u32 %v2060, 7
        %v2062 = vsub.s32 0, %v2061
        %v2063 = vrot.slane %v655, %v2062
        %v2064 = vlaneseq
        %v2065 = vshrl.u32 %v2064, 7
        %v2066 = vsub.s32 1, %v2065
        %v2067 = vrot.slane %v655, %v2066
        %v2068 = vlaneseq
        %v2069 = vshrl.u32 %v2068, 7
        %v2070 = vsub.s32 2, %v2069
        %v2071 = vrot.slane %v655, %v2070
        %v2072 = vlaneseq
        %v2073 = vshrl.u32 %v2072, 7
        %v2074 = vsub.s32 3, %v2073
        %v2075 = vrot.slane %v655, %v2074
        %vm2076 = vcmp.eq.s32.totalorder %v657, %v2063
        %vm2077 = vcmp.eq.s32.totalorder %v657, %v2067
        %vm2078 = vcmp.eq.s32.totalorder %v657, %v2071
        %vm2079 = vcmp.eq.s32.totalorder %v657, %v2075
        %vm2080 = vcmp.eq.s32.totalorder %v658, %v2063
        %vm2081 = vcmp.eq.s32.totalorder %v658, %v2067
        %vm2082 = vcmp.eq.s32.totalorder %v658, %v2071
        %vm2083 = vcmp.eq.s32.totalorder %v658, %v2075
        %vm2084 = vcmp.eq.s32.totalorder %v659, %v2063
        %vm2085 = vcmp.eq.s32.totalorder %v659, %v2067
        %vm2086 = vcmp.eq.s32.totalorder %v659, %v2071
        %vm2087 = vcmp.eq.s32.totalorder %v659, %v2075
        %vm2088 = vcmp.eq.s32.totalorder %v660, %v2063
        %vm2089 = vcmp.eq.s32.totalorder %v660, %v2067
        %vm2090 = vcmp.eq.s32.totalorder %v660, %v2071
        %vm2091 = vcmp.eq.s32.totalorder %v660, %v2075
        %vm2092 = vcmp.eq.s32.totalorder %v661, %v2063
        %vm2093 = vcmp.eq.s32.totalorder %v661, %v2067
        %vm2094 = vcmp.eq.s32.totalorder %v661, %v2071
        %vm2095 = vcmp.eq.s32.totalorder %v661, %v2075
        %vm2096 = vcmp.eq.s32.totalorder %v662, %v2063
        %vm2097 = vcmp.eq.s32.totalorder %v662, %v2067
        %vm2098 = vcmp.eq.s32.totalorder %v662, %v2071
        %vm2099 = vcmp.eq.s32.totalorder %v662, %v2075
        %vm2100 = vcmp.eq.s32.totalorder %v663, %v2063
        %vm2101 = vcmp.eq.s32.totalorder %v663, %v2067
        %vm2102 = vcmp.eq.s32.totalorder %v663, %v2071
        %vm2103 = vcmp.eq.s32.totalorder %v663, %v2075
        %vm2104 = vcmp.eq.s32.totalorder %v664, %v2063
        %vm2105 = vcmp.eq.s32.totalorder %v664, %v2067
        %vm2106 = vcmp.eq.s32.totalorder %v664, %v2071
        %vm2107 = vcmp.eq.s32.totalorder %v664, %v2075
        %vm2108 = vcmp.eq.s32.totalorder %v665, %v2063
        %vm2109 = vcmp.eq.s32.totalorder %v665, %v2067
        %vm2110 = vcmp.eq.s32.totalorder %v665, %v2071
        %vm2111 = vcmp.eq.s32.totalorder %v665, %v2075
        %vm2112 = vcmp.eq.s32.totalorder %v666, %v2063
        %vm2113 = vcmp.eq.s32.totalorder %v666, %v2067
        %vm2114 = vcmp.eq.s32.totalorder %v666, %v2071
        %vm2115 = vcmp.eq.s32.totalorder %v666, %v2075
        %vm2116 = vcmp.eq.s32.totalorder %v667, %v2063
        %vm2117 = vcmp.eq.s32.totalorder %v667, %v2067
        %vm2118 = vcmp.eq.s32.totalorder %v667, %v2071
        %vm2119 = vcmp.eq.s32.totalorder %v667, %v2075
        %vm2120 = vcmp.eq.s32.totalorder %v668, %v2063
        %vm2121 = vcmp.eq.s32.totalorder %v668, %v2067
        %vm2122 = vcmp.eq.s32.totalorder %v668, %v2071
        %vm2123 = vcmp.eq.s32.totalorder %v668, %v2075
        %vm2124 = vcmp.eq.s32.totalorder %v669, %v2063
        %vm2125 = vcmp.eq.s32.totalorder %v669, %v2067
        %vm2126 = vcmp.eq.s32.totalorder %v669, %v2071
        %vm2127 = vcmp.eq.s32.totalorder %v669, %v2075
        %vm2128 = vcmp.eq.s32.totalorder %v670, %v2063
        %vm2129 = vcmp.eq.s32.totalorder %v670, %v2067
        %vm2130 = vcmp.eq.s32.totalorder %v670, %v2071
        %vm2131 = vcmp.eq.s32.totalorder %v670, %v2075
        %vm2132 = vcmp.eq.s32.totalorder %v671, %v2063
        %vm2133 = vcmp.eq.s32.totalorder %v671, %v2067
        %vm2134 = vcmp.eq.s32.totalorder %v671, %v2071
        %vm2135 = vcmp.eq.s32.totalorder %v671, %v2075
        %vm2136 = vcmp.eq.s32.totalorder %v672, %v2063
        %vm2137 = vcmp.eq.s32.totalorder %v672, %v2067
        %vm2138 = vcmp.eq.s32.totalorder %v672, %v2071
        %vm2139 = vcmp.eq.s32.totalorder %v672, %v2075
        %v2140 = vsel %vm2076, 1, 0
        %v2141 = vsel %vm2077, 1, 0
        %v2142 = vsel %vm2078, 1, 0
        %v2143 = vsel %vm2079, 1, 0
        %v2144 = vsel %vm2080, 1, 0
        %v2145 = vsel %vm2081, 1, 0
        %v2146 = vsel %vm2082, 1, 0
        %v2147 = vsel %vm2083, 1, 0
        %v2148 = vsel %vm2084, 1, 0
        %v2149 = vsel %vm2085, 1, 0
        %v2150 = vsel %vm2086, 1, 0
        %v2151 = vsel %vm2087, 1, 0
        %v2152 = vsel %vm2088, 1, 0
        %v2153 = vsel %vm2089, 1, 0
        %v2154 = vsel %vm2090, 1, 0
        %v2155 = vsel %vm2091, 1, 0
        %v2156 = vsel %vm2092, 1, 0
        %v2157 = vsel %vm2093, 1, 0
        %v2158 = vsel %vm2094, 1, 0
        %v2159 = vsel %vm2095, 1, 0
        %v2160 = vsel %vm2096, 1, 0
        %v2161 = vsel %vm2097, 1, 0
        %v2162 = vsel %vm2098, 1, 0
        %v2163 = vsel %vm2099, 1, 0
        %v2164 = vsel %vm2100, 1, 0
        %v2165 = vsel %vm2101, 1, 0
        %v2166 = vsel %vm2102, 1, 0
        %v2167 = vsel %vm2103, 1, 0
        %v2168 = vsel %vm2104, 1, 0
        %v2169 = vsel %vm2105, 1, 0
        %v2170 = vsel %vm2106, 1, 0
        %v2171 = vsel %vm2107, 1, 0
        %v2172 = vsel %vm2108, 1, 0
        %v2173 = vsel %vm2109, 1, 0
        %v2174 = vsel %vm2110, 1, 0
        %v2175 = vsel %vm2111, 1, 0
        %v2176 = vsel %vm2112, 1, 0
        %v2177 = vsel %vm2113, 1, 0
        %v2178 = vsel %vm2114, 1, 0
        %v2179 = vsel %vm2115, 1, 0
        %v2180 = vsel %vm2116, 1, 0
        %v2181 = vsel %vm2117, 1, 0
        %v2182 = vsel %vm2118, 1, 0
        %v2183 = vsel %vm2119, 1, 0
        %v2184 = vsel %vm2120, 1, 0
        %v2185 = vsel %vm2121, 1, 0
        %v2186 = vsel %vm2122, 1, 0
        %v2187 = vsel %vm2123, 1, 0
        %v2188 = vsel %vm2124, 1, 0
        %v2189 = vsel %vm2125, 1, 0
        %v2190 = vsel %vm2126, 1, 0
        %v2191 = vsel %vm2127, 1, 0
        %v2192 = vsel %vm2128, 1, 0
        %v2193 = vsel %vm2129, 1, 0
        %v2194 = vsel %vm2130, 1, 0
        %v2195 = vsel %vm2131, 1, 0
        %v2196 = vsel %vm2132, 1, 0
        %v2197 = vsel %vm2133, 1, 0
        %v2198 = vsel %vm2134, 1, 0
        %v2199 = vsel %vm2135, 1, 0
        %v2200 = vsel %vm2136, 1, 0
        %v2201 = vsel %vm2137, 1, 0
        %v2202 = vsel %vm2138, 1, 0
        %v2203 = vsel %vm2139, 1, 0
        %v2204 = vcvt.s32.f32 %v2140
        %v2205 = vcvt.s32.f32 %v2141
        %v2206 = vcvt.s32.f32 %v2142
        %v2207 = vcvt.s32.f32 %v2143
        %v2208 = vcvt.s32.f32 %v2144
        %v2209 = vcvt.s32.f32 %v2145
        %v2210 = vcvt.s32.f32 %v2146
        %v2211 = vcvt.s32.f32 %v2147
        %v2212 = vcvt.s32.f32 %v2148
        %v2213 = vcvt.s32.f32 %v2149
        %v2214 = vcvt.s32.f32 %v2150
        %v2215 = vcvt.s32.f32 %v2151
        %v2216 = vcvt.s32.f32 %v2152
        %v2217 = vcvt.s32.f32 %v2153
        %v2218 = vcvt.s32.f32 %v2154
        %v2219 = vcvt.s32.f32 %v2155
        %v2220 = vcvt.s32.f32 %v2156
        %v2221 = vcvt.s32.f32 %v2157
        %v2222 = vcvt.s32.f32 %v2158
        %v2223 = vcvt.s32.f32 %v2159
        %v2224 = vcvt.s32.f32 %v2160
        %v2225 = vcvt.s32.f32 %v2161
        %v2226 = vcvt.s32.f32 %v2162
        %v2227 = vcvt.s32.f32 %v2163
        %v2228 = vcvt.s32.f32 %v2164
        %v2229 = vcvt.s32.f32 %v2165
        %v2230 = vcvt.s32.f32 %v2166
        %v2231 = vcvt.s32.f32 %v2167
        %v2232 = vcvt.s32.f32 %v2168
        %v2233 = vcvt.s32.f32 %v2169
        %v2234 = vcvt.s32.f32 %v2170
        %v2235 = vcvt.s32.f32 %v2171
        %v2236 = vcvt.s32.f32 %v2172
        %v2237 = vcvt.s32.f32 %v2173
        %v2238 = vcvt.s32.f32 %v2174
        %v2239 = vcvt.s32.f32 %v2175
        %v2240 = vcvt.s32.f32 %v2176
        %v2241 = vcvt.s32.f32 %v2177
        %v2242 = vcvt.s32.f32 %v2178
        %v2243 = vcvt.s32.f32 %v2179
        %v2244 = vcvt.s32.f32 %v2180
        %v2245 = vcvt.s32.f32 %v2181
        %v2246 = vcvt.s32.f32 %v2182
        %v2247 = vcvt.s32.f32 %v2183
        %v2248 = vcvt.s32.f32 %v2184
        %v2249 = vcvt.s32.f32 %v2185
        %v2250 = vcvt.s32.f32 %v2186
        %v2251 = vcvt.s32.f32 %v2187
        %v2252 = vcvt.s32.f32 %v2188
        %v2253 = vcvt.s32.f32 %v2189
        %v2254 = vcvt.s32.f32 %v2190
        %v2255 = vcvt.s32.f32 %v2191
        %v2256 = vcvt.s32.f32 %v2192
        %v2257 = vcvt.s32.f32 %v2193
        %v2258 = vcvt.s32.f32 %v2194
        %v2259 = vcvt.s32.f32 %v2195
        %v2260 = vcvt.s32.f32 %v2196
        %v2261 = vcvt.s32.f32 %v2197
        %v2262 = vcvt.s32.f32 %v2198
        %v2263 = vcvt.s32.f32 %v2199
        %v2264 = vcvt.s32.f32 %v2200
        %v2265 = vcvt.s32.f32 %v2201
        %v2266 = vcvt.s32.f32 %v2202
        %v2267 = vcvt.s32.f32 %v2203
        %v2268 = vld [vmem:[%s418] sm:$0xff]
        %v2269 = vld [vmem:[%s418 + $0x8] sm:$0x3]
        %v2270 = vpack.c.bf16 %v2056, %v2052
        %v2271 = vpack.c.bf16 %v2057, %v2053
        %v2272 = vpack.c.bf16 %v2058, %v2054
        %v2273 = vpack.c.bf16 %v2059, %v2055
        %v2274 = vunpack.c.l.bf16 %v2270
        %v2275 = vunpack.c.l.bf16 %v2271
        %v2276 = vunpack.c.l.bf16 %v2272
        %v2277 = vunpack.c.l.bf16 %v2273
        %v2278 = vunpack.c.h.bf16 %v2270
        %v2279 = vunpack.c.h.bf16 %v2271
        %v2280 = vunpack.c.h.bf16 %v2272
        %v2281 = vunpack.c.h.bf16 %v2273
        %v2282 = vsub.f32 %v2052, %v2274
        %v2283 = vsub.f32 %v2053, %v2275
        %v2284 = vsub.f32 %v2054, %v2276
        %v2285 = vsub.f32 %v2055, %v2277
        %v2286 = vsub.f32 %v2056, %v2278
        %v2287 = vsub.f32 %v2057, %v2279
        %v2288 = vsub.f32 %v2058, %v2280
        %v2289 = vsub.f32 %v2059, %v2281
        %2290 = vmatprep.subr.mxu0 %v2205
        %2291 = vmatpush1.xpose.msra.mxu0 %v2204
        %2292 = vmatprep.subr.mxu0 %v2209
        %2293 = vmatpush1.xpose.msra.mxu0 %v2208
        %2294 = vmatprep.subr.mxu0 %v2213
        %2295 = vmatpush1.xpose.msra.mxu0 %v2212
        %2296 = vmatprep.subr.mxu0 %v2217
        %2297 = vmatpush1.xpose.msra.mxu0 %v2216
        %2298 = vmatprep.subr.mxu0 %v2221
        %2299 = vmatpush1.xpose.msra.mxu0 %v2220
        %2300 = vmatprep.subr.mxu0 %v2225
        %2301 = vmatpush1.xpose.msra.mxu0 %v2224
        %2302 = vmatprep.subr.mxu0 %v2229
        %2303 = vmatpush1.xpose.msra.mxu0 %v2228
        %2304 = vmatprep.subr.mxu0 %v2233
        %2305 = vmatpush1.xpose.msra.mxu0 %v2232
        %2306 = vmatprep.subr.mxu0 %v2237
        %2307 = vmatpush1.xpose.msra.mxu0 %v2236
        %2308 = vmatprep.subr.mxu0 %v2241
        %2309 = vmatpush1.xpose.msra.mxu0 %v2240
        %2310 = vmatprep.subr.mxu0 %v2245
        %2311 = vmatpush1.xpose.msra.mxu0 %v2244
        %2312 = vmatprep.subr.mxu0 %v2249
        %2313 = vmatpush1.xpose.msra.mxu0 %v2248
        %2314 = vmatprep.subr.mxu0 %v2253
        %2315 = vmatpush1.xpose.msra.mxu0 %v2252
        %2316 = vmatprep.subr.mxu0 %v2257
        %2317 = vmatpush1.xpose.msra.mxu0 %v2256
        %2318 = vmatprep.subr.mxu0 %v2261
        %2319 = vmatpush1.xpose.msra.mxu0 %v2260
        %2320 = vmatprep.subr.mxu0 %v2265
        %2321 = vmatpush1.xpose.msra.mxu0 %v2264
        %2322 = vmatprep.subr.mxu0 0.0
        %2323 = vmatpush1.xpose.msra.mxu0 0.0
        %2324 = vmatprep.subr.mxu0 0.0
        %2325 = vmatpush1.xpose.msra.mxu0 0.0
        %2326 = vmatprep.subr.mxu0 0.0
        %2327 = vmatpush1.xpose.msra.mxu0 0.0
        %2328 = vmatprep.subr.mxu0 0.0
        %2329 = vmatpush1.xpose.msra.mxu0 0.0
        %2330 = vmatprep.subr.mxu0 0.0
        %2331 = vmatpush1.xpose.msra.mxu0 0.0
        %2332 = vmatprep.subr.mxu0 0.0
        %2333 = vmatpush1.xpose.msra.mxu0 0.0
        %2334 = vmatprep.subr.mxu0 0.0
        %2335 = vmatpush1.xpose.msra.mxu0 0.0
        %2336 = vmatprep.subr.mxu0 0.0
        %2337 = vmatpush1.xpose.msra.mxu0 0.0
        %2338 = vmatprep.subr.mxu0 0.0
        %2339 = vmatpush1.xpose.msra.mxu0 0.0
        %2340 = vmatprep.subr.mxu0 0.0
        %2341 = vmatpush1.xpose.msra.mxu0 0.0
        %2342 = vmatprep.subr.mxu0 0.0
        %2343 = vmatpush1.xpose.msra.mxu0 0.0
        %2344 = vmatprep.subr.mxu0 0.0
        %2345 = vmatpush1.xpose.msra.mxu0 0.0
        %2346 = vmatprep.subr.mxu0 0.0
        %2347 = vmatpush1.xpose.msra.mxu0 0.0
        %2348 = vmatprep.subr.mxu0 0.0
        %2349 = vmatpush1.xpose.msra.mxu0 0.0
        %2350 = vmatprep.subr.mxu0 0.0
        %2351 = vmatpush1.xpose.msra.mxu0 0.0
        %2352 = vmatprep.subr.mxu0 0.0
        %2353 = vmatpush1.xpose.msra.mxu0 0.0
        %2354 = vmatprep.mubr.f32.mxu0 %v2283
        %2355 = vmatmul.mubr.f32.gmra.mrb[0].mxu0 %v2282
        %v2356 = vpop.f32.mrb[0].mxu0
        %v2357 = vadd.f32 0.0, %v2356
        %v2358 = vpop.f32.mrb[0].mxu0
        %2359 = vmatprep.mubr.f32.mxu0 %v2287
        %2360 = vmatmul.mubr.f32.gmra.mrb[0].mxu0 %v2286
        %v2361 = vpop.f32.mrb[0].mxu0
        %v2362 = vadd.f32 0.0, %v2361
        %v2363 = vpop.f32.mrb[0].mxu0
        %2364 = vdwg.mxu0
        %2365 = vmatprep.subr.mxu0 %v2207
        %2366 = vmatpush1.xpose.msra.mxu0 %v2206
        %2367 = vmatprep.subr.mxu0 %v2211
        %2368 = vmatpush1.xpose.msra.mxu0 %v2210
        %2369 = vmatprep.subr.mxu0 %v2215
        %2370 = vmatpush1.xpose.msra.mxu0 %v2214
        %2371 = vmatprep.subr.mxu0 %v2219
        %2372 = vmatpush1.xpose.msra.mxu0 %v2218
        %2373 = vmatprep.subr.mxu0 %v2223
        %2374 = vmatpush1.xpose.msra.mxu0 %v2222
        %2375 = vmatprep.subr.mxu0 %v2227
        %2376 = vmatpush1.xpose.msra.mxu0 %v2226
        %2377 = vmatprep.subr.mxu0 %v2231
        %2378 = vmatpush1.xpose.msra.mxu0 %v2230
        %2379 = vmatprep.subr.mxu0 %v2235
        %2380 = vmatpush1.xpose.msra.mxu0 %v2234
        %2381 = vmatprep.subr.mxu0 %v2239
        %2382 = vmatpush1.xpose.msra.mxu0 %v2238
        %2383 = vmatprep.subr.mxu0 %v2243
        %2384 = vmatpush1.xpose.msra.mxu0 %v2242
        %2385 = vmatprep.subr.mxu0 %v2247
        %2386 = vmatpush1.xpose.msra.mxu0 %v2246
        %2387 = vmatprep.subr.mxu0 %v2251
        %2388 = vmatpush1.xpose.msra.mxu0 %v2250
        %2389 = vmatprep.subr.mxu0 %v2255
        %2390 = vmatpush1.xpose.msra.mxu0 %v2254
        %2391 = vmatprep.subr.mxu0 %v2259
        %2392 = vmatpush1.xpose.msra.mxu0 %v2258
        %2393 = vmatprep.subr.mxu0 %v2263
        %2394 = vmatpush1.xpose.msra.mxu0 %v2262
        %2395 = vmatprep.subr.mxu0 %v2267
        %2396 = vmatpush1.xpose.msra.mxu0 %v2266
        %2397 = vmatprep.subr.mxu0 0.0
        %2398 = vmatpush1.xpose.msra.mxu0 0.0
        %2399 = vmatprep.subr.mxu0 0.0
        %2400 = vmatpush1.xpose.msra.mxu0 0.0
        %2401 = vmatprep.subr.mxu0 0.0
        %2402 = vmatpush1.xpose.msra.mxu0 0.0
        %2403 = vmatprep.subr.mxu0 0.0
        %2404 = vmatpush1.xpose.msra.mxu0 0.0
        %2405 = vmatprep.subr.mxu0 0.0
        %2406 = vmatpush1.xpose.msra.mxu0 0.0
        %2407 = vmatprep.subr.mxu0 0.0
        %2408 = vmatpush1.xpose.msra.mxu0 0.0
        %2409 = vmatprep.subr.mxu0 0.0
        %2410 = vmatpush1.xpose.msra.mxu0 0.0
        %2411 = vmatprep.subr.mxu0 0.0
        %2412 = vmatpush1.xpose.msra.mxu0 0.0
        %2413 = vmatprep.subr.mxu0 0.0
        %2414 = vmatpush1.xpose.msra.mxu0 0.0
        %2415 = vmatprep.subr.mxu0 0.0
        %2416 = vmatpush1.xpose.msra.mxu0 0.0
        %2417 = vmatprep.subr.mxu0 0.0
        %2418 = vmatpush1.xpose.msra.mxu0 0.0
        %2419 = vmatprep.subr.mxu0 0.0
        %2420 = vmatpush1.xpose.msra.mxu0 0.0
        %2421 = vmatprep.subr.mxu0 0.0
        %2422 = vmatpush1.xpose.msra.mxu0 0.0
        %2423 = vmatprep.subr.mxu0 0.0
        %2424 = vmatpush1.xpose.msra.mxu0 0.0
        %2425 = vmatprep.subr.mxu0 0.0
        %2426 = vmatpush1.xpose.msra.mxu0 0.0
        %2427 = vmatprep.subr.mxu0 0.0
        %2428 = vmatpush1.xpose.msra.mxu0 0.0
        %2429 = vmatprep.mubr.f32.mxu0 %v2285
        %2430 = vmatmul.mubr.f32.gmra.mrb[0].mxu0 %v2284
        %v2431 = vpop.f32.mrb[0].mxu0
        %v2432 = vadd.f32 %v2357, %v2431
        %v2433 = vpop.f32.mrb[0].mxu0
        %2434 = vmatprep.mubr.f32.mxu0 %v2289
        %2435 = vmatmul.mubr.f32.gmra.mrb[0].mxu0 %v2288
        %v2436 = vpop.f32.mrb[0].mxu0
        %v2437 = vadd.f32 %v2362, %v2436
        %v2438 = vpop.f32.mrb[0].mxu0
        %2439 = vdwg.mxu0
        %2440 = vmatprep.subr.mxu0 %v2205
        %2441 = vmatpush1.xpose.msra.mxu0 %v2204
        %2442 = vmatprep.subr.mxu0 %v2209
        %2443 = vmatpush1.xpose.msra.mxu0 %v2208
        %2444 = vmatprep.subr.mxu0 %v2213
        %2445 = vmatpush1.xpose.msra.mxu0 %v2212
        %2446 = vmatprep.subr.mxu0 %v2217
        %2447 = vmatpush1.xpose.msra.mxu0 %v2216
        %2448 = vmatprep.subr.mxu0 %v2221
        %2449 = vmatpush1.xpose.msra.mxu0 %v2220
        %2450 = vmatprep.subr.mxu0 %v2225
        %2451 = vmatpush1.xpose.msra.mxu0 %v2224
        %2452 = vmatprep.subr.mxu0 %v2229
        %2453 = vmatpush1.xpose.msra.mxu0 %v2228
        %2454 = vmatprep.subr.mxu0 %v2233
        %2455 = vmatpush1.xpose.msra.mxu0 %v2232
        %2456 = vmatprep.subr.mxu0 %v2237
        %2457 = vmatpush1.xpose.msra.mxu0 %v2236
        %2458 = vmatprep.subr.mxu0 %v2241
        %2459 = vmatpush1.xpose.msra.mxu0 %v2240
        %2460 = vmatprep.subr.mxu0 %v2245
        %2461 = vmatpush1.xpose.msra.mxu0 %v2244
        %2462 = vmatprep.subr.mxu0 %v2249
        %2463 = vmatpush1.xpose.msra.mxu0 %v2248
        %2464 = vmatprep.subr.mxu0 %v2253
        %2465 = vmatpush1.xpose.msra.mxu0 %v2252
        %2466 = vmatprep.subr.mxu0 %v2257
        %2467 = vmatpush1.xpose.msra.mxu0 %v2256
        %2468 = vmatprep.subr.mxu0 %v2261
        %2469 = vmatpush1.xpose.msra.mxu0 %v2260
        %2470 = vmatprep.subr.mxu0 %v2265
        %2471 = vmatpush1.xpose.msra.mxu0 %v2264
        %2472 = vmatprep.subr.mxu0 0.0
        %2473 = vmatpush1.xpose.msra.mxu0 0.0
        %2474 = vmatprep.subr.mxu0 0.0
        %2475 = vmatpush1.xpose.msra.mxu0 0.0
        %2476 = vmatprep.subr.mxu0 0.0
        %2477 = vmatpush1.xpose.msra.mxu0 0.0
        %2478 = vmatprep.subr.mxu0 0.0
        %2479 = vmatpush1.xpose.msra.mxu0 0.0
        %2480 = vmatprep.subr.mxu0 0.0
        %2481 = vmatpush1.xpose.msra.mxu0 0.0
        %2482 = vmatprep.subr.mxu0 0.0
        %2483 = vmatpush1.xpose.msra.mxu0 0.0
        %2484 = vmatprep.subr.mxu0 0.0
        %2485 = vmatpush1.xpose.msra.mxu0 0.0
        %2486 = vmatprep.subr.mxu0 0.0
        %2487 = vmatpush1.xpose.msra.mxu0 0.0
        %2488 = vmatprep.subr.mxu0 0.0
        %2489 = vmatpush1.xpose.msra.mxu0 0.0
        %2490 = vmatprep.subr.mxu0 0.0
        %2491 = vmatpush1.xpose.msra.mxu0 0.0
        %2492 = vmatprep.subr.mxu0 0.0
        %2493 = vmatpush1.xpose.msra.mxu0 0.0
        %2494 = vmatprep.subr.mxu0 0.0
        %2495 = vmatpush1.xpose.msra.mxu0 0.0
        %2496 = vmatprep.subr.mxu0 0.0
        %2497 = vmatpush1.xpose.msra.mxu0 0.0
        %2498 = vmatprep.subr.mxu0 0.0
        %2499 = vmatpush1.xpose.msra.mxu0 0.0
        %2500 = vmatprep.subr.mxu0 0.0
        %2501 = vmatpush1.xpose.msra.mxu0 0.0
        %2502 = vmatprep.subr.mxu0 0.0
        %2503 = vmatpush1.xpose.msra.mxu0 0.0
        %2504 = vmatprep.mubr.f32.mxu0 %v2275
        %2505 = vmatmul.mubr.f32.gmra.mrb[0].mxu0 %v2274
        %v2506 = vpop.f32.mrb[0].mxu0
        %v2507 = vadd.f32 %v2432, %v2506
        %v2508 = vpop.f32.mrb[0].mxu0
        %2509 = vmatprep.mubr.f32.mxu0 %v2279
        %2510 = vmatmul.mubr.f32.gmra.mrb[0].mxu0 %v2278
        %v2511 = vpop.f32.mrb[0].mxu0
        %v2512 = vadd.f32 %v2437, %v2511
        %v2513 = vpop.f32.mrb[0].mxu0
        %2514 = vdwg.mxu0
        %2515 = vmatprep.subr.mxu0 %v2207
        %2516 = vmatpush1.xpose.msra.mxu0 %v2206
        %2517 = vmatprep.subr.mxu0 %v2211
        %2518 = vmatpush1.xpose.msra.mxu0 %v2210
        %2519 = vmatprep.subr.mxu0 %v2215
        %2520 = vmatpush1.xpose.msra.mxu0 %v2214
        %2521 = vmatprep.subr.mxu0 %v2219
        %2522 = vmatpush1.xpose.msra.mxu0 %v2218
        %2523 = vmatprep.subr.mxu0 %v2223
        %2524 = vmatpush1.xpose.msra.mxu0 %v2222
        %2525 = vmatprep.subr.mxu0 %v2227
        %2526 = vmatpush1.xpose.msra.mxu0 %v2226
        %2527 = vmatprep.subr.mxu0 %v2231
        %2528 = vmatpush1.xpose.msra.mxu0 %v2230
        %2529 = vmatprep.subr.mxu0 %v2235
        %2530 = vmatpush1.xpose.msra.mxu0 %v2234
        %2531 = vmatprep.subr.mxu0 %v2239
        %2532 = vmatpush1.xpose.msra.mxu0 %v2238
        %2533 = vmatprep.subr.mxu0 %v2243
        %2534 = vmatpush1.xpose.msra.mxu0 %v2242
        %2535 = vmatprep.subr.mxu0 %v2247
        %2536 = vmatpush1.xpose.msra.mxu0 %v2246
        %2537 = vmatprep.subr.mxu0 %v2251
        %2538 = vmatpush1.xpose.msra.mxu0 %v2250
        %2539 = vmatprep.subr.mxu0 %v2255
        %2540 = vmatpush1.xpose.msra.mxu0 %v2254
        %2541 = vmatprep.subr.mxu0 %v2259
        %2542 = vmatpush1.xpose.msra.mxu0 %v2258
        %2543 = vmatprep.subr.mxu0 %v2263
        %2544 = vmatpush1.xpose.msra.mxu0 %v2262
        %2545 = vmatprep.subr.mxu0 %v2267
        %2546 = vmatpush1.xpose.msra.mxu0 %v2266
        %2547 = vmatprep.subr.mxu0 0.0
        %2548 = vmatpush1.xpose.msra.mxu0 0.0
        %2549 = vmatprep.subr.mxu0 0.0
        %2550 = vmatpush1.xpose.msra.mxu0 0.0
        %2551 = vmatprep.subr.mxu0 0.0
        %2552 = vmatpush1.xpose.msra.mxu0 0.0
        %2553 = vmatprep.subr.mxu0 0.0
        %2554 = vmatpush1.xpose.msra.mxu0 0.0
        %2555 = vmatprep.subr.mxu0 0.0
        %2556 = vmatpush1.xpose.msra.mxu0 0.0
        %2557 = vmatprep.subr.mxu0 0.0
        %2558 = vmatpush1.xpose.msra.mxu0 0.0
        %2559 = vmatprep.subr.mxu0 0.0
        %2560 = vmatpush1.xpose.msra.mxu0 0.0
        %2561 = vmatprep.subr.mxu0 0.0
        %2562 = vmatpush1.xpose.msra.mxu0 0.0
        %2563 = vmatprep.subr.mxu0 0.0
        %2564 = vmatpush1.xpose.msra.mxu0 0.0
        %2565 = vmatprep.subr.mxu0 0.0
        %2566 = vmatpush1.xpose.msra.mxu0 0.0
        %2567 = vmatprep.subr.mxu0 0.0
        %2568 = vmatpush1.xpose.msra.mxu0 0.0
        %2569 = vmatprep.subr.mxu0 0.0
        %2570 = vmatpush1.xpose.msra.mxu0 0.0
        %2571 = vmatprep.subr.mxu0 0.0
        %2572 = vmatpush1.xpose.msra.mxu0 0.0
        %2573 = vmatprep.subr.mxu0 0.0
        %2574 = vmatpush1.xpose.msra.mxu0 0.0
        %2575 = vmatprep.subr.mxu0 0.0
        %2576 = vmatpush1.xpose.msra.mxu0 0.0
        %2577 = vmatprep.subr.mxu0 0.0
        %2578 = vmatpush1.xpose.msra.mxu0 0.0
        %2579 = vmatprep.mubr.f32.mxu0 %v2277
        %2580 = vmatmul.mubr.f32.gmra.mrb[0].mxu0 %v2276
        %v2581 = vpop.f32.mrb[0].mxu0
        %v2582 = vadd.f32 %v2507, %v2581
        %v2583 = vpop.f32.mrb[0].mxu0
        %2584 = vmatprep.mubr.f32.mxu0 %v2281
        %2585 = vmatmul.mubr.f32.gmra.mrb[0].mxu0 %v2280
        %v2586 = vpop.f32.mrb[0].mxu0
        %v2587 = vadd.f32 %v2512, %v2586
        %v2588 = vpop.f32.mrb[0].mxu0
        %2589 = vdwg.mxu0
        %v2590 = vadd.f32 %v2268, %v2582
        %v2591 = vadd.f32 %v2269, %v2587
        %2592 = vst [vmem:[%s418] sm:$0xff] %v2590
        %2593 = vst [vmem:[%s418 + $0x8] sm:$0x3] %v2591
        %v2594 = vld [vmem:[%s413] sm:$0x7]
        %v2595 = vpack.c.bf16 %v1869, %v1869
        %v2596 = vpack.c.bf16 %v1870, %v1870
        %v2597 = vpack.c.bf16 %v1871, %v1871
        %v2598 = vpack.c.bf16 %v1872, %v1872
        %v2599 = vunpack.c.l.bf16 %v2595
        %v2600 = vunpack.c.l.bf16 %v2596
        %v2601 = vunpack.c.l.bf16 %v2597
        %v2602 = vunpack.c.l.bf16 %v2598
        %v2603 = vsub.f32 %v1869, %v2599
        %v2604 = vsub.f32 %v1870, %v2600
        %v2605 = vsub.f32 %v1871, %v2601
        %v2606 = vsub.f32 %v1872, %v2602
        %2607 = vmatprep.subr.mxu0 %v1026
        %2608 = vmatpush1.xpose.msra.mxu0 %v1025
        %2609 = vmatprep.subr.mxu0 %v1030
        %2610 = vmatpush1.xpose.msra.mxu0 %v1029
        %2611 = vmatprep.subr.mxu0 %v1034
        %2612 = vmatpush1.xpose.msra.mxu0 %v1033
        %2613 = vmatprep.subr.mxu0 %v1038
        %2614 = vmatpush1.xpose.msra.mxu0 %v1037
        %2615 = vmatprep.subr.mxu0 %v1042
        %2616 = vmatpush1.xpose.msra.mxu0 %v1041
        %2617 = vmatprep.subr.mxu0 %v1046
        %2618 = vmatpush1.xpose.msra.mxu0 %v1045
        %2619 = vmatprep.subr.mxu0 %v1050
        %2620 = vmatpush1.xpose.msra.mxu0 %v1049
        %2621 = vmatprep.subr.mxu0 %v1054
        %2622 = vmatpush1.xpose.msra.mxu0 %v1053
        %2623 = vmatprep.subr.mxu0 %v1058
        %2624 = vmatpush1.xpose.msra.mxu0 %v1057
        %2625 = vmatprep.subr.mxu0 %v1062
        %2626 = vmatpush1.xpose.msra.mxu0 %v1061
        %2627 = vmatprep.subr.mxu0 %v1066
        %2628 = vmatpush1.xpose.msra.mxu0 %v1065
        %2629 = vmatprep.subr.mxu0 %v1070
        %2630 = vmatpush1.xpose.msra.mxu0 %v1069
        %2631 = vmatprep.subr.mxu0 %v1074
        %2632 = vmatpush1.xpose.msra.mxu0 %v1073
        %2633 = vmatprep.subr.mxu0 %v1078
        %2634 = vmatpush1.xpose.msra.mxu0 %v1077
        %2635 = vmatprep.subr.mxu0 %v1082
        %2636 = vmatpush1.xpose.msra.mxu0 %v1081
        %2637 = vmatprep.subr.mxu0 %v1086
        %2638 = vmatpush1.xpose.msra.mxu0 %v1085
        %2639 = vmatprep.subr.mxu0 0.0
        %2640 = vmatpush1.xpose.msra.mxu0 0.0
        %2641 = vmatprep.subr.mxu0 0.0
        %2642 = vmatpush1.xpose.msra.mxu0 0.0
        %2643 = vmatprep.subr.mxu0 0.0
        %2644 = vmatpush1.xpose.msra.mxu0 0.0
        %2645 = vmatprep.subr.mxu0 0.0
        %2646 = vmatpush1.xpose.msra.mxu0 0.0
        %2647 = vmatprep.subr.mxu0 0.0
        %2648 = vmatpush1.xpose.msra.mxu0 0.0
        %2649 = vmatprep.subr.mxu0 0.0
        %2650 = vmatpush1.xpose.msra.mxu0 0.0
        %2651 = vmatprep.subr.mxu0 0.0
        %2652 = vmatpush1.xpose.msra.mxu0 0.0
        %2653 = vmatprep.subr.mxu0 0.0
        %2654 = vmatpush1.xpose.msra.mxu0 0.0
        %2655 = vmatprep.subr.mxu0 0.0
        %2656 = vmatpush1.xpose.msra.mxu0 0.0
        %2657 = vmatprep.subr.mxu0 0.0
        %2658 = vmatpush1.xpose.msra.mxu0 0.0
        %2659 = vmatprep.subr.mxu0 0.0
        %2660 = vmatpush1.xpose.msra.mxu0 0.0
        %2661 = vmatprep.subr.mxu0 0.0
        %2662 = vmatpush1.xpose.msra.mxu0 0.0
        %2663 = vmatprep.subr.mxu0 0.0
        %2664 = vmatpush1.xpose.msra.mxu0 0.0
        %2665 = vmatprep.subr.mxu0 0.0
        %2666 = vmatpush1.xpose.msra.mxu0 0.0
        %2667 = vmatprep.subr.mxu0 0.0
        %2668 = vmatpush1.xpose.msra.mxu0 0.0
        %2669 = vmatprep.subr.mxu0 0.0
        %2670 = vmatpush1.xpose.msra.mxu0 0.0
        %2671 = vmatprep.mubr.f32.mxu0 %v2604
        %2672 = vmatmul.mubr.f32.gmra.mrb[0].mxu0 %v2603
        %v2673 = vpop.f32.mrb[0].mxu0
        %v2674 = vadd.f32 0.0, %v2673
        %v2675 = vpop.f32.mrb[0].mxu0
        %2676 = vdwg.mxu0
        %2677 = vmatprep.subr.mxu0 %v1028
        %2678 = vmatpush1.xpose.msra.mxu0 %v1027
        %2679 = vmatprep.subr.mxu0 %v1032
        %2680 = vmatpush1.xpose.msra.mxu0 %v1031
        %2681 = vmatprep.subr.mxu0 %v1036
        %2682 = vmatpush1.xpose.msra.mxu0 %v1035
        %2683 = vmatprep.subr.mxu0 %v1040
        %2684 = vmatpush1.xpose.msra.mxu0 %v1039
        %2685 = vmatprep.subr.mxu0 %v1044
        %2686 = vmatpush1.xpose.msra.mxu0 %v1043
        %2687 = vmatprep.subr.mxu0 %v1048
        %2688 = vmatpush1.xpose.msra.mxu0 %v1047
        %2689 = vmatprep.subr.mxu0 %v1052
        %2690 = vmatpush1.xpose.msra.mxu0 %v1051
        %2691 = vmatprep.subr.mxu0 %v1056
        %2692 = vmatpush1.xpose.msra.mxu0 %v1055
        %2693 = vmatprep.subr.mxu0 %v1060
        %2694 = vmatpush1.xpose.msra.mxu0 %v1059
        %2695 = vmatprep.subr.mxu0 %v1064
        %2696 = vmatpush1.xpose.msra.mxu0 %v1063
        %2697 = vmatprep.subr.mxu0 %v1068
        %2698 = vmatpush1.xpose.msra.mxu0 %v1067
        %2699 = vmatprep.subr.mxu0 %v1072
        %2700 = vmatpush1.xpose.msra.mxu0 %v1071
        %2701 = vmatprep.subr.mxu0 %v1076
        %2702 = vmatpush1.xpose.msra.mxu0 %v1075
        %2703 = vmatprep.subr.mxu0 %v1080
        %2704 = vmatpush1.xpose.msra.mxu0 %v1079
        %2705 = vmatprep.subr.mxu0 %v1084
        %2706 = vmatpush1.xpose.msra.mxu0 %v1083
        %2707 = vmatprep.subr.mxu0 %v1088
        %2708 = vmatpush1.xpose.msra.mxu0 %v1087
        %2709 = vmatprep.subr.mxu0 0.0
        %2710 = vmatpush1.xpose.msra.mxu0 0.0
        %2711 = vmatprep.subr.mxu0 0.0
        %2712 = vmatpush1.xpose.msra.mxu0 0.0
        %2713 = vmatprep.subr.mxu0 0.0
        %2714 = vmatpush1.xpose.msra.mxu0 0.0
        %2715 = vmatprep.subr.mxu0 0.0
        %2716 = vmatpush1.xpose.msra.mxu0 0.0
        %2717 = vmatprep.subr.mxu0 0.0
        %2718 = vmatpush1.xpose.msra.mxu0 0.0
        %2719 = vmatprep.subr.mxu0 0.0
        %2720 = vmatpush1.xpose.msra.mxu0 0.0
        %2721 = vmatprep.subr.mxu0 0.0
        %2722 = vmatpush1.xpose.msra.mxu0 0.0
        %2723 = vmatprep.subr.mxu0 0.0
        %2724 = vmatpush1.xpose.msra.mxu0 0.0
        %2725 = vmatprep.subr.mxu0 0.0
        %2726 = vmatpush1.xpose.msra.mxu0 0.0
        %2727 = vmatprep.subr.mxu0 0.0
        %2728 = vmatpush1.xpose.msra.mxu0 0.0
        %2729 = vmatprep.subr.mxu0 0.0
        %2730 = vmatpush1.xpose.msra.mxu0 0.0
        %2731 = vmatprep.subr.mxu0 0.0
        %2732 = vmatpush1.xpose.msra.mxu0 0.0
        %2733 = vmatprep.subr.mxu0 0.0
        %2734 = vmatpush1.xpose.msra.mxu0 0.0
        %2735 = vmatprep.subr.mxu0 0.0
        %2736 = vmatpush1.xpose.msra.mxu0 0.0
        %2737 = vmatprep.subr.mxu0 0.0
        %2738 = vmatpush1.xpose.msra.mxu0 0.0
        %2739 = vmatprep.subr.mxu0 0.0
        %2740 = vmatpush1.xpose.msra.mxu0 0.0
        %2741 = vmatprep.mubr.f32.mxu0 %v2606
        %2742 = vmatmul.mubr.f32.gmra.mrb[0].mxu0 %v2605
        %v2743 = vpop.f32.mrb[0].mxu0
        %v2744 = vadd.f32 %v2674, %v2743
        %v2745 = vpop.f32.mrb[0].mxu0
        %2746 = vdwg.mxu0
        %2747 = vmatprep.subr.mxu0 %v1026
        %2748 = vmatpush1.xpose.msra.mxu0 %v1025
        %2749 = vmatprep.subr.mxu0 %v1030
        %2750 = vmatpush1.xpose.msra.mxu0 %v1029
        %2751 = vmatprep.subr.mxu0 %v1034
        %2752 = vmatpush1.xpose.msra.mxu0 %v1033
        %2753 = vmatprep.subr.mxu0 %v1038
        %2754 = vmatpush1.xpose.msra.mxu0 %v1037
        %2755 = vmatprep.subr.mxu0 %v1042
        %2756 = vmatpush1.xpose.msra.mxu0 %v1041
        %2757 = vmatprep.subr.mxu0 %v1046
        %2758 = vmatpush1.xpose.msra.mxu0 %v1045
        %2759 = vmatprep.subr.mxu0 %v1050
        %2760 = vmatpush1.xpose.msra.mxu0 %v1049
        %2761 = vmatprep.subr.mxu0 %v1054
        %2762 = vmatpush1.xpose.msra.mxu0 %v1053
        %2763 = vmatprep.subr.mxu0 %v1058
        %2764 = vmatpush1.xpose.msra.mxu0 %v1057
        %2765 = vmatprep.subr.mxu0 %v1062
        %2766 = vmatpush1.xpose.msra.mxu0 %v1061
        %2767 = vmatprep.subr.mxu0 %v1066
        %2768 = vmatpush1.xpose.msra.mxu0 %v1065
        %2769 = vmatprep.subr.mxu0 %v1070
        %2770 = vmatpush1.xpose.msra.mxu0 %v1069
        %2771 = vmatprep.subr.mxu0 %v1074
        %2772 = vmatpush1.xpose.msra.mxu0 %v1073
        %2773 = vmatprep.subr.mxu0 %v1078
        %2774 = vmatpush1.xpose.msra.mxu0 %v1077
        %2775 = vmatprep.subr.mxu0 %v1082
        %2776 = vmatpush1.xpose.msra.mxu0 %v1081
        %2777 = vmatprep.subr.mxu0 %v1086
        %2778 = vmatpush1.xpose.msra.mxu0 %v1085
        %2779 = vmatprep.subr.mxu0 0.0
        %2780 = vmatpush1.xpose.msra.mxu0 0.0
        %2781 = vmatprep.subr.mxu0 0.0
        %2782 = vmatpush1.xpose.msra.mxu0 0.0
        %2783 = vmatprep.subr.mxu0 0.0
        %2784 = vmatpush1.xpose.msra.mxu0 0.0
        %2785 = vmatprep.subr.mxu0 0.0
        %2786 = vmatpush1.xpose.msra.mxu0 0.0
        %2787 = vmatprep.subr.mxu0 0.0
        %2788 = vmatpush1.xpose.msra.mxu0 0.0
        %2789 = vmatprep.subr.mxu0 0.0
        %2790 = vmatpush1.xpose.msra.mxu0 0.0
        %2791 = vmatprep.subr.mxu0 0.0
        %2792 = vmatpush1.xpose.msra.mxu0 0.0
        %2793 = vmatprep.subr.mxu0 0.0
        %2794 = vmatpush1.xpose.msra.mxu0 0.0
        %2795 = vmatprep.subr.mxu0 0.0
        %2796 = vmatpush1.xpose.msra.mxu0 0.0
        %2797 = vmatprep.subr.mxu0 0.0
        %2798 = vmatpush1.xpose.msra.mxu0 0.0
        %2799 = vmatprep.subr.mxu0 0.0
        %2800 = vmatpush1.xpose.msra.mxu0 0.0
        %2801 = vmatprep.subr.mxu0 0.0
        %2802 = vmatpush1.xpose.msra.mxu0 0.0
        %2803 = vmatprep.subr.mxu0 0.0
        %2804 = vmatpush1.xpose.msra.mxu0 0.0
        %2805 = vmatprep.subr.mxu0 0.0
        %2806 = vmatpush1.xpose.msra.mxu0 0.0
        %2807 = vmatprep.subr.mxu0 0.0
        %2808 = vmatpush1.xpose.msra.mxu0 0.0
        %2809 = vmatprep.subr.mxu0 0.0
        %2810 = vmatpush1.xpose.msra.mxu0 0.0
        %2811 = vmatprep.mubr.f32.mxu0 %v2600
        %2812 = vmatmul.mubr.f32.gmra.mrb[0].mxu0 %v2599
        %v2813 = vpop.f32.mrb[0].mxu0
        %v2814 = vadd.f32 %v2744, %v2813
        %v2815 = vpop.f32.mrb[0].mxu0
        %2816 = vdwg.mxu0
        %2817 = vmatprep.subr.mxu0 %v1028
        %2818 = vmatpush1.xpose.msra.mxu0 %v1027
        %2819 = vmatprep.subr.mxu0 %v1032
        %2820 = vmatpush1.xpose.msra.mxu0 %v1031
        %2821 = vmatprep.subr.mxu0 %v1036
        %2822 = vmatpush1.xpose.msra.mxu0 %v1035
        %2823 = vmatprep.subr.mxu0 %v1040
        %2824 = vmatpush1.xpose.msra.mxu0 %v1039
        %2825 = vmatprep.subr.mxu0 %v1044
        %2826 = vmatpush1.xpose.msra.mxu0 %v1043
        %2827 = vmatprep.subr.mxu0 %v1048
        %2828 = vmatpush1.xpose.msra.mxu0 %v1047
        %2829 = vmatprep.subr.mxu0 %v1052
        %2830 = vmatpush1.xpose.msra.mxu0 %v1051
        %2831 = vmatprep.subr.mxu0 %v1056
        %2832 = vmatpush1.xpose.msra.mxu0 %v1055
        %2833 = vmatprep.subr.mxu0 %v1060
        %2834 = vmatpush1.xpose.msra.mxu0 %v1059
        %2835 = vmatprep.subr.mxu0 %v1064
        %2836 = vmatpush1.xpose.msra.mxu0 %v1063
        %2837 = vmatprep.subr.mxu0 %v1068
        %2838 = vmatpush1.xpose.msra.mxu0 %v1067
        %2839 = vmatprep.subr.mxu0 %v1072
        %2840 = vmatpush1.xpose.msra.mxu0 %v1071
        %2841 = vmatprep.subr.mxu0 %v1076
        %2842 = vmatpush1.xpose.msra.mxu0 %v1075
        %2843 = vmatprep.subr.mxu0 %v1080
        %2844 = vmatpush1.xpose.msra.mxu0 %v1079
        %2845 = vmatprep.subr.mxu0 %v1084
        %2846 = vmatpush1.xpose.msra.mxu0 %v1083
        %2847 = vmatprep.subr.mxu0 %v1088
        %2848 = vmatpush1.xpose.msra.mxu0 %v1087
        %2849 = vmatprep.subr.mxu0 0.0
        %2850 = vmatpush1.xpose.msra.mxu0 0.0
        %2851 = vmatprep.subr.mxu0 0.0
        %2852 = vmatpush1.xpose.msra.mxu0 0.0
        %2853 = vmatprep.subr.mxu0 0.0
        %2854 = vmatpush1.xpose.msra.mxu0 0.0
        %2855 = vmatprep.subr.mxu0 0.0
        %2856 = vmatpush1.xpose.msra.mxu0 0.0
        %2857 = vmatprep.subr.mxu0 0.0
        %2858 = vmatpush1.xpose.msra.mxu0 0.0
        %2859 = vmatprep.subr.mxu0 0.0
        %2860 = vmatpush1.xpose.msra.mxu0 0.0
        %2861 = vmatprep.subr.mxu0 0.0
        %2862 = vmatpush1.xpose.msra.mxu0 0.0
        %2863 = vmatprep.subr.mxu0 0.0
        %2864 = vmatpush1.xpose.msra.mxu0 0.0
        %2865 = vmatprep.subr.mxu0 0.0
        %2866 = vmatpush1.xpose.msra.mxu0 0.0
        %2867 = vmatprep.subr.mxu0 0.0
        %2868 = vmatpush1.xpose.msra.mxu0 0.0
        %2869 = vmatprep.subr.mxu0 0.0
        %2870 = vmatpush1.xpose.msra.mxu0 0.0
        %2871 = vmatprep.subr.mxu0 0.0
        %2872 = vmatpush1.xpose.msra.mxu0 0.0
        %2873 = vmatprep.subr.mxu0 0.0
        %2874 = vmatpush1.xpose.msra.mxu0 0.0
        %2875 = vmatprep.subr.mxu0 0.0
        %2876 = vmatpush1.xpose.msra.mxu0 0.0
        %2877 = vmatprep.subr.mxu0 0.0
        %2878 = vmatpush1.xpose.msra.mxu0 0.0
        %2879 = vmatprep.subr.mxu0 0.0
        %2880 = vmatpush1.xpose.msra.mxu0 0.0
        %2881 = vmatprep.mubr.f32.mxu0 %v2602
        %2882 = vmatmul.mubr.f32.gmra.mrb[0].mxu0 %v2601
        %v2883 = vpop.f32.mrb[0].mxu0
        %v2884 = vadd.f32 %v2814, %v2883
        %v2885 = vpop.f32.mrb[0].mxu0
        %2886 = vdwg.mxu0
        %2887 = vmatprep.subr.mxu0 %v818
        %2888 = vmatpush1.xpose.msra.mxu0 %v817
        %2889 = vmatprep.subr.mxu0 %v822
        %2890 = vmatpush1.xpose.msra.mxu0 %v821
        %2891 = vmatprep.subr.mxu0 %v826
        %2892 = vmatpush1.xpose.msra.mxu0 %v825
        %2893 = vmatprep.subr.mxu0 %v830
        %2894 = vmatpush1.xpose.msra.mxu0 %v829
        %2895 = vmatprep.subr.mxu0 %v834
        %2896 = vmatpush1.xpose.msra.mxu0 %v833
        %2897 = vmatprep.subr.mxu0 %v838
        %2898 = vmatpush1.xpose.msra.mxu0 %v837
        %2899 = vmatprep.subr.mxu0 %v842
        %2900 = vmatpush1.xpose.msra.mxu0 %v841
        %2901 = vmatprep.subr.mxu0 %v846
        %2902 = vmatpush1.xpose.msra.mxu0 %v845
        %2903 = vmatprep.subr.mxu0 %v850
        %2904 = vmatpush1.xpose.msra.mxu0 %v849
        %2905 = vmatprep.subr.mxu0 %v854
        %2906 = vmatpush1.xpose.msra.mxu0 %v853
        %2907 = vmatprep.subr.mxu0 %v858
        %2908 = vmatpush1.xpose.msra.mxu0 %v857
        %2909 = vmatprep.subr.mxu0 %v862
        %2910 = vmatpush1.xpose.msra.mxu0 %v861
        %2911 = vmatprep.subr.mxu0 %v866
        %2912 = vmatpush1.xpose.msra.mxu0 %v865
        %2913 = vmatprep.subr.mxu0 %v870
        %2914 = vmatpush1.xpose.msra.mxu0 %v869
        %2915 = vmatprep.subr.mxu0 %v874
        %2916 = vmatpush1.xpose.msra.mxu0 %v873
        %2917 = vmatprep.subr.mxu0 %v878
        %2918 = vmatpush1.xpose.msra.mxu0 %v877
        %2919 = vmatprep.subr.mxu0 0.0
        %2920 = vmatpush1.xpose.msra.mxu0 0.0
        %2921 = vmatprep.subr.mxu0 0.0
        %2922 = vmatpush1.xpose.msra.mxu0 0.0
        %2923 = vmatprep.subr.mxu0 0.0
        %2924 = vmatpush1.xpose.msra.mxu0 0.0
        %2925 = vmatprep.subr.mxu0 0.0
        %2926 = vmatpush1.xpose.msra.mxu0 0.0
        %2927 = vmatprep.subr.mxu0 0.0
        %2928 = vmatpush1.xpose.msra.mxu0 0.0
        %2929 = vmatprep.subr.mxu0 0.0
        %2930 = vmatpush1.xpose.msra.mxu0 0.0
        %2931 = vmatprep.subr.mxu0 0.0
        %2932 = vmatpush1.xpose.msra.mxu0 0.0
        %2933 = vmatprep.subr.mxu0 0.0
        %2934 = vmatpush1.xpose.msra.mxu0 0.0
        %2935 = vmatprep.subr.mxu0 0.0
        %2936 = vmatpush1.xpose.msra.mxu0 0.0
        %2937 = vmatprep.subr.mxu0 0.0
        %2938 = vmatpush1.xpose.msra.mxu0 0.0
        %2939 = vmatprep.subr.mxu0 0.0
        %2940 = vmatpush1.xpose.msra.mxu0 0.0
        %2941 = vmatprep.subr.mxu0 0.0
        %2942 = vmatpush1.xpose.msra.mxu0 0.0
        %2943 = vmatprep.subr.mxu0 0.0
        %2944 = vmatpush1.xpose.msra.mxu0 0.0
        %2945 = vmatprep.subr.mxu0 0.0
        %2946 = vmatpush1.xpose.msra.mxu0 0.0
        %2947 = vmatprep.subr.mxu0 0.0
        %2948 = vmatpush1.xpose.msra.mxu0 0.0
        %2949 = vmatprep.subr.mxu0 0.0
        %2950 = vmatpush1.xpose.msra.mxu0 0.0
        %2951 = vmatprep.mubr.f32.mxu0 %v2604
        %2952 = vmatmul.mubr.f32.gmra.mrb[0].mxu0 %v2603
        %v2953 = vpop.f32.mrb[0].mxu0
        %v2954 = vadd.f32 0.0, %v2953
        %v2955 = vpop.f32.mrb[0].mxu0
        %2956 = vdwg.mxu0
        %2957 = vmatprep.subr.mxu0 %v820
        %2958 = vmatpush1.xpose.msra.mxu0 %v819
        %2959 = vmatprep.subr.mxu0 %v824
        %2960 = vmatpush1.xpose.msra.mxu0 %v823
        %2961 = vmatprep.subr.mxu0 %v828
        %2962 = vmatpush1.xpose.msra.mxu0 %v827
        %2963 = vmatprep.subr.mxu0 %v832
        %2964 = vmatpush1.xpose.msra.mxu0 %v831
        %2965 = vmatprep.subr.mxu0 %v836
        %2966 = vmatpush1.xpose.msra.mxu0 %v835
        %2967 = vmatprep.subr.mxu0 %v840
        %2968 = vmatpush1.xpose.msra.mxu0 %v839
        %2969 = vmatprep.subr.mxu0 %v844
        %2970 = vmatpush1.xpose.msra.mxu0 %v843
        %2971 = vmatprep.subr.mxu0 %v848
        %2972 = vmatpush1.xpose.msra.mxu0 %v847
        %2973 = vmatprep.subr.mxu0 %v852
        %2974 = vmatpush1.xpose.msra.mxu0 %v851
        %2975 = vmatprep.subr.mxu0 %v856
        %2976 = vmatpush1.xpose.msra.mxu0 %v855
        %2977 = vmatprep.subr.mxu0 %v860
        %2978 = vmatpush1.xpose.msra.mxu0 %v859
        %2979 = vmatprep.subr.mxu0 %v864
        %2980 = vmatpush1.xpose.msra.mxu0 %v863
        %2981 = vmatprep.subr.mxu0 %v868
        %2982 = vmatpush1.xpose.msra.mxu0 %v867
        %2983 = vmatprep.subr.mxu0 %v872
        %2984 = vmatpush1.xpose.msra.mxu0 %v871
        %2985 = vmatprep.subr.mxu0 %v876
        %2986 = vmatpush1.xpose.msra.mxu0 %v875
        %2987 = vmatprep.subr.mxu0 %v880
        %2988 = vmatpush1.xpose.msra.mxu0 %v879
        %2989 = vmatprep.subr.mxu0 0.0
        %2990 = vmatpush1.xpose.msra.mxu0 0.0
        %2991 = vmatprep.subr.mxu0 0.0
        %2992 = vmatpush1.xpose.msra.mxu0 0.0
        %2993 = vmatprep.subr.mxu0 0.0
        %2994 = vmatpush1.xpose.msra.mxu0 0.0
        %2995 = vmatprep.subr.mxu0 0.0
        %2996 = vmatpush1.xpose.msra.mxu0 0.0
        %2997 = vmatprep.subr.mxu0 0.0
        %2998 = vmatpush1.xpose.msra.mxu0 0.0
        %2999 = vmatprep.subr.mxu0 0.0
        %3000 = vmatpush1.xpose.msra.mxu0 0.0
        %3001 = vmatprep.subr.mxu0 0.0
        %3002 = vmatpush1.xpose.msra.mxu0 0.0
        %3003 = vmatprep.subr.mxu0 0.0
        %3004 = vmatpush1.xpose.msra.mxu0 0.0
        %3005 = vmatprep.subr.mxu0 0.0
        %3006 = vmatpush1.xpose.msra.mxu0 0.0
        %3007 = vmatprep.subr.mxu0 0.0
        %3008 = vmatpush1.xpose.msra.mxu0 0.0
        %3009 = vmatprep.subr.mxu0 0.0
        %3010 = vmatpush1.xpose.msra.mxu0 0.0
        %3011 = vmatprep.subr.mxu0 0.0
        %3012 = vmatpush1.xpose.msra.mxu0 0.0
        %3013 = vmatprep.subr.mxu0 0.0
        %3014 = vmatpush1.xpose.msra.mxu0 0.0
        %3015 = vmatprep.subr.mxu0 0.0
        %3016 = vmatpush1.xpose.msra.mxu0 0.0
        %3017 = vmatprep.subr.mxu0 0.0
        %3018 = vmatpush1.xpose.msra.mxu0 0.0
        %3019 = vmatprep.subr.mxu0 0.0
        %3020 = vmatpush1.xpose.msra.mxu0 0.0
        %3021 = vmatprep.mubr.f32.mxu0 %v2606
        %3022 = vmatmul.mubr.f32.gmra.mrb[0].mxu0 %v2605
        %v3023 = vpop.f32.mrb[0].mxu0
        %v3024 = vadd.f32 %v2954, %v3023
        %v3025 = vpop.f32.mrb[0].mxu0
        %3026 = vdwg.mxu0
        %3027 = vmatprep.subr.mxu0 %v818
        %3028 = vmatpush1.xpose.msra.mxu0 %v817
        %3029 = vmatprep.subr.mxu0 %v822
        %3030 = vmatpush1.xpose.msra.mxu0 %v821
        %3031 = vmatprep.subr.mxu0 %v826
        %3032 = vmatpush1.xpose.msra.mxu0 %v825
        %3033 = vmatprep.subr.mxu0 %v830
        %3034 = vmatpush1.xpose.msra.mxu0 %v829
        %3035 = vmatprep.subr.mxu0 %v834
        %3036 = vmatpush1.xpose.msra.mxu0 %v833
        %3037 = vmatprep.subr.mxu0 %v838
        %3038 = vmatpush1.xpose.msra.mxu0 %v837
        %3039 = vmatprep.subr.mxu0 %v842
        %3040 = vmatpush1.xpose.msra.mxu0 %v841
        %3041 = vmatprep.subr.mxu0 %v846
        %3042 = vmatpush1.xpose.msra.mxu0 %v845
        %3043 = vmatprep.subr.mxu0 %v850
        %3044 = vmatpush1.xpose.msra.mxu0 %v849
        %3045 = vmatprep.subr.mxu0 %v854
        %3046 = vmatpush1.xpose.msra.mxu0 %v853
        %3047 = vmatprep.subr.mxu0 %v858
        %3048 = vmatpush1.xpose.msra.mxu0 %v857
        %3049 = vmatprep.subr.mxu0 %v862
        %3050 = vmatpush1.xpose.msra.mxu0 %v861
        %3051 = vmatprep.subr.mxu0 %v866
        %3052 = vmatpush1.xpose.msra.mxu0 %v865
        %3053 = vmatprep.subr.mxu0 %v870
        %3054 = vmatpush1.xpose.msra.mxu0 %v869
        %3055 = vmatprep.subr.mxu0 %v874
        %3056 = vmatpush1.xpose.msra.mxu0 %v873
        %3057 = vmatprep.subr.mxu0 %v878
        %3058 = vmatpush1.xpose.msra.mxu0 %v877
        %3059 = vmatprep.subr.mxu0 0.0
        %3060 = vmatpush1.xpose.msra.mxu0 0.0
        %3061 = vmatprep.subr.mxu0 0.0
        %3062 = vmatpush1.xpose.msra.mxu0 0.0
        %3063 = vmatprep.subr.mxu0 0.0
        %3064 = vmatpush1.xpose.msra.mxu0 0.0
        %3065 = vmatprep.subr.mxu0 0.0
        %3066 = vmatpush1.xpose.msra.mxu0 0.0
        %3067 = vmatprep.subr.mxu0 0.0
        %3068 = vmatpush1.xpose.msra.mxu0 0.0
        %3069 = vmatprep.subr.mxu0 0.0
        %3070 = vmatpush1.xpose.msra.mxu0 0.0
        %3071 = vmatprep.subr.mxu0 0.0
        %3072 = vmatpush1.xpose.msra.mxu0 0.0
        %3073 = vmatprep.subr.mxu0 0.0
        %3074 = vmatpush1.xpose.msra.mxu0 0.0
        %3075 = vmatprep.subr.mxu0 0.0
        %3076 = vmatpush1.xpose.msra.mxu0 0.0
        %3077 = vmatprep.subr.mxu0 0.0
        %3078 = vmatpush1.xpose.msra.mxu0 0.0
        %3079 = vmatprep.subr.mxu0 0.0
        %3080 = vmatpush1.xpose.msra.mxu0 0.0
        %3081 = vmatprep.subr.mxu0 0.0
        %3082 = vmatpush1.xpose.msra.mxu0 0.0
        %3083 = vmatprep.subr.mxu0 0.0
        %3084 = vmatpush1.xpose.msra.mxu0 0.0
        %3085 = vmatprep.subr.mxu0 0.0
        %3086 = vmatpush1.xpose.msra.mxu0 0.0
        %3087 = vmatprep.subr.mxu0 0.0
        %3088 = vmatpush1.xpose.msra.mxu0 0.0
        %3089 = vmatprep.subr.mxu0 0.0
        %3090 = vmatpush1.xpose.msra.mxu0 0.0
        %3091 = vmatprep.mubr.f32.mxu0 %v2600
        %3092 = vmatmul.mubr.f32.gmra.mrb[0].mxu0 %v2599
        %v3093 = vpop.f32.mrb[0].mxu0
        %v3094 = vadd.f32 %v3024, %v3093
        %v3095 = vpop.f32.mrb[0].mxu0
        %3096 = vdwg.mxu0
        %3097 = vmatprep.subr.mxu0 %v820
        %3098 = vmatpush1.xpose.msra.mxu0 %v819
        %3099 = vmatprep.subr.mxu0 %v824
        %3100 = vmatpush1.xpose.msra.mxu0 %v823
        %3101 = vmatprep.subr.mxu0 %v828
        %3102 = vmatpush1.xpose.msra.mxu0 %v827
        %3103 = vmatprep.subr.mxu0 %v832
        %3104 = vmatpush1.xpose.msra.mxu0 %v831
        %3105 = vmatprep.subr.mxu0 %v836
        %3106 = vmatpush1.xpose.msra.mxu0 %v835
        %3107 = vmatprep.subr.mxu0 %v840
        %3108 = vmatpush1.xpose.msra.mxu0 %v839
        %3109 = vmatprep.subr.mxu0 %v844
        %3110 = vmatpush1.xpose.msra.mxu0 %v843
        %3111 = vmatprep.subr.mxu0 %v848
        %3112 = vmatpush1.xpose.msra.mxu0 %v847
        %3113 = vmatprep.subr.mxu0 %v852
        %3114 = vmatpush1.xpose.msra.mxu0 %v851
        %3115 = vmatprep.subr.mxu0 %v856
        %3116 = vmatpush1.xpose.msra.mxu0 %v855
        %3117 = vmatprep.subr.mxu0 %v860
        %3118 = vmatpush1.xpose.msra.mxu0 %v859
        %3119 = vmatprep.subr.mxu0 %v864
        %3120 = vmatpush1.xpose.msra.mxu0 %v863
        %3121 = vmatprep.subr.mxu0 %v868
        %3122 = vmatpush1.xpose.msra.mxu0 %v867
        %3123 = vmatprep.subr.mxu0 %v872
        %3124 = vmatpush1.xpose.msra.mxu0 %v871
        %3125 = vmatprep.subr.mxu0 %v876
        %3126 = vmatpush1.xpose.msra.mxu0 %v875
        %3127 = vmatprep.subr.mxu0 %v880
        %3128 = vmatpush1.xpose.msra.mxu0 %v879
        %3129 = vmatprep.subr.mxu0 0.0
        %3130 = vmatpush1.xpose.msra.mxu0 0.0
        %3131 = vmatprep.subr.mxu0 0.0
        %3132 = vmatpush1.xpose.msra.mxu0 0.0
        %3133 = vmatprep.subr.mxu0 0.0
        %3134 = vmatpush1.xpose.msra.mxu0 0.0
        %3135 = vmatprep.subr.mxu0 0.0
        %3136 = vmatpush1.xpose.msra.mxu0 0.0
        %3137 = vmatprep.subr.mxu0 0.0
        %3138 = vmatpush1.xpose.msra.mxu0 0.0
        %3139 = vmatprep.subr.mxu0 0.0
        %3140 = vmatpush1.xpose.msra.mxu0 0.0
        %3141 = vmatprep.subr.mxu0 0.0
        %3142 = vmatpush1.xpose.msra.mxu0 0.0
        %3143 = vmatprep.subr.mxu0 0.0
        %3144 = vmatpush1.xpose.msra.mxu0 0.0
        %3145 = vmatprep.subr.mxu0 0.0
        %3146 = vmatpush1.xpose.msra.mxu0 0.0
        %3147 = vmatprep.subr.mxu0 0.0
        %3148 = vmatpush1.xpose.msra.mxu0 0.0
        %3149 = vmatprep.subr.mxu0 0.0
        %3150 = vmatpush1.xpose.msra.mxu0 0.0
        %3151 = vmatprep.subr.mxu0 0.0
        %3152 = vmatpush1.xpose.msra.mxu0 0.0
        %3153 = vmatprep.subr.mxu0 0.0
        %3154 = vmatpush1.xpose.msra.mxu0 0.0
        %3155 = vmatprep.subr.mxu0 0.0
        %3156 = vmatpush1.xpose.msra.mxu0 0.0
        %3157 = vmatprep.subr.mxu0 0.0
        %3158 = vmatpush1.xpose.msra.mxu0 0.0
        %3159 = vmatprep.subr.mxu0 0.0
        %3160 = vmatpush1.xpose.msra.mxu0 0.0
        %3161 = vmatprep.mubr.f32.mxu0 %v2602
        %3162 = vmatmul.mubr.f32.gmra.mrb[0].mxu0 %v2601
        %v3163 = vpop.f32.mrb[0].mxu0
        %v3164 = vadd.f32 %v3094, %v3163
        %v3165 = vpop.f32.mrb[0].mxu0
        %3166 = vdwg.mxu0
        %v3167 = vsub.f32 %v2884, %v3164
        %v3168 = vadd.f32 %v2594, %v3167
        %3169 = vst [vmem:[%s413] sm:$0x7] %v3168
        %p3170 = scmp.lt.s32.totalorder %s27, 1
        %s3171 = scalar_select %p3170, %s27, 1
        %s3172 = smul.addr %s3171, 4
        %s3173 = scalar_lea.vmem %s6, %s3172
        %p3174 = scmp.lt.s32.totalorder %s27, 1
        %s3175 = scalar_select %p3174, %s27, 1
        %s3176 = smul.addr %s3175, 2
        %s3177 = smul.addr %s3176, 8
        %s3178 = scalar_lea.vmem %s7, %s3177
        // Predicated region
        $region65: #{tpu_custom_call.1} parent=43 // pred_check
          %p3179 = pneg %p206
        $region66: #{tpu_custom_call.1} parent=43 // pred_check_branch
          %3181 = sbr.rel (%p3179) target = $region68
        $region67: #{tpu_custom_call.1} parent=43 // pred_region
          _
        $region68: #{tpu_custom_call.1} parent=43 // pred_fallthru
          _
        // Predicated region
        $region69: #{tpu_custom_call.1} parent=43 // pred_check
          %p3182 = pneg %p232
        $region70: #{tpu_custom_call.1} parent=43 // pred_check_branch
          %3184 = sbr.rel (%p3182) target = $region72
        $region71: #{tpu_custom_call.1} parent=43 // pred_region
          _
        $region72: #{tpu_custom_call.1} parent=43 // pred_fallthru
          _
      $region44: #{tpu_custom_call.1} parent=5 // pred_fallthru
        _
      %p3185 = scmp.le.s32.totalorder 2, %s18
      // Predicated region
      $region73: #{tpu_custom_call.1} parent=5 // pred_check
        %p3186 = pneg %p3185
      $region74: #{tpu_custom_call.1} parent=5 // pred_check_branch
        %3188 = sbr.rel (%p3186) target = $region76
      $region75: #{tpu_custom_call.1} parent=5 // pred_region
        %s3189 = ssub.s32 %s18, 2
        // Predicated region
        $region77: #{tpu_custom_call.1} parent=75 // pred_check
          %p3190 = pneg %p212
        $region78: #{tpu_custom_call.1} parent=75 // pred_check_branch
          %3192 = sbr.rel (%p3190) target = $region80
        $region79: #{tpu_custom_call.1} parent=75 // pred_region
          %p3193 = scmp.lt.s32.totalorder %s29, 1
          %s3194 = scalar_select %p3193, %s29, 1
          %s3195 = smul.addr %s3194, 4
          %s3196 = scalar_lea.vmem %s6, %s3195
        $region80: #{tpu_custom_call.1} parent=75 // pred_fallthru
          _
        // Predicated region
        $region81: #{tpu_custom_call.1} parent=75 // pred_check
          %p3197 = pneg %p238
        $region82: #{tpu_custom_call.1} parent=75 // pred_check_branch
          %3199 = sbr.rel (%p3197) target = $region84
        $region83: #{tpu_custom_call.1} parent=75 // pred_region
          %p3200 = scmp.lt.s32.totalorder %s29, 1
          %s3201 = scalar_select %p3200, %s29, 1
          %s3202 = smul.addr %s3201, 2
          %s3203 = smul.addr %s3202, 8
          %s3204 = scalar_lea.vmem %s7, %s3203
        $region84: #{tpu_custom_call.1} parent=75 // pred_fallthru
          _
      $region76: #{tpu_custom_call.1} parent=5 // pred_fallthru
        _
    $region6: #{tpu_custom_call.1} parent=1 // loop_footer
      %s22 = sadd.s32 1, %s18
    $region7: #{tpu_custom_call.1} parent=1 // loop_footer_branch
      %17 = sbr.rel target = $region3
    $region8: #{tpu_custom_call.1} parent=1 // loop_exit
      _
    %3205 = vsyncpa [#allocation3], 1
    %s3206 = scalar_lea.sflag [#allocation3], 1
    %3207 = vsyncpa %s3206, 1
    %3208 = vsyncpa [#allocation5], 1
    %s3209 = scalar_lea.sflag [#allocation5], 1
    %3210 = vsyncpa %s3209, 1

</llo_original>
